<compile_context>
chip_gen: v6e
topology: v6e:2x2x1
jax: 0.10.0
libtpu: 0.0.40
codegen_flags: <defaults>
</compile_context>

<pallas_src>
import functools

import jax
import jax.numpy as jnp
import numpy as np
from jax.experimental import pallas as pl
from jax.experimental.pallas import tpu as pltpu

HIDDEN = 128
NUM_LAYERS = 2
NUM_DIR = 2
IN_SIZE = 2
OUT_CLASSES = 11
OUT_PAD = 128   # lane-dense classifier output; sliced to 11 in the wrapper
RB = 8          # sublane rows per timestep block (>= 2*B, multiple of 8)
XCOLS = 8       # packed layer-0 input columns: [x_f(2) | x_b(2) | 1_f | 1_b | pad(2)]


# ----------------------------------------------------------------------------
# Fused Pallas kernel
# ----------------------------------------------------------------------------
def _gate_math(g, c, H):
    """Pointwise LSTM gate math on a packed (RB, 4H) gate block (row-local)."""
    i_g = jax.nn.sigmoid(g[:, 0 * H:1 * H])
    f_g = jax.nn.sigmoid(g[:, 1 * H:2 * H])
    g_g = jnp.tanh(g[:, 2 * H:3 * H])
    o_g = jax.nn.sigmoid(g[:, 3 * H:4 * H])
    c_new = f_g * c + i_g * g_g
    h_new = o_g * jnp.tanh(c_new)
    return h_new, c_new


def _bilstm_fused_kernel(x_ref, w0_ref, hc0_ref, w1_hbm, wout_hbm, out_ref,
                         w1_vmem, wout_vmem, l0_sc, dma_sems, *, T, B, H):
    """Whole BiLSTMNet11 forward for one small batch (single grid point).

    x_ref    : (T*RB, XCOLS)  packed layer-0 input (fwd rows / bwd rows / pad)
    w0_ref   : (2H+8, 4H)     rows 0:2H = [W_hh_f; W_hh_b], rows 2H:2H+8 =
                              [W_ih_f(2); W_ih_b(2); b_f; b_b; 0; 0]
    hc0_ref  : (4, RB, 2H)    packed initial states (see wrapper)
    w1_hbm   : (3H+8, 8H)     layer-1 weights in HBM (cols 0:4H fwd, 4H:8H bwd)
    wout_hbm : (2H+8, OUT_PAD) classifier weights (+ bias row 2H) in HBM
    out_ref  : (RB, OUT_PAD)
    """
    f32 = jnp.float32

    # -- kick off the lazy weight DMAs; they run under the layer-0 recurrence.
    w1_cp = pltpu.make_async_copy(w1_hbm, w1_vmem, dma_sems.at[0])
    wo_cp = pltpu.make_async_copy(wout_hbm, wout_vmem, dma_sems.at[1])
    w1_cp.start()
    wo_cp.start()

    # -------- layer 0: packed bidirectional recurrence ----------------------
    whh0 = w0_ref[0:2 * H, :]                 # (2H, 4H) stacked [fwd; bwd]
    w0in = w0_ref[2 * H:2 * H + XCOLS, :]     # (8, 4H)  packed input + bias rows

    # Hoisted input projection + per-direction bias for BOTH directions in one
    # tiny GEMM (indicator columns select the bias rows).
    gx0 = jnp.dot(x_ref[...], w0in, preferred_element_type=f32)   # (T*RB, 4H)

    row = jax.lax.broadcasted_iota(jnp.int32, (RB, 1), 0)
    fmask = (row < B).astype(f32)
    bmask = jnp.logical_and(row >= B, row < 2 * B).astype(f32)

    # Block-diagonal "wide" state: rows 0..B-1 = [h_f, 0], rows B..2B-1 = [0, h_b]
    h_wide = hc0_ref[0]                        # (RB, 2H)
    c = hc0_ref[1, :, 0:H]                     # (RB, H)

    for i in range(T):
        g = gx0[i * RB:(i + 1) * RB, :] + jnp.dot(
            h_wide, whh0, preferred_element_type=f32)              # (RB, 4H)
        h, c = _gate_math(g, c, H)
        h_wide = jnp.concatenate([h * fmask, h * bmask], axis=-1)  # (RB, 2H)
        # fwd output belongs to time i, bwd output to time T-1-i.
        l0_sc[i, 0:B, 0:H] = h[0:B, :]
        l0_sc[T - 1 - i, 0:B, H:2 * H] = h[B:2 * B, :]

    # -------- layer 1 (weights arrived during layer 0) ----------------------
    w1_cp.wait()
    wih1 = w1_vmem[0:2 * H, :]                 # (2H, 8H)  fwd cols | bwd cols
    whh1f = w1_vmem[2 * H:3 * H, 0:4 * H]      # (H, 4H)
    whh1b = w1_vmem[2 * H:3 * H, 4 * H:8 * H]  # (H, 4H)
    b1 = w1_vmem[3 * H:3 * H + 1, :]           # (1, 8H)

    l0 = l0_sc[...].reshape(T * RB, 2 * H)
    gx1 = jnp.dot(l0, wih1, preferred_element_type=f32) + b1       # (T*RB, 8H)

    # Backward direction of layer 1: only its t = T-1 output is consumed and
    # that is its FIRST processed step -> exactly one cell application.
    h1b = hc0_ref[3, :, 0:H]
    c1b = hc0_ref[3, :, H:2 * H]
    gb = gx1[(T - 1) * RB:T * RB, 4 * H:8 * H] + jnp.dot(
        h1b, whh1b, preferred_element_type=f32)
    h1b, c1b = _gate_math(gb, c1b, H)

    # Forward direction of layer 1: full recurrence, keep only final hidden.
    h1 = hc0_ref[2, :, 0:H]
    c1 = hc0_ref[2, :, H:2 * H]
    for i in range(T):
        g = gx1[i * RB:(i + 1) * RB, 0:4 * H] + jnp.dot(
            h1, whh1f, preferred_element_type=f32)
        h1, c1 = _gate_math(g, c1, H)

    # -------- classifier epilogue (no concat; lane-dense full-tile store) ----
    wo_cp.wait()
    out = (jnp.dot(h1, wout_vmem[0:H, :], preferred_element_type=f32)
           + jnp.dot(h1b, wout_vmem[H:2 * H, :], preferred_element_type=f32)
           + wout_vmem[2 * H:2 * H + 1, :])
    out_ref[...] = out


# ----------------------------------------------------------------------------
# Wrapper
# ----------------------------------------------------------------------------
def bilstm_net11_forward(params, x_btd, h0, c0):
    """x_btd: (B, T, 2). h0/c0: (num_layers*2, B, H). Returns (B, 11)."""
    B, T, In = x_btd.shape
    H = HIDDEN
    assert 2 * B <= RB and 2 * In + 2 <= XCOLS

    # ---- packed layer-0 input: per time block, rows 0..B-1 = fwd x[t],
    #      rows B..2B-1 = bwd x[T-1-t]; indicator columns select the bias rows.
    x_tb = jnp.transpose(x_btd, (1, 0, 2)).astype(jnp.float32)     # (T, B, In)
    x_rev = x_tb[::-1]
    xp = jnp.zeros((T, RB, XCOLS), jnp.float32)
    xp = xp.at[:, 0:B, 0:In].set(x_tb)
    xp = xp.at[:, 0:B, 2 * In].set(1.0)
    xp = xp.at[:, B:2 * B, In:2 * In].set(x_rev)
    xp = xp.at[:, B:2 * B, 2 * In + 1].set(1.0)
    x_packed = xp.reshape(T * RB, XCOLS)

    # ---- packed initial states (h0/c0 order: l0 fwd, l0 bwd, l1 fwd, l1 bwd)
    hc0 = jnp.zeros((4, RB, 2 * H), jnp.float32)
    hc0 = hc0.at[0, 0:B, 0:H].set(h0[0])          # layer-0 fwd h (wide form)
    hc0 = hc0.at[0, B:2 * B, H:2 * H].set(h0[1])  # layer-0 bwd h (wide form)
    hc0 = hc0.at[1, 0:B, 0:H].set(c0[0])          # layer-0 fwd c
    hc0 = hc0.at[1, B:2 * B, 0:H].set(c0[1])      # layer-0 bwd c
    hc0 = hc0.at[2, 0:B, 0:H].set(h0[2])          # layer-1 fwd h
    hc0 = hc0.at[2, 0:B, H:2 * H].set(c0[2])      # layer-1 fwd c
    hc0 = hc0.at[3, 0:B, 0:H].set(h0[3])          # layer-1 bwd h
    hc0 = hc0.at[3, 0:B, H:2 * H].set(c0[3])      # layer-1 bwd c

    vmem = pl.BlockSpec(memory_space=pltpu.MemorySpace.VMEM)
    hbm = pl.BlockSpec(memory_space=pl.ANY)
    kernel = functools.partial(_bilstm_fused_kernel, T=T, B=B, H=H)

    out_pad = pl.pallas_call(
        kernel,
        out_shape=jax.ShapeDtypeStruct((RB, OUT_PAD), jnp.float32),
        in_specs=[vmem, vmem, vmem, hbm, hbm],
        out_specs=vmem,
        scratch_shapes=[
            pltpu.VMEM((3 * H + 8, 8 * H), jnp.float32),     # layer-1 weights
            pltpu.VMEM((2 * H + 8, OUT_PAD), jnp.float32),   # classifier weights
            pltpu.VMEM((T, RB, 2 * H), jnp.float32),         # layer-0 outputs
            pltpu.SemaphoreType.DMA((2,)),
        ],
    )(x_packed, params["w0_all"], hc0, params["w1_all"], params["wout_all"])
    return out_pad[:B, :OUT_CLASSES]


def init_params(key):
    """Deterministic parameter init (PyTorch-style U(-k, k), k = 1/sqrt(H))."""
    H = HIDDEN
    k = 1.0 / np.sqrt(H)
    params = {}
    keys = jax.random.split(key, NUM_LAYERS * NUM_DIR * 4 + 2)
    ki = 0
    for layer in range(NUM_LAYERS):
        in_sz = IN_SIZE if layer == 0 else NUM_DIR * H
        for d in range(NUM_DIR):
            name = f"l{layer}d{d}"
            w_ih = jax.random.uniform(keys[ki], (4 * H, in_sz),
                                      minval=-k, maxval=k); ki += 1
            w_hh = jax.random.uniform(keys[ki], (4 * H, H),
                                      minval=-k, maxval=k); ki += 1
            b_ih = jax.random.uniform(keys[ki], (4 * H,),
                                      minval=-k, maxval=k); ki += 1
            b_hh = jax.random.uniform(keys[ki], (4 * H,),
                                      minval=-k, maxval=k); ki += 1
            params[name] = {
                "wih_t": w_ih.T.astype(jnp.float32),              # (In, 4H)
                "whh_t": w_hh.T.astype(jnp.float32),              # (H, 4H)
                "bias": (b_ih + b_hh).reshape(1, 4 * H).astype(jnp.float32),
            }
    kf = 1.0 / np.sqrt(NUM_DIR * H)
    w_out = jax.random.uniform(keys[ki], (OUT_CLASSES, NUM_DIR * H),
                               minval=-kf, maxval=kf); ki += 1
    b_out = jax.random.uniform(keys[ki], (OUT_CLASSES,),
                               minval=-kf, maxval=kf); ki += 1
    params["out_w_t"] = w_out.T.astype(jnp.float32)               # (2H, 11)
    params["out_b"] = b_out.reshape(1, OUT_CLASSES).astype(jnp.float32)

    # ---- merged kernel-side weight blocks -----------------------------------
    # Layer 0: recurrent stack + packed input/bias rows.
    w0 = jnp.zeros((2 * H + XCOLS, 4 * H), jnp.float32)
    w0 = w0.at[0:H, :].set(params["l0d0"]["whh_t"])
    w0 = w0.at[H:2 * H, :].set(params["l0d1"]["whh_t"])
    w0 = w0.at[2 * H:2 * H + IN_SIZE, :].set(params["l0d0"]["wih_t"])
    w0 = w0.at[2 * H + IN_SIZE:2 * H + 2 * IN_SIZE, :].set(params["l0d1"]["wih_t"])
    w0 = w0.at[2 * H + 2 * IN_SIZE, :].set(params["l0d0"]["bias"][0])
    w0 = w0.at[2 * H + 2 * IN_SIZE + 1, :].set(params["l0d1"]["bias"][0])
    params["w0_all"] = w0

    # Layer 1: one block, forward direction in cols 0:4H, backward in 4H:8H.
    w1 = jnp.zeros((3 * H + 8, 8 * H), jnp.float32)
    w1 = w1.at[0:2 * H, 0:4 * H].set(params["l1d0"]["wih_t"])
    w1 = w1.at[0:2 * H, 4 * H:8 * H].set(params["l1d1"]["wih_t"])
    w1 = w1.at[2 * H:3 * H, 0:4 * H].set(params["l1d0"]["whh_t"])
    w1 = w1.at[2 * H:3 * H, 4 * H:8 * H].set(params["l1d1"]["whh_t"])
    w1 = w1.at[3 * H, 0:4 * H].set(params["l1d0"]["bias"][0])
    w1 = w1.at[3 * H, 4 * H:8 * H].set(params["l1d1"]["bias"][0])
    params["w1_all"] = w1

    # Classifier: lane-dense (zero-padded) weights + bias row at 2H.
    wo = jnp.zeros((2 * H + 8, OUT_PAD), jnp.float32)
    wo = wo.at[0:2 * H, 0:OUT_CLASSES].set(params["out_w_t"])
    wo = wo.at[2 * H, 0:OUT_CLASSES].set(params["out_b"][0])
    params["wout_all"] = wo
    return params


# ----------------------------------------------------------------------------
# Pure-JAX reference (for verification)
# ----------------------------------------------------------------------------
def _ref_lstm_layer(x_tbi, wih_t, whh_t, bias, h0, c0, reverse):
    T = x_tbi.shape[0]
    H = whh_t.shape[0]
    order = range(T - 1, -1, -1) if reverse else range(T)
    h, c = h0, c0
    outs = [None] * T
    for t in order:
        gates = x_tbi[t] @ wih_t + h @ whh_t + bias
        i_g = jax.nn.sigmoid(gates[:, 0 * H:1 * H])
        f_g = jax.nn.sigmoid(gates[:, 1 * H:2 * H])
        g_g = jnp.tanh(gates[:, 2 * H:3 * H])
        o_g = jax.nn.sigmoid(gates[:, 3 * H:4 * H])
        c = f_g * c + i_g * g_g
        h = o_g * jnp.tanh(c)
        outs[t] = h
    return jnp.stack(outs, axis=0)


def reference_forward(params, x_btd, h0, c0):
    x = jnp.transpose(x_btd, (1, 0, 2)).astype(jnp.float32)
    layer_in = x
    for layer in range(NUM_LAYERS):
        p_f = params[f"l{layer}d0"]
        p_b = params[f"l{layer}d1"]
        out_f = _ref_lstm_layer(layer_in, p_f["wih_t"], p_f["whh_t"], p_f["bias"],
                                h0[layer * 2], c0[layer * 2], reverse=False)
        out_b = _ref_lstm_layer(layer_in, p_b["wih_t"], p_b["whh_t"], p_b["bias"],
                                h0[layer * 2 + 1], c0[layer * 2 + 1], reverse=True)
        layer_in = jnp.concatenate([out_f, out_b], axis=-1)
    return layer_in[-1] @ params["out_w_t"] + params["out_b"]


# ----------------------------------------------------------------------------
if __name__ == "__main__":
    key = jax.random.PRNGKey(0)
    k_param, k_x, k_h, k_c = jax.random.split(key, 4)

    B, T = 2, 8
    params = init_params(k_param)
    x = jax.random.normal(k_x, (B, T, IN_SIZE), dtype=jnp.float32)
    # torch.rand -> uniform [0, 1)  (drawn fresh per forward in PyTorch;
    # deterministic PRNGKey(0)-derived inputs here)
    h0 = jax.random.uniform(k_h, (NUM_LAYERS * NUM_DIR, B, HIDDEN), dtype=jnp.float32)
    c0 = jax.random.uniform(k_c, (NUM_LAYERS * NUM_DIR, B, HIDDEN), dtype=jnp.float32)

    out = bilstm_net11_forward(params, x, h0, c0)
    out = jax.block_until_ready(out)

    ref = jax.block_until_ready(reference_forward(params, x, h0, c0))
    assert out.shape == (B, OUT_CLASSES), out.shape
    np.testing.assert_allclose(np.asarray(out), np.asarray(ref), atol=1e-4, rtol=1e-4)

    print("KERNEL_OK")
</pallas_src>

<mosaic_0001>
module attributes {stable_mosaic.version = 11 : i64} {
  func.func @_bilstm_fused_kernel(%arg0: memref<64x8xf32, #tpu.memory_space<vmem>>, %arg1: memref<264x512xf32, #tpu.memory_space<vmem>>, %arg2: memref<4x8x256xf32, #tpu.memory_space<vmem>>, %arg3: memref<392x1024xf32, #tpu.memory_space<any>>, %arg4: memref<264x128xf32, #tpu.memory_space<any>>, %arg5: memref<8x128xf32, #tpu.memory_space<vmem>>, %arg6: memref<392x1024xf32, #tpu.memory_space<vmem>>, %arg7: memref<264x128xf32, #tpu.memory_space<vmem>>, %arg8: memref<8x8x256xf32, #tpu.memory_space<vmem>>, %arg9: memref<2x!tpu.dma_semaphore, #tpu.memory_space<semaphore_mem>>) attributes {dimension_semantics = [], scalar_prefetch = 0 : i64, scratch_operands = 4 : i64, tpu.core_type = #tpu.core_type<tc>} {
    %c0_i32 = arith.constant 0 : i32
    %0 = tpu.memref_slice %arg9[%c0_i32] : memref<2x!tpu.dma_semaphore, #tpu.memory_space<semaphore_mem>> -> memref<1x!tpu.dma_semaphore, #tpu.memory_space<semaphore_mem>>
    %1 = tpu.memref_squeeze %0 : memref<1x!tpu.dma_semaphore, #tpu.memory_space<semaphore_mem>> -> memref<!tpu.dma_semaphore, #tpu.memory_space<semaphore_mem>>
    tpu.enqueue_dma source(%arg3 : memref<392x1024xf32, #tpu.memory_space<any>>) target(%arg6 : memref<392x1024xf32, #tpu.memory_space<vmem>>) target_semaphore(%1 : memref<!tpu.dma_semaphore, #tpu.memory_space<semaphore_mem>>)
    %c1_i32 = arith.constant 1 : i32
    %2 = tpu.memref_slice %arg9[%c1_i32] : memref<2x!tpu.dma_semaphore, #tpu.memory_space<semaphore_mem>> -> memref<1x!tpu.dma_semaphore, #tpu.memory_space<semaphore_mem>>
    %3 = tpu.memref_squeeze %2 : memref<1x!tpu.dma_semaphore, #tpu.memory_space<semaphore_mem>> -> memref<!tpu.dma_semaphore, #tpu.memory_space<semaphore_mem>>
    tpu.enqueue_dma source(%arg4 : memref<264x128xf32, #tpu.memory_space<any>>) target(%arg7 : memref<264x128xf32, #tpu.memory_space<vmem>>) target_semaphore(%3 : memref<!tpu.dma_semaphore, #tpu.memory_space<semaphore_mem>>)
    %c0 = arith.constant 0 : index
    %c0_0 = arith.constant 0 : index
    %4 = vector.load %arg1[%c0, %c0_0] : memref<264x512xf32, #tpu.memory_space<vmem>>, vector<256x512xf32>
    %c256 = arith.constant 256 : index
    %c0_1 = arith.constant 0 : index
    %5 = vector.load %arg1[%c256, %c0_1] : memref<264x512xf32, #tpu.memory_space<vmem>>, vector<8x512xf32>
    %c0_2 = arith.constant 0 : index
    %c0_3 = arith.constant 0 : index
    %6 = vector.load %arg0[%c0_2, %c0_3] : memref<64x8xf32, #tpu.memory_space<vmem>>, vector<64x8xf32>
    %cst = arith.constant dense<0.000000e+00> : vector<64x512xf32>
    %7 = tpu.matmul %6, %5, %cst {dimension_numbers = #tpu.dot_dimension_numbers<[1], [0], [0], [1], [0, 0, 1, 1], [], []>} : vector<64x8xf32>, vector<8x512xf32>, vector<64x512xf32> -> vector<64x512xf32>
    %8 = tpu.iota {dimensions = array<i32: 0>} : vector<8x1xi32>
    %c2_i32 = arith.constant 2 : i32
    %9 = vector.broadcast %c2_i32 : i32 to vector<8x1xi32>
    %10 = arith.cmpi slt, %8, %9 : vector<8x1xi32>
    %11 = arith.extui %10 : vector<8x1xi1> to vector<8x1xi32>
    %12 = arith.sitofp %11 : vector<8x1xi32> to vector<8x1xf32>
    %c2_i32_4 = arith.constant 2 : i32
    %13 = vector.broadcast %c2_i32_4 : i32 to vector<8x1xi32>
    %14 = arith.cmpi sge, %8, %13 : vector<8x1xi32>
    %c4_i32 = arith.constant 4 : i32
    %15 = vector.broadcast %c4_i32 : i32 to vector<8x1xi32>
    %16 = arith.cmpi slt, %8, %15 : vector<8x1xi32>
    %17 = arith.andi %14, %16 : vector<8x1xi1>
    %18 = arith.extui %17 : vector<8x1xi1> to vector<8x1xi32>
    %19 = arith.sitofp %18 : vector<8x1xi32> to vector<8x1xf32>
    %c0_5 = arith.constant 0 : index
    %c0_6 = arith.constant 0 : index
    %c0_7 = arith.constant 0 : index
    %20 = vector.load %arg2[%c0_5, %c0_6, %c0_7] : memref<4x8x256xf32, #tpu.memory_space<vmem>>, vector<1x8x256xf32>
    %21 = vector.shape_cast %20 : vector<1x8x256xf32> to vector<8x256xf32>
    %c1 = arith.constant 1 : index
    %c0_8 = arith.constant 0 : index
    %c0_9 = arith.constant 0 : index
    %22 = vector.load %arg2[%c1, %c0_8, %c0_9] : memref<4x8x256xf32, #tpu.memory_space<vmem>>, vector<1x8x128xf32>
    %23 = vector.shape_cast %22 : vector<1x8x128xf32> to vector<8x128xf32>
    %24 = vector.extract_strided_slice %7 {offsets = [0, 0], sizes = [8, 512], strides = [1, 1]} : vector<64x512xf32> to vector<8x512xf32>
    %cst_10 = arith.constant dense<0.000000e+00> : vector<8x512xf32>
    %25 = tpu.matmul %21, %4, %cst_10 {dimension_numbers = #tpu.dot_dimension_numbers<[1], [0], [0], [1], [0, 0, 1, 1], [], []>} : vector<8x256xf32>, vector<256x512xf32>, vector<8x512xf32> -> vector<8x512xf32>
    %26 = arith.addf %24, %25 : vector<8x512xf32>
    %27 = vector.extract_strided_slice %26 {offsets = [0, 0], sizes = [8, 128], strides = [1, 1]} : vector<8x512xf32> to vector<8x128xf32>
    %28 = arith.negf %27 : vector<8x128xf32>
    %29 = math.exp %28 : vector<8x128xf32>
    %cst_11 = arith.constant 1.000000e+00 : f32
    %30 = vector.broadcast %cst_11 : f32 to vector<8x128xf32>
    %31 = arith.addf %30, %29 : vector<8x128xf32>
    %32 = arith.divf %30, %31 : vector<8x128xf32>
    %33 = vector.extract_strided_slice %26 {offsets = [0, 128], sizes = [8, 128], strides = [1, 1]} : vector<8x512xf32> to vector<8x128xf32>
    %34 = arith.negf %33 : vector<8x128xf32>
    %35 = math.exp %34 : vector<8x128xf32>
    %cst_12 = arith.constant 1.000000e+00 : f32
    %36 = vector.broadcast %cst_12 : f32 to vector<8x128xf32>
    %37 = arith.addf %36, %35 : vector<8x128xf32>
    %38 = arith.divf %36, %37 : vector<8x128xf32>
    %39 = vector.extract_strided_slice %26 {offsets = [0, 256], sizes = [8, 128], strides = [1, 1]} : vector<8x512xf32> to vector<8x128xf32>
    %40 = math.tanh %39 : vector<8x128xf32>
    %41 = vector.extract_strided_slice %26 {offsets = [0, 384], sizes = [8, 128], strides = [1, 1]} : vector<8x512xf32> to vector<8x128xf32>
    %42 = arith.negf %41 : vector<8x128xf32>
    %43 = math.exp %42 : vector<8x128xf32>
    %cst_13 = arith.constant 1.000000e+00 : f32
    %44 = vector.broadcast %cst_13 : f32 to vector<8x128xf32>
    %45 = arith.addf %44, %43 : vector<8x128xf32>
    %46 = arith.divf %44, %45 : vector<8x128xf32>
    %47 = arith.mulf %38, %23 : vector<8x128xf32>
    %48 = arith.mulf %32, %40 : vector<8x128xf32>
    %49 = arith.addf %47, %48 : vector<8x128xf32>
    %50 = math.tanh %49 : vector<8x128xf32>
    %51 = arith.mulf %46, %50 : vector<8x128xf32>
    %52 = vector.broadcast %12 : vector<8x1xf32> to vector<8x128xf32>
    %53 = arith.mulf %51, %52 : vector<8x128xf32>
    %54 = vector.broadcast %19 : vector<8x1xf32> to vector<8x128xf32>
    %55 = arith.mulf %51, %54 : vector<8x128xf32>
    %56 = tpu.concatenate %53, %55 in 1 : vector<8x128xf32>, vector<8x128xf32> -> vector<8x256xf32>
    %57 = vector.extract_strided_slice %51 {offsets = [0, 0], sizes = [2, 128], strides = [1, 1]} : vector<8x128xf32> to vector<2x128xf32>
    %c0_14 = arith.constant 0 : index
    %c0_15 = arith.constant 0 : index
    %c0_16 = arith.constant 0 : index
    %58 = vector.load %arg8[%c0_14, %c0_15, %c0_16] : memref<8x8x256xf32, #tpu.memory_space<vmem>>, vector<1x2x128xf32>
    %59 = vector.shape_cast %58 : vector<1x2x128xf32> to vector<2x128xf32>
    %60 = vector.shape_cast %57 : vector<2x128xf32> to vector<1x2x128xf32>
    tpu.vector_store %arg8[%c0_14, %c0_15, %c0_16], %60 {strides = array<i32>} : memref<8x8x256xf32, #tpu.memory_space<vmem>>, vector<1x2x128xf32>,
    %61 = vector.extract_strided_slice %51 {offsets = [2, 0], sizes = [2, 128], strides = [1, 1]} : vector<8x128xf32> to vector<2x128xf32>
    %c7 = arith.constant 7 : index
    %c0_17 = arith.constant 0 : index
    %c128 = arith.constant 128 : index
    %62 = vector.load %arg8[%c7, %c0_17, %c128] : memref<8x8x256xf32, #tpu.memory_space<vmem>>, vector<1x2x128xf32>
    %63 = vector.shape_cast %62 : vector<1x2x128xf32> to vector<2x128xf32>
    %64 = vector.shape_cast %61 : vector<2x128xf32> to vector<1x2x128xf32>
    tpu.vector_store %arg8[%c7, %c0_17, %c128], %64 {strides = array<i32>} : memref<8x8x256xf32, #tpu.memory_space<vmem>>, vector<1x2x128xf32>,
    %65 = vector.extract_strided_slice %7 {offsets = [8, 0], sizes = [8, 512], strides = [1, 1]} : vector<64x512xf32> to vector<8x512xf32>
    %cst_18 = arith.constant dense<0.000000e+00> : vector<8x512xf32>
    %66 = tpu.matmul %56, %4, %cst_18 {dimension_numbers = #tpu.dot_dimension_numbers<[1], [0], [0], [1], [0, 0, 1, 1], [], []>} : vector<8x256xf32>, vector<256x512xf32>, vector<8x512xf32> -> vector<8x512xf32>
    %67 = arith.addf %65, %66 : vector<8x512xf32>
    %68 = vector.extract_strided_slice %67 {offsets = [0, 0], sizes = [8, 128], strides = [1, 1]} : vector<8x512xf32> to vector<8x128xf32>
    %69 = arith.negf %68 : vector<8x128xf32>
    %70 = math.exp %69 : vector<8x128xf32>
    %cst_19 = arith.constant 1.000000e+00 : f32
    %71 = vector.broadcast %cst_19 : f32 to vector<8x128xf32>
    %72 = arith.addf %71, %70 : vector<8x128xf32>
    %73 = arith.divf %71, %72 : vector<8x128xf32>
    %74 = vector.extract_strided_slice %67 {offsets = [0, 128], sizes = [8, 128], strides = [1, 1]} : vector<8x512xf32> to vector<8x128xf32>
    %75 = arith.negf %74 : vector<8x128xf32>
    %76 = math.exp %75 : vector<8x128xf32>
    %cst_20 = arith.constant 1.000000e+00 : f32
    %77 = vector.broadcast %cst_20 : f32 to vector<8x128xf32>
    %78 = arith.addf %77, %76 : vector<8x128xf32>
    %79 = arith.divf %77, %78 : vector<8x128xf32>
    %80 = vector.extract_strided_slice %67 {offsets = [0, 256], sizes = [8, 128], strides = [1, 1]} : vector<8x512xf32> to vector<8x128xf32>
    %81 = math.tanh %80 : vector<8x128xf32>
    %82 = vector.extract_strided_slice %67 {offsets = [0, 384], sizes = [8, 128], strides = [1, 1]} : vector<8x512xf32> to vector<8x128xf32>
    %83 = arith.negf %82 : vector<8x128xf32>
    %84 = math.exp %83 : vector<8x128xf32>
    %cst_21 = arith.constant 1.000000e+00 : f32
    %85 = vector.broadcast %cst_21 : f32 to vector<8x128xf32>
    %86 = arith.addf %85, %84 : vector<8x128xf32>
    %87 = arith.divf %85, %86 : vector<8x128xf32>
    %88 = arith.mulf %79, %49 : vector<8x128xf32>
    %89 = arith.mulf %73, %81 : vector<8x128xf32>
    %90 = arith.addf %88, %89 : vector<8x128xf32>
    %91 = math.tanh %90 : vector<8x128xf32>
    %92 = arith.mulf %87, %91 : vector<8x128xf32>
    %93 = vector.broadcast %12 : vector<8x1xf32> to vector<8x128xf32>
    %94 = arith.mulf %92, %93 : vector<8x128xf32>
    %95 = vector.broadcast %19 : vector<8x1xf32> to vector<8x128xf32>
    %96 = arith.mulf %92, %95 : vector<8x128xf32>
    %97 = tpu.concatenate %94, %96 in 1 : vector<8x128xf32>, vector<8x128xf32> -> vector<8x256xf32>
    %98 = vector.extract_strided_slice %92 {offsets = [0, 0], sizes = [2, 128], strides = [1, 1]} : vector<8x128xf32> to vector<2x128xf32>
    %c1_22 = arith.constant 1 : index
    %c0_23 = arith.constant 0 : index
    %c0_24 = arith.constant 0 : index
    %99 = vector.load %arg8[%c1_22, %c0_23, %c0_24] : memref<8x8x256xf32, #tpu.memory_space<vmem>>, vector<1x2x128xf32>
    %100 = vector.shape_cast %99 : vector<1x2x128xf32> to vector<2x128xf32>
    %101 = vector.shape_cast %98 : vector<2x128xf32> to vector<1x2x128xf32>
    tpu.vector_store %arg8[%c1_22, %c0_23, %c0_24], %101 {strides = array<i32>} : memref<8x8x256xf32, #tpu.memory_space<vmem>>, vector<1x2x128xf32>,
    %102 = vector.extract_strided_slice %92 {offsets = [2, 0], sizes = [2, 128], strides = [1, 1]} : vector<8x128xf32> to vector<2x128xf32>
    %c6 = arith.constant 6 : index
    %c0_25 = arith.constant 0 : index
    %c128_26 = arith.constant 128 : index
    %103 = vector.load %arg8[%c6, %c0_25, %c128_26] : memref<8x8x256xf32, #tpu.memory_space<vmem>>, vector<1x2x128xf32>
    %104 = vector.shape_cast %103 : vector<1x2x128xf32> to vector<2x128xf32>
    %105 = vector.shape_cast %102 : vector<2x128xf32> to vector<1x2x128xf32>
    tpu.vector_store %arg8[%c6, %c0_25, %c128_26], %105 {strides = array<i32>} : memref<8x8x256xf32, #tpu.memory_space<vmem>>, vector<1x2x128xf32>,
    %106 = vector.extract_strided_slice %7 {offsets = [16, 0], sizes = [8, 512], strides = [1, 1]} : vector<64x512xf32> to vector<8x512xf32>
    %cst_27 = arith.constant dense<0.000000e+00> : vector<8x512xf32>
    %107 = tpu.matmul %97, %4, %cst_27 {dimension_numbers = #tpu.dot_dimension_numbers<[1], [0], [0], [1], [0, 0, 1, 1], [], []>} : vector<8x256xf32>, vector<256x512xf32>, vector<8x512xf32> -> vector<8x512xf32>
    %108 = arith.addf %106, %107 : vector<8x512xf32>
    %109 = vector.extract_strided_slice %108 {offsets = [0, 0], sizes = [8, 128], strides = [1, 1]} : vector<8x512xf32> to vector<8x128xf32>
    %110 = arith.negf %109 : vector<8x128xf32>
    %111 = math.exp %110 : vector<8x128xf32>
    %cst_28 = arith.constant 1.000000e+00 : f32
    %112 = vector.broadcast %cst_28 : f32 to vector<8x128xf32>
    %113 = arith.addf %112, %111 : vector<8x128xf32>
    %114 = arith.divf %112, %113 : vector<8x128xf32>
    %115 = vector.extract_strided_slice %108 {offsets = [0, 128], sizes = [8, 128], strides = [1, 1]} : vector<8x512xf32> to vector<8x128xf32>
    %116 = arith.negf %115 : vector<8x128xf32>
    %117 = math.exp %116 : vector<8x128xf32>
    %cst_29 = arith.constant 1.000000e+00 : f32
    %118 = vector.broadcast %cst_29 : f32 to vector<8x128xf32>
    %119 = arith.addf %118, %117 : vector<8x128xf32>
    %120 = arith.divf %118, %119 : vector<8x128xf32>
    %121 = vector.extract_strided_slice %108 {offsets = [0, 256], sizes = [8, 128], strides = [1, 1]} : vector<8x512xf32> to vector<8x128xf32>
    %122 = math.tanh %121 : vector<8x128xf32>
    %123 = vector.extract_strided_slice %108 {offsets = [0, 384], sizes = [8, 128], strides = [1, 1]} : vector<8x512xf32> to vector<8x128xf32>
    %124 = arith.negf %123 : vector<8x128xf32>
    %125 = math.exp %124 : vector<8x128xf32>
    %cst_30 = arith.constant 1.000000e+00 : f32
    %126 = vector.broadcast %cst_30 : f32 to vector<8x128xf32>
    %127 = arith.addf %126, %125 : vector<8x128xf32>
    %128 = arith.divf %126, %127 : vector<8x128xf32>
    %129 = arith.mulf %120, %90 : vector<8x128xf32>
    %130 = arith.mulf %114, %122 : vector<8x128xf32>
    %131 = arith.addf %129, %130 : vector<8x128xf32>
    %132 = math.tanh %131 : vector<8x128xf32>
    %133 = arith.mulf %128, %132 : vector<8x128xf32>
    %134 = vector.broadcast %12 : vector<8x1xf32> to vector<8x128xf32>
    %135 = arith.mulf %133, %134 : vector<8x128xf32>
    %136 = vector.broadcast %19 : vector<8x1xf32> to vector<8x128xf32>
    %137 = arith.mulf %133, %136 : vector<8x128xf32>
    %138 = tpu.concatenate %135, %137 in 1 : vector<8x128xf32>, vector<8x128xf32> -> vector<8x256xf32>
    %139 = vector.extract_strided_slice %133 {offsets = [0, 0], sizes = [2, 128], strides = [1, 1]} : vector<8x128xf32> to vector<2x128xf32>
    %c2 = arith.constant 2 : index
    %c0_31 = arith.constant 0 : index
    %c0_32 = arith.constant 0 : index
    %140 = vector.load %arg8[%c2, %c0_31, %c0_32] : memref<8x8x256xf32, #tpu.memory_space<vmem>>, vector<1x2x128xf32>
    %141 = vector.shape_cast %140 : vector<1x2x128xf32> to vector<2x128xf32>
    %142 = vector.shape_cast %139 : vector<2x128xf32> to vector<1x2x128xf32>
    tpu.vector_store %arg8[%c2, %c0_31, %c0_32], %142 {strides = array<i32>} : memref<8x8x256xf32, #tpu.memory_space<vmem>>, vector<1x2x128xf32>,
    %143 = vector.extract_strided_slice %133 {offsets = [2, 0], sizes = [2, 128], strides = [1, 1]} : vector<8x128xf32> to vector<2x128xf32>
    %c5 = arith.constant 5 : index
    %c0_33 = arith.constant 0 : index
    %c128_34 = arith.constant 128 : index
    %144 = vector.load %arg8[%c5, %c0_33, %c128_34] : memref<8x8x256xf32, #tpu.memory_space<vmem>>, vector<1x2x128xf32>
    %145 = vector.shape_cast %144 : vector<1x2x128xf32> to vector<2x128xf32>
    %146 = vector.shape_cast %143 : vector<2x128xf32> to vector<1x2x128xf32>
    tpu.vector_store %arg8[%c5, %c0_33, %c128_34], %146 {strides = array<i32>} : memref<8x8x256xf32, #tpu.memory_space<vmem>>, vector<1x2x128xf32>,
    %147 = vector.extract_strided_slice %7 {offsets = [24, 0], sizes = [8, 512], strides = [1, 1]} : vector<64x512xf32> to vector<8x512xf32>
    %cst_35 = arith.constant dense<0.000000e+00> : vector<8x512xf32>
    %148 = tpu.matmul %138, %4, %cst_35 {dimension_numbers = #tpu.dot_dimension_numbers<[1], [0], [0], [1], [0, 0, 1, 1], [], []>} : vector<8x256xf32>, vector<256x512xf32>, vector<8x512xf32> -> vector<8x512xf32>
    %149 = arith.addf %147, %148 : vector<8x512xf32>
    %150 = vector.extract_strided_slice %149 {offsets = [0, 0], sizes = [8, 128], strides = [1, 1]} : vector<8x512xf32> to vector<8x128xf32>
    %151 = arith.negf %150 : vector<8x128xf32>
    %152 = math.exp %151 : vector<8x128xf32>
    %cst_36 = arith.constant 1.000000e+00 : f32
    %153 = vector.broadcast %cst_36 : f32 to vector<8x128xf32>
    %154 = arith.addf %153, %152 : vector<8x128xf32>
    %155 = arith.divf %153, %154 : vector<8x128xf32>
    %156 = vector.extract_strided_slice %149 {offsets = [0, 128], sizes = [8, 128], strides = [1, 1]} : vector<8x512xf32> to vector<8x128xf32>
    %157 = arith.negf %156 : vector<8x128xf32>
    %158 = math.exp %157 : vector<8x128xf32>
    %cst_37 = arith.constant 1.000000e+00 : f32
    %159 = vector.broadcast %cst_37 : f32 to vector<8x128xf32>
    %160 = arith.addf %159, %158 : vector<8x128xf32>
    %161 = arith.divf %159, %160 : vector<8x128xf32>
    %162 = vector.extract_strided_slice %149 {offsets = [0, 256], sizes = [8, 128], strides = [1, 1]} : vector<8x512xf32> to vector<8x128xf32>
    %163 = math.tanh %162 : vector<8x128xf32>
    %164 = vector.extract_strided_slice %149 {offsets = [0, 384], sizes = [8, 128], strides = [1, 1]} : vector<8x512xf32> to vector<8x128xf32>
    %165 = arith.negf %164 : vector<8x128xf32>
    %166 = math.exp %165 : vector<8x128xf32>
    %cst_38 = arith.constant 1.000000e+00 : f32
    %167 = vector.broadcast %cst_38 : f32 to vector<8x128xf32>
    %168 = arith.addf %167, %166 : vector<8x128xf32>
    %169 = arith.divf %167, %168 : vector<8x128xf32>
    %170 = arith.mulf %161, %131 : vector<8x128xf32>
    %171 = arith.mulf %155, %163 : vector<8x128xf32>
    %172 = arith.addf %170, %171 : vector<8x128xf32>
    %173 = math.tanh %172 : vector<8x128xf32>
    %174 = arith.mulf %169, %173 : vector<8x128xf32>
    %175 = vector.broadcast %12 : vector<8x1xf32> to vector<8x128xf32>
    %176 = arith.mulf %174, %175 : vector<8x128xf32>
    %177 = vector.broadcast %19 : vector<8x1xf32> to vector<8x128xf32>
    %178 = arith.mulf %174, %177 : vector<8x128xf32>
    %179 = tpu.concatenate %176, %178 in 1 : vector<8x128xf32>, vector<8x128xf32> -> vector<8x256xf32>
    %180 = vector.extract_strided_slice %174 {offsets = [0, 0], sizes = [2, 128], strides = [1, 1]} : vector<8x128xf32> to vector<2x128xf32>
    %c3 = arith.constant 3 : index
    %c0_39 = arith.constant 0 : index
    %c0_40 = arith.constant 0 : index
    %181 = vector.load %arg8[%c3, %c0_39, %c0_40] : memref<8x8x256xf32, #tpu.memory_space<vmem>>, vector<1x2x128xf32>
    %182 = vector.shape_cast %181 : vector<1x2x128xf32> to vector<2x128xf32>
    %183 = vector.shape_cast %180 : vector<2x128xf32> to vector<1x2x128xf32>
    tpu.vector_store %arg8[%c3, %c0_39, %c0_40], %183 {strides = array<i32>} : memref<8x8x256xf32, #tpu.memory_space<vmem>>, vector<1x2x128xf32>,
    %184 = vector.extract_strided_slice %174 {offsets = [2, 0], sizes = [2, 128], strides = [1, 1]} : vector<8x128xf32> to vector<2x128xf32>
    %c4 = arith.constant 4 : index
    %c0_41 = arith.constant 0 : index
    %c128_42 = arith.constant 128 : index
    %185 = vector.load %arg8[%c4, %c0_41, %c128_42] : memref<8x8x256xf32, #tpu.memory_space<vmem>>, vector<1x2x128xf32>
    %186 = vector.shape_cast %185 : vector<1x2x128xf32> to vector<2x128xf32>
    %187 = vector.shape_cast %184 : vector<2x128xf32> to vector<1x2x128xf32>
    tpu.vector_store %arg8[%c4, %c0_41, %c128_42], %187 {strides = array<i32>} : memref<8x8x256xf32, #tpu.memory_space<vmem>>, vector<1x2x128xf32>,
    %188 = vector.extract_strided_slice %7 {offsets = [32, 0], sizes = [8, 512], strides = [1, 1]} : vector<64x512xf32> to vector<8x512xf32>
    %cst_43 = arith.constant dense<0.000000e+00> : vector<8x512xf32>
    %189 = tpu.matmul %179, %4, %cst_43 {dimension_numbers = #tpu.dot_dimension_numbers<[1], [0], [0], [1], [0, 0, 1, 1], [], []>} : vector<8x256xf32>, vector<256x512xf32>, vector<8x512xf32> -> vector<8x512xf32>
    %190 = arith.addf %188, %189 : vector<8x512xf32>
    %191 = vector.extract_strided_slice %190 {offsets = [0, 0], sizes = [8, 128], strides = [1, 1]} : vector<8x512xf32> to vector<8x128xf32>
    %192 = arith.negf %191 : vector<8x128xf32>
    %193 = math.exp %192 : vector<8x128xf32>
    %cst_44 = arith.constant 1.000000e+00 : f32
    %194 = vector.broadcast %cst_44 : f32 to vector<8x128xf32>
    %195 = arith.addf %194, %193 : vector<8x128xf32>
    %196 = arith.divf %194, %195 : vector<8x128xf32>
    %197 = vector.extract_strided_slice %190 {offsets = [0, 128], sizes = [8, 128], strides = [1, 1]} : vector<8x512xf32> to vector<8x128xf32>
    %198 = arith.negf %197 : vector<8x128xf32>
    %199 = math.exp %198 : vector<8x128xf32>
    %cst_45 = arith.constant 1.000000e+00 : f32
    %200 = vector.broadcast %cst_45 : f32 to vector<8x128xf32>
    %201 = arith.addf %200, %199 : vector<8x128xf32>
    %202 = arith.divf %200, %201 : vector<8x128xf32>
    %203 = vector.extract_strided_slice %190 {offsets = [0, 256], sizes = [8, 128], strides = [1, 1]} : vector<8x512xf32> to vector<8x128xf32>
    %204 = math.tanh %203 : vector<8x128xf32>
    %205 = vector.extract_strided_slice %190 {offsets = [0, 384], sizes = [8, 128], strides = [1, 1]} : vector<8x512xf32> to vector<8x128xf32>
    %206 = arith.negf %205 : vector<8x128xf32>
    %207 = math.exp %206 : vector<8x128xf32>
    %cst_46 = arith.constant 1.000000e+00 : f32
    %208 = vector.broadcast %cst_46 : f32 to vector<8x128xf32>
    %209 = arith.addf %208, %207 : vector<8x128xf32>
    %210 = arith.divf %208, %209 : vector<8x128xf32>
    %211 = arith.mulf %202, %172 : vector<8x128xf32>
    %212 = arith.mulf %196, %204 : vector<8x128xf32>
    %213 = arith.addf %211, %212 : vector<8x128xf32>
    %214 = math.tanh %213 : vector<8x128xf32>
    %215 = arith.mulf %210, %214 : vector<8x128xf32>
    %216 = vector.broadcast %12 : vector<8x1xf32> to vector<8x128xf32>
    %217 = arith.mulf %215, %216 : vector<8x128xf32>
    %218 = vector.broadcast %19 : vector<8x1xf32> to vector<8x128xf32>
    %219 = arith.mulf %215, %218 : vector<8x128xf32>
    %220 = tpu.concatenate %217, %219 in 1 : vector<8x128xf32>, vector<8x128xf32> -> vector<8x256xf32>
    %221 = vector.extract_strided_slice %215 {offsets = [0, 0], sizes = [2, 128], strides = [1, 1]} : vector<8x128xf32> to vector<2x128xf32>
    %c4_47 = arith.constant 4 : index
    %c0_48 = arith.constant 0 : index
    %c0_49 = arith.constant 0 : index
    %222 = vector.load %arg8[%c4_47, %c0_48, %c0_49] : memref<8x8x256xf32, #tpu.memory_space<vmem>>, vector<1x2x128xf32>
    %223 = vector.shape_cast %222 : vector<1x2x128xf32> to vector<2x128xf32>
    %224 = vector.shape_cast %221 : vector<2x128xf32> to vector<1x2x128xf32>
    tpu.vector_store %arg8[%c4_47, %c0_48, %c0_49], %224 {strides = array<i32>} : memref<8x8x256xf32, #tpu.memory_space<vmem>>, vector<1x2x128xf32>,
    %225 = vector.extract_strided_slice %215 {offsets = [2, 0], sizes = [2, 128], strides = [1, 1]} : vector<8x128xf32> to vector<2x128xf32>
    %c3_50 = arith.constant 3 : index
    %c0_51 = arith.constant 0 : index
    %c128_52 = arith.constant 128 : index
    %226 = vector.load %arg8[%c3_50, %c0_51, %c128_52] : memref<8x8x256xf32, #tpu.memory_space<vmem>>, vector<1x2x128xf32>
    %227 = vector.shape_cast %226 : vector<1x2x128xf32> to vector<2x128xf32>
    %228 = vector.shape_cast %225 : vector<2x128xf32> to vector<1x2x128xf32>
    tpu.vector_store %arg8[%c3_50, %c0_51, %c128_52], %228 {strides = array<i32>} : memref<8x8x256xf32, #tpu.memory_space<vmem>>, vector<1x2x128xf32>,
    %229 = vector.extract_strided_slice %7 {offsets = [40, 0], sizes = [8, 512], strides = [1, 1]} : vector<64x512xf32> to vector<8x512xf32>
    %cst_53 = arith.constant dense<0.000000e+00> : vector<8x512xf32>
    %230 = tpu.matmul %220, %4, %cst_53 {dimension_numbers = #tpu.dot_dimension_numbers<[1], [0], [0], [1], [0, 0, 1, 1], [], []>} : vector<8x256xf32>, vector<256x512xf32>, vector<8x512xf32> -> vector<8x512xf32>
    %231 = arith.addf %229, %230 : vector<8x512xf32>
    %232 = vector.extract_strided_slice %231 {offsets = [0, 0], sizes = [8, 128], strides = [1, 1]} : vector<8x512xf32> to vector<8x128xf32>
    %233 = arith.negf %232 : vector<8x128xf32>
    %234 = math.exp %233 : vector<8x128xf32>
    %cst_54 = arith.constant 1.000000e+00 : f32
    %235 = vector.broadcast %cst_54 : f32 to vector<8x128xf32>
    %236 = arith.addf %235, %234 : vector<8x128xf32>
    %237 = arith.divf %235, %236 : vector<8x128xf32>
    %238 = vector.extract_strided_slice %231 {offsets = [0, 128], sizes = [8, 128], strides = [1, 1]} : vector<8x512xf32> to vector<8x128xf32>
    %239 = arith.negf %238 : vector<8x128xf32>
    %240 = math.exp %239 : vector<8x128xf32>
    %cst_55 = arith.constant 1.000000e+00 : f32
    %241 = vector.broadcast %cst_55 : f32 to vector<8x128xf32>
    %242 = arith.addf %241, %240 : vector<8x128xf32>
    %243 = arith.divf %241, %242 : vector<8x128xf32>
    %244 = vector.extract_strided_slice %231 {offsets = [0, 256], sizes = [8, 128], strides = [1, 1]} : vector<8x512xf32> to vector<8x128xf32>
    %245 = math.tanh %244 : vector<8x128xf32>
    %246 = vector.extract_strided_slice %231 {offsets = [0, 384], sizes = [8, 128], strides = [1, 1]} : vector<8x512xf32> to vector<8x128xf32>
    %247 = arith.negf %246 : vector<8x128xf32>
    %248 = math.exp %247 : vector<8x128xf32>
    %cst_56 = arith.constant 1.000000e+00 : f32
    %249 = vector.broadcast %cst_56 : f32 to vector<8x128xf32>
    %250 = arith.addf %249, %248 : vector<8x128xf32>
    %251 = arith.divf %249, %250 : vector<8x128xf32>
    %252 = arith.mulf %243, %213 : vector<8x128xf32>
    %253 = arith.mulf %237, %245 : vector<8x128xf32>
    %254 = arith.addf %252, %253 : vector<8x128xf32>
    %255 = math.tanh %254 : vector<8x128xf32>
    %256 = arith.mulf %251, %255 : vector<8x128xf32>
    %257 = vector.broadcast %12 : vector<8x1xf32> to vector<8x128xf32>
    %258 = arith.mulf %256, %257 : vector<8x128xf32>
    %259 = vector.broadcast %19 : vector<8x1xf32> to vector<8x128xf32>
    %260 = arith.mulf %256, %259 : vector<8x128xf32>
    %261 = tpu.concatenate %258, %260 in 1 : vector<8x128xf32>, vector<8x128xf32> -> vector<8x256xf32>
    %262 = vector.extract_strided_slice %256 {offsets = [0, 0], sizes = [2, 128], strides = [1, 1]} : vector<8x128xf32> to vector<2x128xf32>
    %c5_57 = arith.constant 5 : index
    %c0_58 = arith.constant 0 : index
    %c0_59 = arith.constant 0 : index
    %263 = vector.load %arg8[%c5_57, %c0_58, %c0_59] : memref<8x8x256xf32, #tpu.memory_space<vmem>>, vector<1x2x128xf32>
    %264 = vector.shape_cast %263 : vector<1x2x128xf32> to vector<2x128xf32>
    %265 = vector.shape_cast %262 : vector<2x128xf32> to vector<1x2x128xf32>
    tpu.vector_store %arg8[%c5_57, %c0_58, %c0_59], %265 {strides = array<i32>} : memref<8x8x256xf32, #tpu.memory_space<vmem>>, vector<1x2x128xf32>,
    %266 = vector.extract_strided_slice %256 {offsets = [2, 0], sizes = [2, 128], strides = [1, 1]} : vector<8x128xf32> to vector<2x128xf32>
    %c2_60 = arith.constant 2 : index
    %c0_61 = arith.constant 0 : index
    %c128_62 = arith.constant 128 : index
    %267 = vector.load %arg8[%c2_60, %c0_61, %c128_62] : memref<8x8x256xf32, #tpu.memory_space<vmem>>, vector<1x2x128xf32>
    %268 = vector.shape_cast %267 : vector<1x2x128xf32> to vector<2x128xf32>
    %269 = vector.shape_cast %266 : vector<2x128xf32> to vector<1x2x128xf32>
    tpu.vector_store %arg8[%c2_60, %c0_61, %c128_62], %269 {strides = array<i32>} : memref<8x8x256xf32, #tpu.memory_space<vmem>>, vector<1x2x128xf32>,
    %270 = vector.extract_strided_slice %7 {offsets = [48, 0], sizes = [8, 512], strides = [1, 1]} : vector<64x512xf32> to vector<8x512xf32>
    %cst_63 = arith.constant dense<0.000000e+00> : vector<8x512xf32>
    %271 = tpu.matmul %261, %4, %cst_63 {dimension_numbers = #tpu.dot_dimension_numbers<[1], [0], [0], [1], [0, 0, 1, 1], [], []>} : vector<8x256xf32>, vector<256x512xf32>, vector<8x512xf32> -> vector<8x512xf32>
    %272 = arith.addf %270, %271 : vector<8x512xf32>
    %273 = vector.extract_strided_slice %272 {offsets = [0, 0], sizes = [8, 128], strides = [1, 1]} : vector<8x512xf32> to vector<8x128xf32>
    %274 = arith.negf %273 : vector<8x128xf32>
    %275 = math.exp %274 : vector<8x128xf32>
    %cst_64 = arith.constant 1.000000e+00 : f32
    %276 = vector.broadcast %cst_64 : f32 to vector<8x128xf32>
    %277 = arith.addf %276, %275 : vector<8x128xf32>
    %278 = arith.divf %276, %277 : vector<8x128xf32>
    %279 = vector.extract_strided_slice %272 {offsets = [0, 128], sizes = [8, 128], strides = [1, 1]} : vector<8x512xf32> to vector<8x128xf32>
    %280 = arith.negf %279 : vector<8x128xf32>
    %281 = math.exp %280 : vector<8x128xf32>
    %cst_65 = arith.constant 1.000000e+00 : f32
    %282 = vector.broadcast %cst_65 : f32 to vector<8x128xf32>
    %283 = arith.addf %282, %281 : vector<8x128xf32>
    %284 = arith.divf %282, %283 : vector<8x128xf32>
    %285 = vector.extract_strided_slice %272 {offsets = [0, 256], sizes = [8, 128], strides = [1, 1]} : vector<8x512xf32> to vector<8x128xf32>
    %286 = math.tanh %285 : vector<8x128xf32>
    %287 = vector.extract_strided_slice %272 {offsets = [0, 384], sizes = [8, 128], strides = [1, 1]} : vector<8x512xf32> to vector<8x128xf32>
    %288 = arith.negf %287 : vector<8x128xf32>
    %289 = math.exp %288 : vector<8x128xf32>
    %cst_66 = arith.constant 1.000000e+00 : f32
    %290 = vector.broadcast %cst_66 : f32 to vector<8x128xf32>
    %291 = arith.addf %290, %289 : vector<8x128xf32>
    %292 = arith.divf %290, %291 : vector<8x128xf32>
    %293 = arith.mulf %284, %254 : vector<8x128xf32>
    %294 = arith.mulf %278, %286 : vector<8x128xf32>
    %295 = arith.addf %293, %294 : vector<8x128xf32>
    %296 = math.tanh %295 : vector<8x128xf32>
    %297 = arith.mulf %292, %296 : vector<8x128xf32>
    %298 = vector.broadcast %12 : vector<8x1xf32> to vector<8x128xf32>
    %299 = arith.mulf %297, %298 : vector<8x128xf32>
    %300 = vector.broadcast %19 : vector<8x1xf32> to vector<8x128xf32>
    %301 = arith.mulf %297, %300 : vector<8x128xf32>
    %302 = tpu.concatenate %299, %301 in 1 : vector<8x128xf32>, vector<8x128xf32> -> vector<8x256xf32>
    %303 = vector.extract_strided_slice %297 {offsets = [0, 0], sizes = [2, 128], strides = [1, 1]} : vector<8x128xf32> to vector<2x128xf32>
    %c6_67 = arith.constant 6 : index
    %c0_68 = arith.constant 0 : index
    %c0_69 = arith.constant 0 : index
    %304 = vector.load %arg8[%c6_67, %c0_68, %c0_69] : memref<8x8x256xf32, #tpu.memory_space<vmem>>, vector<1x2x128xf32>
    %305 = vector.shape_cast %304 : vector<1x2x128xf32> to vector<2x128xf32>
    %306 = vector.shape_cast %303 : vector<2x128xf32> to vector<1x2x128xf32>
    tpu.vector_store %arg8[%c6_67, %c0_68, %c0_69], %306 {strides = array<i32>} : memref<8x8x256xf32, #tpu.memory_space<vmem>>, vector<1x2x128xf32>,
    %307 = vector.extract_strided_slice %297 {offsets = [2, 0], sizes = [2, 128], strides = [1, 1]} : vector<8x128xf32> to vector<2x128xf32>
    %c1_70 = arith.constant 1 : index
    %c0_71 = arith.constant 0 : index
    %c128_72 = arith.constant 128 : index
    %308 = vector.load %arg8[%c1_70, %c0_71, %c128_72] : memref<8x8x256xf32, #tpu.memory_space<vmem>>, vector<1x2x128xf32>
    %309 = vector.shape_cast %308 : vector<1x2x128xf32> to vector<2x128xf32>
    %310 = vector.shape_cast %307 : vector<2x128xf32> to vector<1x2x128xf32>
    tpu.vector_store %arg8[%c1_70, %c0_71, %c128_72], %310 {strides = array<i32>} : memref<8x8x256xf32, #tpu.memory_space<vmem>>, vector<1x2x128xf32>,
    %311 = vector.extract_strided_slice %7 {offsets = [56, 0], sizes = [8, 512], strides = [1, 1]} : vector<64x512xf32> to vector<8x512xf32>
    %cst_73 = arith.constant dense<0.000000e+00> : vector<8x512xf32>
    %312 = tpu.matmul %302, %4, %cst_73 {dimension_numbers = #tpu.dot_dimension_numbers<[1], [0], [0], [1], [0, 0, 1, 1], [], []>} : vector<8x256xf32>, vector<256x512xf32>, vector<8x512xf32> -> vector<8x512xf32>
    %313 = arith.addf %311, %312 : vector<8x512xf32>
    %314 = vector.extract_strided_slice %313 {offsets = [0, 0], sizes = [8, 128], strides = [1, 1]} : vector<8x512xf32> to vector<8x128xf32>
    %315 = arith.negf %314 : vector<8x128xf32>
    %316 = math.exp %315 : vector<8x128xf32>
    %cst_74 = arith.constant 1.000000e+00 : f32
    %317 = vector.broadcast %cst_74 : f32 to vector<8x128xf32>
    %318 = arith.addf %317, %316 : vector<8x128xf32>
    %319 = arith.divf %317, %318 : vector<8x128xf32>
    %320 = vector.extract_strided_slice %313 {offsets = [0, 128], sizes = [8, 128], strides = [1, 1]} : vector<8x512xf32> to vector<8x128xf32>
    %321 = arith.negf %320 : vector<8x128xf32>
    %322 = math.exp %321 : vector<8x128xf32>
    %cst_75 = arith.constant 1.000000e+00 : f32
    %323 = vector.broadcast %cst_75 : f32 to vector<8x128xf32>
    %324 = arith.addf %323, %322 : vector<8x128xf32>
    %325 = arith.divf %323, %324 : vector<8x128xf32>
    %326 = vector.extract_strided_slice %313 {offsets = [0, 256], sizes = [8, 128], strides = [1, 1]} : vector<8x512xf32> to vector<8x128xf32>
    %327 = math.tanh %326 : vector<8x128xf32>
    %328 = vector.extract_strided_slice %313 {offsets = [0, 384], sizes = [8, 128], strides = [1, 1]} : vector<8x512xf32> to vector<8x128xf32>
    %329 = arith.negf %328 : vector<8x128xf32>
    %330 = math.exp %329 : vector<8x128xf32>
    %cst_76 = arith.constant 1.000000e+00 : f32
    %331 = vector.broadcast %cst_76 : f32 to vector<8x128xf32>
    %332 = arith.addf %331, %330 : vector<8x128xf32>
    %333 = arith.divf %331, %332 : vector<8x128xf32>
    %334 = arith.mulf %325, %295 : vector<8x128xf32>
    %335 = arith.mulf %319, %327 : vector<8x128xf32>
    %336 = arith.addf %334, %335 : vector<8x128xf32>
    %337 = math.tanh %336 : vector<8x128xf32>
    %338 = arith.mulf %333, %337 : vector<8x128xf32>
    %339 = vector.extract_strided_slice %338 {offsets = [0, 0], sizes = [2, 128], strides = [1, 1]} : vector<8x128xf32> to vector<2x128xf32>
    %c7_77 = arith.constant 7 : index
    %c0_78 = arith.constant 0 : index
    %c0_79 = arith.constant 0 : index
    %340 = vector.load %arg8[%c7_77, %c0_78, %c0_79] : memref<8x8x256xf32, #tpu.memory_space<vmem>>, vector<1x2x128xf32>
    %341 = vector.shape_cast %340 : vector<1x2x128xf32> to vector<2x128xf32>
    %342 = vector.shape_cast %339 : vector<2x128xf32> to vector<1x2x128xf32>
    tpu.vector_store %arg8[%c7_77, %c0_78, %c0_79], %342 {strides = array<i32>} : memref<8x8x256xf32, #tpu.memory_space<vmem>>, vector<1x2x128xf32>,
    %343 = vector.extract_strided_slice %338 {offsets = [2, 0], sizes = [2, 128], strides = [1, 1]} : vector<8x128xf32> to vector<2x128xf32>
    %c0_80 = arith.constant 0 : index
    %c0_81 = arith.constant 0 : index
    %c128_82 = arith.constant 128 : index
    %344 = vector.load %arg8[%c0_80, %c0_81, %c128_82] : memref<8x8x256xf32, #tpu.memory_space<vmem>>, vector<1x2x128xf32>
    %345 = vector.shape_cast %344 : vector<1x2x128xf32> to vector<2x128xf32>
    %346 = vector.shape_cast %343 : vector<2x128xf32> to vector<1x2x128xf32>
    tpu.vector_store %arg8[%c0_80, %c0_81, %c128_82], %346 {strides = array<i32>} : memref<8x8x256xf32, #tpu.memory_space<vmem>>, vector<1x2x128xf32>,
    %c0_i32_83 = arith.constant 0 : i32
    %347 = tpu.memref_slice %arg9[%c0_i32_83] : memref<2x!tpu.dma_semaphore, #tpu.memory_space<semaphore_mem>> -> memref<1x!tpu.dma_semaphore, #tpu.memory_space<semaphore_mem>>
    %348 = tpu.memref_squeeze %347 : memref<1x!tpu.dma_semaphore, #tpu.memory_space<semaphore_mem>> -> memref<!tpu.dma_semaphore, #tpu.memory_space<semaphore_mem>>
    tpu.wait_dma2 semaphore(%348 : memref<!tpu.dma_semaphore, #tpu.memory_space<semaphore_mem>>) src(%arg3 : memref<392x1024xf32, #tpu.memory_space<any>>) dst(%arg6 : memref<392x1024xf32, #tpu.memory_space<vmem>>)
    %c0_84 = arith.constant 0 : index
    %c0_85 = arith.constant 0 : index
    %349 = vector.load %arg6[%c0_84, %c0_85] : memref<392x1024xf32, #tpu.memory_space<vmem>>, vector<256x1024xf32>
    %c256_86 = arith.constant 256 : index
    %c0_87 = arith.constant 0 : index
    %350 = vector.load %arg6[%c256_86, %c0_87] : memref<392x1024xf32, #tpu.memory_space<vmem>>, vector<128x512xf32>
    %c256_88 = arith.constant 256 : index
    %c512 = arith.constant 512 : index
    %351 = vector.load %arg6[%c256_88, %c512] : memref<392x1024xf32, #tpu.memory_space<vmem>>, vector<128x512xf32>
    %c384 = arith.constant 384 : index
    %c0_89 = arith.constant 0 : index
    %352 = vector.load %arg6[%c384, %c0_89] : memref<392x1024xf32, #tpu.memory_space<vmem>>, vector<1x1024xf32>
    %c0_90 = arith.constant 0 : index
    %c0_91 = arith.constant 0 : index
    %c0_92 = arith.constant 0 : index
    %353 = vector.load %arg8[%c0_90, %c0_91, %c0_92] : memref<8x8x256xf32, #tpu.memory_space<vmem>>, vector<8x8x256xf32>
    %354 = vector.shape_cast %353 : vector<8x8x256xf32> to vector<64x256xf32>
    %cst_93 = arith.constant dense<0.000000e+00> : vector<64x1024xf32>
    %355 = tpu.matmul %354, %349, %cst_93 {dimension_numbers = #tpu.dot_dimension_numbers<[1], [0], [0], [1], [0, 0, 1, 1], [], []>} : vector<64x256xf32>, vector<256x1024xf32>, vector<64x1024xf32> -> vector<64x1024xf32>
    %356 = vector.broadcast %352 : vector<1x1024xf32> to vector<64x1024xf32>
    %357 = arith.addf %355, %356 : vector<64x1024xf32>
    %c3_94 = arith.constant 3 : index
    %c0_95 = arith.constant 0 : index
    %c0_96 = arith.constant 0 : index
    %358 = vector.load %arg2[%c3_94, %c0_95, %c0_96] : memref<4x8x256xf32, #tpu.memory_space<vmem>>, vector<1x8x128xf32>
    %359 = vector.shape_cast %358 : vector<1x8x128xf32> to vector<8x128xf32>
    %c3_97 = arith.constant 3 : index
    %c0_98 = arith.constant 0 : index
    %c128_99 = arith.constant 128 : index
    %360 = vector.load %arg2[%c3_97, %c0_98, %c128_99] : memref<4x8x256xf32, #tpu.memory_space<vmem>>, vector<1x8x128xf32>
    %361 = vector.shape_cast %360 : vector<1x8x128xf32> to vector<8x128xf32>
    %362 = vector.extract_strided_slice %357 {offsets = [56, 512], sizes = [8, 512], strides = [1, 1]} : vector<64x1024xf32> to vector<8x512xf32>
    %cst_100 = arith.constant dense<0.000000e+00> : vector<8x512xf32>
    %363 = tpu.matmul %359, %351, %cst_100 {dimension_numbers = #tpu.dot_dimension_numbers<[1], [0], [0], [1], [0, 0, 1, 1], [], []>} : vector<8x128xf32>, vector<128x512xf32>, vector<8x512xf32> -> vector<8x512xf32>
    %364 = arith.addf %362, %363 : vector<8x512xf32>
    %365 = vector.extract_strided_slice %364 {offsets = [0, 0], sizes = [8, 128], strides = [1, 1]} : vector<8x512xf32> to vector<8x128xf32>
    %366 = arith.negf %365 : vector<8x128xf32>
    %367 = math.exp %366 : vector<8x128xf32>
    %cst_101 = arith.constant 1.000000e+00 : f32
    %368 = vector.broadcast %cst_101 : f32 to vector<8x128xf32>
    %369 = arith.addf %368, %367 : vector<8x128xf32>
    %370 = arith.divf %368, %369 : vector<8x128xf32>
    %371 = vector.extract_strided_slice %364 {offsets = [0, 128], sizes = [8, 128], strides = [1, 1]} : vector<8x512xf32> to vector<8x128xf32>
    %372 = arith.negf %371 : vector<8x128xf32>
    %373 = math.exp %372 : vector<8x128xf32>
    %cst_102 = arith.constant 1.000000e+00 : f32
    %374 = vector.broadcast %cst_102 : f32 to vector<8x128xf32>
    %375 = arith.addf %374, %373 : vector<8x128xf32>
    %376 = arith.divf %374, %375 : vector<8x128xf32>
    %377 = vector.extract_strided_slice %364 {offsets = [0, 256], sizes = [8, 128], strides = [1, 1]} : vector<8x512xf32> to vector<8x128xf32>
    %378 = math.tanh %377 : vector<8x128xf32>
    %379 = vector.extract_strided_slice %364 {offsets = [0, 384], sizes = [8, 128], strides = [1, 1]} : vector<8x512xf32> to vector<8x128xf32>
    %380 = arith.negf %379 : vector<8x128xf32>
    %381 = math.exp %380 : vector<8x128xf32>
    %cst_103 = arith.constant 1.000000e+00 : f32
    %382 = vector.broadcast %cst_103 : f32 to vector<8x128xf32>
    %383 = arith.addf %382, %381 : vector<8x128xf32>
    %384 = arith.divf %382, %383 : vector<8x128xf32>
    %385 = arith.mulf %376, %361 : vector<8x128xf32>
    %386 = arith.mulf %370, %378 : vector<8x128xf32>
    %387 = arith.addf %385, %386 : vector<8x128xf32>
    %388 = math.tanh %387 : vector<8x128xf32>
    %389 = arith.mulf %384, %388 : vector<8x128xf32>
    %c2_104 = arith.constant 2 : index
    %c0_105 = arith.constant 0 : index
    %c0_106 = arith.constant 0 : index
    %390 = vector.load %arg2[%c2_104, %c0_105, %c0_106] : memref<4x8x256xf32, #tpu.memory_space<vmem>>, vector<1x8x128xf32>
    %391 = vector.shape_cast %390 : vector<1x8x128xf32> to vector<8x128xf32>
    %c2_107 = arith.constant 2 : index
    %c0_108 = arith.constant 0 : index
    %c128_109 = arith.constant 128 : index
    %392 = vector.load %arg2[%c2_107, %c0_108, %c128_109] : memref<4x8x256xf32, #tpu.memory_space<vmem>>, vector<1x8x128xf32>
    %393 = vector.shape_cast %392 : vector<1x8x128xf32> to vector<8x128xf32>
    %394 = vector.extract_strided_slice %357 {offsets = [0, 0], sizes = [8, 512], strides = [1, 1]} : vector<64x1024xf32> to vector<8x512xf32>
    %cst_110 = arith.constant dense<0.000000e+00> : vector<8x512xf32>
    %395 = tpu.matmul %391, %350, %cst_110 {dimension_numbers = #tpu.dot_dimension_numbers<[1], [0], [0], [1], [0, 0, 1, 1], [], []>} : vector<8x128xf32>, vector<128x512xf32>, vector<8x512xf32> -> vector<8x512xf32>
    %396 = arith.addf %394, %395 : vector<8x512xf32>
    %397 = vector.extract_strided_slice %396 {offsets = [0, 0], sizes = [8, 128], strides = [1, 1]} : vector<8x512xf32> to vector<8x128xf32>
    %398 = arith.negf %397 : vector<8x128xf32>
    %399 = math.exp %398 : vector<8x128xf32>
    %cst_111 = arith.constant 1.000000e+00 : f32
    %400 = vector.broadcast %cst_111 : f32 to vector<8x128xf32>
    %401 = arith.addf %400, %399 : vector<8x128xf32>
    %402 = arith.divf %400, %401 : vector<8x128xf32>
    %403 = vector.extract_strided_slice %396 {offsets = [0, 128], sizes = [8, 128], strides = [1, 1]} : vector<8x512xf32> to vector<8x128xf32>
    %404 = arith.negf %403 : vector<8x128xf32>
    %405 = math.exp %404 : vector<8x128xf32>
    %cst_112 = arith.constant 1.000000e+00 : f32
    %406 = vector.broadcast %cst_112 : f32 to vector<8x128xf32>
    %407 = arith.addf %406, %405 : vector<8x128xf32>
    %408 = arith.divf %406, %407 : vector<8x128xf32>
    %409 = vector.extract_strided_slice %396 {offsets = [0, 256], sizes = [8, 128], strides = [1, 1]} : vector<8x512xf32> to vector<8x128xf32>
    %410 = math.tanh %409 : vector<8x128xf32>
    %411 = vector.extract_strided_slice %396 {offsets = [0, 384], sizes = [8, 128], strides = [1, 1]} : vector<8x512xf32> to vector<8x128xf32>
    %412 = arith.negf %411 : vector<8x128xf32>
    %413 = math.exp %412 : vector<8x128xf32>
    %cst_113 = arith.constant 1.000000e+00 : f32
    %414 = vector.broadcast %cst_113 : f32 to vector<8x128xf32>
    %415 = arith.addf %414, %413 : vector<8x128xf32>
    %416 = arith.divf %414, %415 : vector<8x128xf32>
    %417 = arith.mulf %408, %393 : vector<8x128xf32>
    %418 = arith.mulf %402, %410 : vector<8x128xf32>
    %419 = arith.addf %417, %418 : vector<8x128xf32>
    %420 = math.tanh %419 : vector<8x128xf32>
    %421 = arith.mulf %416, %420 : vector<8x128xf32>
    %422 = vector.extract_strided_slice %357 {offsets = [8, 0], sizes = [8, 512], strides = [1, 1]} : vector<64x1024xf32> to vector<8x512xf32>
    %cst_114 = arith.constant dense<0.000000e+00> : vector<8x512xf32>
    %423 = tpu.matmul %421, %350, %cst_114 {dimension_numbers = #tpu.dot_dimension_numbers<[1], [0], [0], [1], [0, 0, 1, 1], [], []>} : vector<8x128xf32>, vector<128x512xf32>, vector<8x512xf32> -> vector<8x512xf32>
    %424 = arith.addf %422, %423 : vector<8x512xf32>
    %425 = vector.extract_strided_slice %424 {offsets = [0, 0], sizes = [8, 128], strides = [1, 1]} : vector<8x512xf32> to vector<8x128xf32>
    %426 = arith.negf %425 : vector<8x128xf32>
    %427 = math.exp %426 : vector<8x128xf32>
    %cst_115 = arith.constant 1.000000e+00 : f32
    %428 = vector.broadcast %cst_115 : f32 to vector<8x128xf32>
    %429 = arith.addf %428, %427 : vector<8x128xf32>
    %430 = arith.divf %428, %429 : vector<8x128xf32>
    %431 = vector.extract_strided_slice %424 {offsets = [0, 128], sizes = [8, 128], strides = [1, 1]} : vector<8x512xf32> to vector<8x128xf32>
    %432 = arith.negf %431 : vector<8x128xf32>
    %433 = math.exp %432 : vector<8x128xf32>
    %cst_116 = arith.constant 1.000000e+00 : f32
    %434 = vector.broadcast %cst_116 : f32 to vector<8x128xf32>
    %435 = arith.addf %434, %433 : vector<8x128xf32>
    %436 = arith.divf %434, %435 : vector<8x128xf32>
    %437 = vector.extract_strided_slice %424 {offsets = [0, 256], sizes = [8, 128], strides = [1, 1]} : vector<8x512xf32> to vector<8x128xf32>
    %438 = math.tanh %437 : vector<8x128xf32>
    %439 = vector.extract_strided_slice %424 {offsets = [0, 384], sizes = [8, 128], strides = [1, 1]} : vector<8x512xf32> to vector<8x128xf32>
    %440 = arith.negf %439 : vector<8x128xf32>
    %441 = math.exp %440 : vector<8x128xf32>
    %cst_117 = arith.constant 1.000000e+00 : f32
    %442 = vector.broadcast %cst_117 : f32 to vector<8x128xf32>
    %443 = arith.addf %442, %441 : vector<8x128xf32>
    %444 = arith.divf %442, %443 : vector<8x128xf32>
    %445 = arith.mulf %436, %419 : vector<8x128xf32>
    %446 = arith.mulf %430, %438 : vector<8x128xf32>
    %447 = arith.addf %445, %446 : vector<8x128xf32>
    %448 = math.tanh %447 : vector<8x128xf32>
    %449 = arith.mulf %444, %448 : vector<8x128xf32>
    %450 = vector.extract_strided_slice %357 {offsets = [16, 0], sizes = [8, 512], strides = [1, 1]} : vector<64x1024xf32> to vector<8x512xf32>
    %cst_118 = arith.constant dense<0.000000e+00> : vector<8x512xf32>
    %451 = tpu.matmul %449, %350, %cst_118 {dimension_numbers = #tpu.dot_dimension_numbers<[1], [0], [0], [1], [0, 0, 1, 1], [], []>} : vector<8x128xf32>, vector<128x512xf32>, vector<8x512xf32> -> vector<8x512xf32>
    %452 = arith.addf %450, %451 : vector<8x512xf32>
    %453 = vector.extract_strided_slice %452 {offsets = [0, 0], sizes = [8, 128], strides = [1, 1]} : vector<8x512xf32> to vector<8x128xf32>
    %454 = arith.negf %453 : vector<8x128xf32>
    %455 = math.exp %454 : vector<8x128xf32>
    %cst_119 = arith.constant 1.000000e+00 : f32
    %456 = vector.broadcast %cst_119 : f32 to vector<8x128xf32>
    %457 = arith.addf %456, %455 : vector<8x128xf32>
    %458 = arith.divf %456, %457 : vector<8x128xf32>
    %459 = vector.extract_strided_slice %452 {offsets = [0, 128], sizes = [8, 128], strides = [1, 1]} : vector<8x512xf32> to vector<8x128xf32>
    %460 = arith.negf %459 : vector<8x128xf32>
    %461 = math.exp %460 : vector<8x128xf32>
    %cst_120 = arith.constant 1.000000e+00 : f32
    %462 = vector.broadcast %cst_120 : f32 to vector<8x128xf32>
    %463 = arith.addf %462, %461 : vector<8x128xf32>
    %464 = arith.divf %462, %463 : vector<8x128xf32>
    %465 = vector.extract_strided_slice %452 {offsets = [0, 256], sizes = [8, 128], strides = [1, 1]} : vector<8x512xf32> to vector<8x128xf32>
    %466 = math.tanh %465 : vector<8x128xf32>
    %467 = vector.extract_strided_slice %452 {offsets = [0, 384], sizes = [8, 128], strides = [1, 1]} : vector<8x512xf32> to vector<8x128xf32>
    %468 = arith.negf %467 : vector<8x128xf32>
    %469 = math.exp %468 : vector<8x128xf32>
    %cst_121 = arith.constant 1.000000e+00 : f32
    %470 = vector.broadcast %cst_121 : f32 to vector<8x128xf32>
    %471 = arith.addf %470, %469 : vector<8x128xf32>
    %472 = arith.divf %470, %471 : vector<8x128xf32>
    %473 = arith.mulf %464, %447 : vector<8x128xf32>
    %474 = arith.mulf %458, %466 : vector<8x128xf32>
    %475 = arith.addf %473, %474 : vector<8x128xf32>
    %476 = math.tanh %475 : vector<8x128xf32>
    %477 = arith.mulf %472, %476 : vector<8x128xf32>
    %478 = vector.extract_strided_slice %357 {offsets = [24, 0], sizes = [8, 512], strides = [1, 1]} : vector<64x1024xf32> to vector<8x512xf32>
    %cst_122 = arith.constant dense<0.000000e+00> : vector<8x512xf32>
    %479 = tpu.matmul %477, %350, %cst_122 {dimension_numbers = #tpu.dot_dimension_numbers<[1], [0], [0], [1], [0, 0, 1, 1], [], []>} : vector<8x128xf32>, vector<128x512xf32>, vector<8x512xf32> -> vector<8x512xf32>
    %480 = arith.addf %478, %479 : vector<8x512xf32>
    %481 = vector.extract_strided_slice %480 {offsets = [0, 0], sizes = [8, 128], strides = [1, 1]} : vector<8x512xf32> to vector<8x128xf32>
    %482 = arith.negf %481 : vector<8x128xf32>
    %483 = math.exp %482 : vector<8x128xf32>
    %cst_123 = arith.constant 1.000000e+00 : f32
    %484 = vector.broadcast %cst_123 : f32 to vector<8x128xf32>
    %485 = arith.addf %484, %483 : vector<8x128xf32>
    %486 = arith.divf %484, %485 : vector<8x128xf32>
    %487 = vector.extract_strided_slice %480 {offsets = [0, 128], sizes = [8, 128], strides = [1, 1]} : vector<8x512xf32> to vector<8x128xf32>
    %488 = arith.negf %487 : vector<8x128xf32>
    %489 = math.exp %488 : vector<8x128xf32>
    %cst_124 = arith.constant 1.000000e+00 : f32
    %490 = vector.broadcast %cst_124 : f32 to vector<8x128xf32>
    %491 = arith.addf %490, %489 : vector<8x128xf32>
    %492 = arith.divf %490, %491 : vector<8x128xf32>
    %493 = vector.extract_strided_slice %480 {offsets = [0, 256], sizes = [8, 128], strides = [1, 1]} : vector<8x512xf32> to vector<8x128xf32>
    %494 = math.tanh %493 : vector<8x128xf32>
    %495 = vector.extract_strided_slice %480 {offsets = [0, 384], sizes = [8, 128], strides = [1, 1]} : vector<8x512xf32> to vector<8x128xf32>
    %496 = arith.negf %495 : vector<8x128xf32>
    %497 = math.exp %496 : vector<8x128xf32>
    %cst_125 = arith.constant 1.000000e+00 : f32
    %498 = vector.broadcast %cst_125 : f32 to vector<8x128xf32>
    %499 = arith.addf %498, %497 : vector<8x128xf32>
    %500 = arith.divf %498, %499 : vector<8x128xf32>
    %501 = arith.mulf %492, %475 : vector<8x128xf32>
    %502 = arith.mulf %486, %494 : vector<8x128xf32>
    %503 = arith.addf %501, %502 : vector<8x128xf32>
    %504 = math.tanh %503 : vector<8x128xf32>
    %505 = arith.mulf %500, %504 : vector<8x128xf32>
    %506 = vector.extract_strided_slice %357 {offsets = [32, 0], sizes = [8, 512], strides = [1, 1]} : vector<64x1024xf32> to vector<8x512xf32>
    %cst_126 = arith.constant dense<0.000000e+00> : vector<8x512xf32>
    %507 = tpu.matmul %505, %350, %cst_126 {dimension_numbers = #tpu.dot_dimension_numbers<[1], [0], [0], [1], [0, 0, 1, 1], [], []>} : vector<8x128xf32>, vector<128x512xf32>, vector<8x512xf32> -> vector<8x512xf32>
    %508 = arith.addf %506, %507 : vector<8x512xf32>
    %509 = vector.extract_strided_slice %508 {offsets = [0, 0], sizes = [8, 128], strides = [1, 1]} : vector<8x512xf32> to vector<8x128xf32>
    %510 = arith.negf %509 : vector<8x128xf32>
    %511 = math.exp %510 : vector<8x128xf32>
    %cst_127 = arith.constant 1.000000e+00 : f32
    %512 = vector.broadcast %cst_127 : f32 to vector<8x128xf32>
    %513 = arith.addf %512, %511 : vector<8x128xf32>
    %514 = arith.divf %512, %513 : vector<8x128xf32>
    %515 = vector.extract_strided_slice %508 {offsets = [0, 128], sizes = [8, 128], strides = [1, 1]} : vector<8x512xf32> to vector<8x128xf32>
    %516 = arith.negf %515 : vector<8x128xf32>
    %517 = math.exp %516 : vector<8x128xf32>
    %cst_128 = arith.constant 1.000000e+00 : f32
    %518 = vector.broadcast %cst_128 : f32 to vector<8x128xf32>
    %519 = arith.addf %518, %517 : vector<8x128xf32>
    %520 = arith.divf %518, %519 : vector<8x128xf32>
    %521 = vector.extract_strided_slice %508 {offsets = [0, 256], sizes = [8, 128], strides = [1, 1]} : vector<8x512xf32> to vector<8x128xf32>
    %522 = math.tanh %521 : vector<8x128xf32>
    %523 = vector.extract_strided_slice %508 {offsets = [0, 384], sizes = [8, 128], strides = [1, 1]} : vector<8x512xf32> to vector<8x128xf32>
    %524 = arith.negf %523 : vector<8x128xf32>
    %525 = math.exp %524 : vector<8x128xf32>
    %cst_129 = arith.constant 1.000000e+00 : f32
    %526 = vector.broadcast %cst_129 : f32 to vector<8x128xf32>
    %527 = arith.addf %526, %525 : vector<8x128xf32>
    %528 = arith.divf %526, %527 : vector<8x128xf32>
    %529 = arith.mulf %520, %503 : vector<8x128xf32>
    %530 = arith.mulf %514, %522 : vector<8x128xf32>
    %531 = arith.addf %529, %530 : vector<8x128xf32>
    %532 = math.tanh %531 : vector<8x128xf32>
    %533 = arith.mulf %528, %532 : vector<8x128xf32>
    %534 = vector.extract_strided_slice %357 {offsets = [40, 0], sizes = [8, 512], strides = [1, 1]} : vector<64x1024xf32> to vector<8x512xf32>
    %cst_130 = arith.constant dense<0.000000e+00> : vector<8x512xf32>
    %535 = tpu.matmul %533, %350, %cst_130 {dimension_numbers = #tpu.dot_dimension_numbers<[1], [0], [0], [1], [0, 0, 1, 1], [], []>} : vector<8x128xf32>, vector<128x512xf32>, vector<8x512xf32> -> vector<8x512xf32>
    %536 = arith.addf %534, %535 : vector<8x512xf32>
    %537 = vector.extract_strided_slice %536 {offsets = [0, 0], sizes = [8, 128], strides = [1, 1]} : vector<8x512xf32> to vector<8x128xf32>
    %538 = arith.negf %537 : vector<8x128xf32>
    %539 = math.exp %538 : vector<8x128xf32>
    %cst_131 = arith.constant 1.000000e+00 : f32
    %540 = vector.broadcast %cst_131 : f32 to vector<8x128xf32>
    %541 = arith.addf %540, %539 : vector<8x128xf32>
    %542 = arith.divf %540, %541 : vector<8x128xf32>
    %543 = vector.extract_strided_slice %536 {offsets = [0, 128], sizes = [8, 128], strides = [1, 1]} : vector<8x512xf32> to vector<8x128xf32>
    %544 = arith.negf %543 : vector<8x128xf32>
    %545 = math.exp %544 : vector<8x128xf32>
    %cst_132 = arith.constant 1.000000e+00 : f32
    %546 = vector.broadcast %cst_132 : f32 to vector<8x128xf32>
    %547 = arith.addf %546, %545 : vector<8x128xf32>
    %548 = arith.divf %546, %547 : vector<8x128xf32>
    %549 = vector.extract_strided_slice %536 {offsets = [0, 256], sizes = [8, 128], strides = [1, 1]} : vector<8x512xf32> to vector<8x128xf32>
    %550 = math.tanh %549 : vector<8x128xf32>
    %551 = vector.extract_strided_slice %536 {offsets = [0, 384], sizes = [8, 128], strides = [1, 1]} : vector<8x512xf32> to vector<8x128xf32>
    %552 = arith.negf %551 : vector<8x128xf32>
    %553 = math.exp %552 : vector<8x128xf32>
    %cst_133 = arith.constant 1.000000e+00 : f32
    %554 = vector.broadcast %cst_133 : f32 to vector<8x128xf32>
    %555 = arith.addf %554, %553 : vector<8x128xf32>
    %556 = arith.divf %554, %555 : vector<8x128xf32>
    %557 = arith.mulf %548, %531 : vector<8x128xf32>
    %558 = arith.mulf %542, %550 : vector<8x128xf32>
    %559 = arith.addf %557, %558 : vector<8x128xf32>
    %560 = math.tanh %559 : vector<8x128xf32>
    %561 = arith.mulf %556, %560 : vector<8x128xf32>
    %562 = vector.extract_strided_slice %357 {offsets = [48, 0], sizes = [8, 512], strides = [1, 1]} : vector<64x1024xf32> to vector<8x512xf32>
    %cst_134 = arith.constant dense<0.000000e+00> : vector<8x512xf32>
    %563 = tpu.matmul %561, %350, %cst_134 {dimension_numbers = #tpu.dot_dimension_numbers<[1], [0], [0], [1], [0, 0, 1, 1], [], []>} : vector<8x128xf32>, vector<128x512xf32>, vector<8x512xf32> -> vector<8x512xf32>
    %564 = arith.addf %562, %563 : vector<8x512xf32>
    %565 = vector.extract_strided_slice %564 {offsets = [0, 0], sizes = [8, 128], strides = [1, 1]} : vector<8x512xf32> to vector<8x128xf32>
    %566 = arith.negf %565 : vector<8x128xf32>
    %567 = math.exp %566 : vector<8x128xf32>
    %cst_135 = arith.constant 1.000000e+00 : f32
    %568 = vector.broadcast %cst_135 : f32 to vector<8x128xf32>
    %569 = arith.addf %568, %567 : vector<8x128xf32>
    %570 = arith.divf %568, %569 : vector<8x128xf32>
    %571 = vector.extract_strided_slice %564 {offsets = [0, 128], sizes = [8, 128], strides = [1, 1]} : vector<8x512xf32> to vector<8x128xf32>
    %572 = arith.negf %571 : vector<8x128xf32>
    %573 = math.exp %572 : vector<8x128xf32>
    %cst_136 = arith.constant 1.000000e+00 : f32
    %574 = vector.broadcast %cst_136 : f32 to vector<8x128xf32>
    %575 = arith.addf %574, %573 : vector<8x128xf32>
    %576 = arith.divf %574, %575 : vector<8x128xf32>
    %577 = vector.extract_strided_slice %564 {offsets = [0, 256], sizes = [8, 128], strides = [1, 1]} : vector<8x512xf32> to vector<8x128xf32>
    %578 = math.tanh %577 : vector<8x128xf32>
    %579 = vector.extract_strided_slice %564 {offsets = [0, 384], sizes = [8, 128], strides = [1, 1]} : vector<8x512xf32> to vector<8x128xf32>
    %580 = arith.negf %579 : vector<8x128xf32>
    %581 = math.exp %580 : vector<8x128xf32>
    %cst_137 = arith.constant 1.000000e+00 : f32
    %582 = vector.broadcast %cst_137 : f32 to vector<8x128xf32>
    %583 = arith.addf %582, %581 : vector<8x128xf32>
    %584 = arith.divf %582, %583 : vector<8x128xf32>
    %585 = arith.mulf %576, %559 : vector<8x128xf32>
    %586 = arith.mulf %570, %578 : vector<8x128xf32>
    %587 = arith.addf %585, %586 : vector<8x128xf32>
    %588 = math.tanh %587 : vector<8x128xf32>
    %589 = arith.mulf %584, %588 : vector<8x128xf32>
    %590 = vector.extract_strided_slice %357 {offsets = [56, 0], sizes = [8, 512], strides = [1, 1]} : vector<64x1024xf32> to vector<8x512xf32>
    %cst_138 = arith.constant dense<0.000000e+00> : vector<8x512xf32>
    %591 = tpu.matmul %589, %350, %cst_138 {dimension_numbers = #tpu.dot_dimension_numbers<[1], [0], [0], [1], [0, 0, 1, 1], [], []>} : vector<8x128xf32>, vector<128x512xf32>, vector<8x512xf32> -> vector<8x512xf32>
    %592 = arith.addf %590, %591 : vector<8x512xf32>
    %593 = vector.extract_strided_slice %592 {offsets = [0, 0], sizes = [8, 128], strides = [1, 1]} : vector<8x512xf32> to vector<8x128xf32>
    %594 = arith.negf %593 : vector<8x128xf32>
    %595 = math.exp %594 : vector<8x128xf32>
    %cst_139 = arith.constant 1.000000e+00 : f32
    %596 = vector.broadcast %cst_139 : f32 to vector<8x128xf32>
    %597 = arith.addf %596, %595 : vector<8x128xf32>
    %598 = arith.divf %596, %597 : vector<8x128xf32>
    %599 = vector.extract_strided_slice %592 {offsets = [0, 128], sizes = [8, 128], strides = [1, 1]} : vector<8x512xf32> to vector<8x128xf32>
    %600 = arith.negf %599 : vector<8x128xf32>
    %601 = math.exp %600 : vector<8x128xf32>
    %cst_140 = arith.constant 1.000000e+00 : f32
    %602 = vector.broadcast %cst_140 : f32 to vector<8x128xf32>
    %603 = arith.addf %602, %601 : vector<8x128xf32>
    %604 = arith.divf %602, %603 : vector<8x128xf32>
    %605 = vector.extract_strided_slice %592 {offsets = [0, 256], sizes = [8, 128], strides = [1, 1]} : vector<8x512xf32> to vector<8x128xf32>
    %606 = math.tanh %605 : vector<8x128xf32>
    %607 = vector.extract_strided_slice %592 {offsets = [0, 384], sizes = [8, 128], strides = [1, 1]} : vector<8x512xf32> to vector<8x128xf32>
    %608 = arith.negf %607 : vector<8x128xf32>
    %609 = math.exp %608 : vector<8x128xf32>
    %cst_141 = arith.constant 1.000000e+00 : f32
    %610 = vector.broadcast %cst_141 : f32 to vector<8x128xf32>
    %611 = arith.addf %610, %609 : vector<8x128xf32>
    %612 = arith.divf %610, %611 : vector<8x128xf32>
    %613 = arith.mulf %604, %587 : vector<8x128xf32>
    %614 = arith.mulf %598, %606 : vector<8x128xf32>
    %615 = arith.addf %613, %614 : vector<8x128xf32>
    %616 = math.tanh %615 : vector<8x128xf32>
    %617 = arith.mulf %612, %616 : vector<8x128xf32>
    %c1_i32_142 = arith.constant 1 : i32
    %618 = tpu.memref_slice %arg9[%c1_i32_142] : memref<2x!tpu.dma_semaphore, #tpu.memory_space<semaphore_mem>> -> memref<1x!tpu.dma_semaphore, #tpu.memory_space<semaphore_mem>>
    %619 = tpu.memref_squeeze %618 : memref<1x!tpu.dma_semaphore, #tpu.memory_space<semaphore_mem>> -> memref<!tpu.dma_semaphore, #tpu.memory_space<semaphore_mem>>
    tpu.wait_dma2 semaphore(%619 : memref<!tpu.dma_semaphore, #tpu.memory_space<semaphore_mem>>) src(%arg4 : memref<264x128xf32, #tpu.memory_space<any>>) dst(%arg7 : memref<264x128xf32, #tpu.memory_space<vmem>>)
    %c0_143 = arith.constant 0 : index
    %c0_144 = arith.constant 0 : index
    %620 = vector.load %arg7[%c0_143, %c0_144] : memref<264x128xf32, #tpu.memory_space<vmem>>, vector<128x128xf32>
    %cst_145 = arith.constant dense<0.000000e+00> : vector<8x128xf32>
    %621 = tpu.matmul %617, %620, %cst_145 {dimension_numbers = #tpu.dot_dimension_numbers<[1], [0], [0], [1], [0, 0, 1, 1], [], []>} : vector<8x128xf32>, vector<128x128xf32>, vector<8x128xf32> -> vector<8x128xf32>
    %c128_146 = arith.constant 128 : index
    %c0_147 = arith.constant 0 : index
    %622 = vector.load %arg7[%c128_146, %c0_147] : memref<264x128xf32, #tpu.memory_space<vmem>>, vector<128x128xf32>
    %cst_148 = arith.constant dense<0.000000e+00> : vector<8x128xf32>
    %623 = tpu.matmul %389, %622, %cst_148 {dimension_numbers = #tpu.dot_dimension_numbers<[1], [0], [0], [1], [0, 0, 1, 1], [], []>} : vector<8x128xf32>, vector<128x128xf32>, vector<8x128xf32> -> vector<8x128xf32>
    %624 = arith.addf %621, %623 : vector<8x128xf32>
    %c256_149 = arith.constant 256 : index
    %c0_150 = arith.constant 0 : index
    %625 = vector.load %arg7[%c256_149, %c0_150] : memref<264x128xf32, #tpu.memory_space<vmem>>, vector<1x128xf32>
    %626 = vector.broadcast %625 : vector<1x128xf32> to vector<8x128xf32>
    %627 = arith.addf %624, %626 : vector<8x128xf32>
    %c0_151 = arith.constant 0 : index
    %c0_152 = arith.constant 0 : index
    %628 = vector.load %arg5[%c0_151, %c0_152] : memref<8x128xf32, #tpu.memory_space<vmem>>, vector<8x128xf32>
    tpu.vector_store %arg5[%c0_151, %c0_152], %627 {strides = array<i32>} : memref<8x128xf32, #tpu.memory_space<vmem>>, vector<8x128xf32>,
    return
  }
}

</mosaic_0001>

<llo_original>
// kernel: tpu_custom_call.1
$region0: #{tpu_custom_call.1}
  #allocation0 [shape = 'u32[]', space=smem, size = 0x4, offset = 0x4, fixed_abs, tag = 'smem constant byte address 0x4 - core index']
  #allocation1 [shape = 'u32[144,128]{1,0:T(1,128)}', space=vmem, size = 0x12000, scoped, tag = 'internal scratch']
  #allocation2 [shape = 'f32[392,1024]{1,0:T(8,128)}', space=vmem, size = 0x188000, scoped, tag = 'scratch operand']
  #allocation3 [shape = 'f32[264,128]{1,0:T(8,128)}', space=vmem, size = 0x21000, scoped, tag = 'scratch operand']
  #allocation4 [shape = 'f32[8,8,256]{2,1,0:T(8,128)}', space=vmem, size = 0x10000, scoped, tag = 'scratch operand']
  #allocation5 [shape = 's32[2]{0}', space=sflag, size = 0x8, scoped, tag = 'scratch operand']
  #allocation12 [shape = 's32[]', space=sflag, size = 0x4, offset = 0, fixed_abs, tag = 'sflag constant byte address 0x0 - dummy sync flag']
  #allocation13 [shape = 's32[]', space=sflag, size = 0x4, offset = 0, fixed_abs, tag = 'sflag constant byte address 0x0 - dummy sync flag']
  #allocation14 [shape = 'u32[]', space=smem, size = 0x4, offset = 0x44, fixed_abs, tag = 'smem constant byte address 0x44 - assertion arg 0']
  #allocation15 [shape = 'u32[]', space=smem, size = 0x4, offset = 0x48, fixed_abs, tag = 'smem constant byte address 0x48 - assertion arg 1']
  #allocation16 [shape = 's32[]', space=sflag, size = 0x4, offset = 0, fixed_abs, tag = 'sflag constant byte address 0x0 - dummy sync flag']
  #allocation17 [shape = 's32[]', space=sflag, size = 0x4, offset = 0, fixed_abs, tag = 'sflag constant byte address 0x0 - dummy sync flag']
  %s0 = inlined_call_operand.vmem [shape: f32[64,8], index: 0, kind: input, shape index: {}]
  %s1 = inlined_call_operand.hbm [shape: f32[264,512], index: 1, kind: input, shape index: {}]
  %s2 = inlined_call_operand.hbm [shape: f32[4,8,256], index: 2, kind: input, shape index: {}]
  %s3 = inlined_call_operand.hbm [shape: f32[392,1024], index: 3, kind: input, shape index: {}]
  %s4 = inlined_call_operand.hbm [shape: f32[264,128], index: 4, kind: input, shape index: {}]
  %s5 = inlined_call_operand.hbm [shape: f32[8,128], index: 5, kind: output, shape index: {}]
  %s6 = sld [smem:[#allocation0]]
  $region38: #{tpu_custom_call.1} parent=0
    _
  %s8 = ssub.s32 1, %s6
  %s9 = scalar_select 0, %s8, %s6
  $region1: #{tpu_custom_call.1} parent=0
    #allocation6 [shape = 'u8[540672]{0}', space=vmem, size = 0x84000, scoped, tag = 'input window, operand 1, single buffered']
    #allocation7 [shape = 's32[1]{0}', space=sflag, size = 0x4, scoped, tag = 'scoped memory for tpu_custom_call.1']
    #allocation8 [shape = 's32[1]{0}', space=sflag, size = 0x4, scoped, tag = 'scoped memory for tpu_custom_call.1']
    #allocation9 [shape = 'u8[32768]{0}', space=vmem, size = 0x8000, scoped, tag = 'input window, operand 2, single buffered']
    #allocation10 [shape = 's32[1]{0}', space=sflag, size = 0x4, scoped, tag = 'scoped memory for tpu_custom_call.1']
    #allocation11 [shape = 'u8[4096]{0}', space=vmem, size = 0x1000, scoped, tag = 'output window, operand 0, single buffered']
    %10 = vsyncpa [#allocation7], 0
    %11 = vsyncpa [#allocation10], 0
    %12 = vsyncpa [#allocation8], 0
    // Predicated region
    $region2: #{tpu_custom_call.1} parent=1 // pred_check
      _
    $region3: #{tpu_custom_call.1} parent=1 // pred_check_branch
      %14 = sbr.rel (0) target = $region5
    $region4: #{tpu_custom_call.1} parent=1 // pred_region
      _
    $region5: #{tpu_custom_call.1} parent=1 // pred_fallthru
      _
    // Predicated region
    $region6: #{tpu_custom_call.1} parent=1 // pred_check
      _
    $region7: #{tpu_custom_call.1} parent=1 // pred_check_branch
      %16 = sbr.rel (0) target = $region9
    $region8: #{tpu_custom_call.1} parent=1 // pred_region
      %s18 = ssub.s32 16896, 16896
      %19 = vsyncadd [#allocation7], %s18
      %s20 = sshll.u32 [#allocation6], 4
      %s21 = int_to_ptr.vmem [resolvable:$true] %s20
      %26 = dma.hbm_to_vmem [thread:$0]  %s1, 16896, %s21, [#allocation7], 512, 512, 32
    $region9: #{tpu_custom_call.1} parent=1 // pred_fallthru
      _
    // Predicated region
    $region10: #{tpu_custom_call.1} parent=1 // pred_check
      _
    $region11: #{tpu_custom_call.1} parent=1 // pred_check_branch
      %28 = sbr.rel (0) target = $region13
    $region12: #{tpu_custom_call.1} parent=1 // pred_region
      %s30 = ssub.s32 1024, 1024
      %31 = vsyncadd [#allocation10], %s30
      %s32 = sshll.u32 [#allocation9], 4
      %s33 = int_to_ptr.vmem [resolvable:$true] %s32
      %38 = dma.hbm_to_vmem [thread:$0]  %s2, 1024, %s33, [#allocation10], 256, 256, 16
    $region13: #{tpu_custom_call.1} parent=1 // pred_fallthru
      _
    // Predicated region
    $region14: #{tpu_custom_call.1} parent=1 // pred_check
      _
    $region15: #{tpu_custom_call.1} parent=1 // pred_check_branch
      %40 = sbr.rel (0) target = $region17
    $region16: #{tpu_custom_call.1} parent=1 // pred_region
      %41 = dma.done [#allocation7], 16896
    $region17: #{tpu_custom_call.1} parent=1 // pred_fallthru
      _
    // Predicated region
    $region18: #{tpu_custom_call.1} parent=1 // pred_check
      _
    $region19: #{tpu_custom_call.1} parent=1 // pred_check_branch
      %43 = sbr.rel (0) target = $region21
    $region20: #{tpu_custom_call.1} parent=1 // pred_region
      %44 = dma.done [#allocation10], 1024
    $region21: #{tpu_custom_call.1} parent=1 // pred_fallthru
      _
    // Predicated region
    $region22: #{tpu_custom_call.1} parent=1 // pred_check
      _
    $region23: #{tpu_custom_call.1} parent=1 // pred_check_branch
      %46 = sbr.rel target = $region25
    $region24: #{tpu_custom_call.1} parent=1 // pred_region
      %47 = sst [smem:[#allocation14]] [#allocation13]
      %48 = sst [smem:[#allocation15]] [#allocation12]
    $region25: #{tpu_custom_call.1} parent=1 // pred_fallthru
      _
    %50 = shalt.err (0)
    %s52 = sshll.u32 [#allocation2], 4
    %s53 = int_to_ptr.vmem [resolvable:$true] %s52
    %55 = dma.hbm_to_vmem [thread:$0]  %s3, 50176, %s53, [#allocation5]
    %s56 = scalar_lea.sflag [#allocation5], 1
    // Predicated region
    $region26: #{tpu_custom_call.1} parent=1 // pred_check
      _
    $region27: #{tpu_custom_call.1} parent=1 // pred_check_branch
      %58 = sbr.rel target = $region29
    $region28: #{tpu_custom_call.1} parent=1 // pred_region
      %59 = sst [smem:[#allocation14]] [#allocation17]
      %60 = sst [smem:[#allocation15]] [#allocation16]
    $region29: #{tpu_custom_call.1} parent=1 // pred_fallthru
      _
    %62 = shalt.err (0)
    %s64 = sshll.u32 [#allocation3], 4
    %s65 = int_to_ptr.vmem [resolvable:$true] %s64
    %67 = dma.hbm_to_vmem [thread:$0]  %s4, 4224, %s65, %s56
    %v68 = vld [vmem:[#allocation6] sm:$0xff]
    %v69 = vld [vmem:[#allocation6 + $0x8] sm:$0xff]
    %v70 = vld [vmem:[#allocation6 + $0x10] sm:$0xff]
    %v71 = vld [vmem:[#allocation6 + $0x18] sm:$0xff]
    %v72 = vld [vmem:[#allocation6 + $0x20] sm:$0xff]
    %v73 = vld [vmem:[#allocation6 + $0x28] sm:$0xff]
    %v74 = vld [vmem:[#allocation6 + $0x30] sm:$0xff]
    %v75 = vld [vmem:[#allocation6 + $0x38] sm:$0xff]
    %v76 = vld [vmem:[#allocation6 + $0x40] sm:$0xff]
    %v77 = vld [vmem:[#allocation6 + $0x48] sm:$0xff]
    %v78 = vld [vmem:[#allocation6 + $0x50] sm:$0xff]
    %v79 = vld [vmem:[#allocation6 + $0x58] sm:$0xff]
    %v80 = vld [vmem:[#allocation6 + $0x60] sm:$0xff]
    %v81 = vld [vmem:[#allocation6 + $0x68] sm:$0xff]
    %v82 = vld [vmem:[#allocation6 + $0x70] sm:$0xff]
    %v83 = vld [vmem:[#allocation6 + $0x78] sm:$0xff]
    %v84 = vld [vmem:[#allocation6 + $0x80] sm:$0xff]
    %v85 = vld [vmem:[#allocation6 + $0x88] sm:$0xff]
    %v86 = vld [vmem:[#allocation6 + $0x90] sm:$0xff]
    %v87 = vld [vmem:[#allocation6 + $0x98] sm:$0xff]
    %v88 = vld [vmem:[#allocation6 + $0xa0] sm:$0xff]
    %v89 = vld [vmem:[#allocation6 + $0xa8] sm:$0xff]
    %v90 = vld [vmem:[#allocation6 + $0xb0] sm:$0xff]
    %v91 = vld [vmem:[#allocation6 + $0xb8] sm:$0xff]
    %v92 = vld [vmem:[#allocation6 + $0xc0] sm:$0xff]
    %v93 = vld [vmem:[#allocation6 + $0xc8] sm:$0xff]
    %v94 = vld [vmem:[#allocation6 + $0xd0] sm:$0xff]
    %v95 = vld [vmem:[#allocation6 + $0xd8] sm:$0xff]
    %v96 = vld [vmem:[#allocation6 + $0xe0] sm:$0xff]
    %v97 = vld [vmem:[#allocation6 + $0xe8] sm:$0xff]
    %v98 = vld [vmem:[#allocation6 + $0xf0] sm:$0xff]
    %v99 = vld [vmem:[#allocation6 + $0xf8] sm:$0xff]
    %v100 = vld [vmem:[#allocation6 + $0x100] sm:$0xff]
    %v101 = vld [vmem:[#allocation6 + $0x108] sm:$0xff]
    %v102 = vld [vmem:[#allocation6 + $0x110] sm:$0xff]
    %v103 = vld [vmem:[#allocation6 + $0x118] sm:$0xff]
    %v104 = vld [vmem:[#allocation6 + $0x120] sm:$0xff]
    %v105 = vld [vmem:[#allocation6 + $0x128] sm:$0xff]
    %v106 = vld [vmem:[#allocation6 + $0x130] sm:$0xff]
    %v107 = vld [vmem:[#allocation6 + $0x138] sm:$0xff]
    %v108 = vld [vmem:[#allocation6 + $0x140] sm:$0xff]
    %v109 = vld [vmem:[#allocation6 + $0x148] sm:$0xff]
    %v110 = vld [vmem:[#allocation6 + $0x150] sm:$0xff]
    %v111 = vld [vmem:[#allocation6 + $0x158] sm:$0xff]
    %v112 = vld [vmem:[#allocation6 + $0x160] sm:$0xff]
    %v113 = vld [vmem:[#allocation6 + $0x168] sm:$0xff]
    %v114 = vld [vmem:[#allocation6 + $0x170] sm:$0xff]
    %v115 = vld [vmem:[#allocation6 + $0x178] sm:$0xff]
    %v116 = vld [vmem:[#allocation6 + $0x180] sm:$0xff]
    %v117 = vld [vmem:[#allocation6 + $0x188] sm:$0xff]
    %v118 = vld [vmem:[#allocation6 + $0x190] sm:$0xff]
    %v119 = vld [vmem:[#allocation6 + $0x198] sm:$0xff]
    %v120 = vld [vmem:[#allocation6 + $0x1a0] sm:$0xff]
    %v121 = vld [vmem:[#allocation6 + $0x1a8] sm:$0xff]
    %v122 = vld [vmem:[#allocation6 + $0x1b0] sm:$0xff]
    %v123 = vld [vmem:[#allocation6 + $0x1b8] sm:$0xff]
    %v124 = vld [vmem:[#allocation6 + $0x1c0] sm:$0xff]
    %v125 = vld [vmem:[#allocation6 + $0x1c8] sm:$0xff]
    %v126 = vld [vmem:[#allocation6 + $0x1d0] sm:$0xff]
    %v127 = vld [vmem:[#allocation6 + $0x1d8] sm:$0xff]
    %v128 = vld [vmem:[#allocation6 + $0x1e0] sm:$0xff]
    %v129 = vld [vmem:[#allocation6 + $0x1e8] sm:$0xff]
    %v130 = vld [vmem:[#allocation6 + $0x1f0] sm:$0xff]
    %v131 = vld [vmem:[#allocation6 + $0x1f8] sm:$0xff]
    %v132 = vld [vmem:[#allocation6 + $0x200] sm:$0xff]
    %v133 = vld [vmem:[#allocation6 + $0x208] sm:$0xff]
    %v134 = vld [vmem:[#allocation6 + $0x210] sm:$0xff]
    %v135 = vld [vmem:[#allocation6 + $0x218] sm:$0xff]
    %v136 = vld [vmem:[#allocation6 + $0x220] sm:$0xff]
    %v137 = vld [vmem:[#allocation6 + $0x228] sm:$0xff]
    %v138 = vld [vmem:[#allocation6 + $0x230] sm:$0xff]
    %v139 = vld [vmem:[#allocation6 + $0x238] sm:$0xff]
    %v140 = vld [vmem:[#allocation6 + $0x240] sm:$0xff]
    %v141 = vld [vmem:[#allocation6 + $0x248] sm:$0xff]
    %v142 = vld [vmem:[#allocation6 + $0x250] sm:$0xff]
    %v143 = vld [vmem:[#allocation6 + $0x258] sm:$0xff]
    %v144 = vld [vmem:[#allocation6 + $0x260] sm:$0xff]
    %v145 = vld [vmem:[#allocation6 + $0x268] sm:$0xff]
    %v146 = vld [vmem:[#allocation6 + $0x270] sm:$0xff]
    %v147 = vld [vmem:[#allocation6 + $0x278] sm:$0xff]
    %v148 = vld [vmem:[#allocation6 + $0x280] sm:$0xff]
    %v149 = vld [vmem:[#allocation6 + $0x288] sm:$0xff]
    %v150 = vld [vmem:[#allocation6 + $0x290] sm:$0xff]
    %v151 = vld [vmem:[#allocation6 + $0x298] sm:$0xff]
    %v152 = vld [vmem:[#allocation6 + $0x2a0] sm:$0xff]
    %v153 = vld [vmem:[#allocation6 + $0x2a8] sm:$0xff]
    %v154 = vld [vmem:[#allocation6 + $0x2b0] sm:$0xff]
    %v155 = vld [vmem:[#allocation6 + $0x2b8] sm:$0xff]
    %v156 = vld [vmem:[#allocation6 + $0x2c0] sm:$0xff]
    %v157 = vld [vmem:[#allocation6 + $0x2c8] sm:$0xff]
    %v158 = vld [vmem:[#allocation6 + $0x2d0] sm:$0xff]
    %v159 = vld [vmem:[#allocation6 + $0x2d8] sm:$0xff]
    %v160 = vld [vmem:[#allocation6 + $0x2e0] sm:$0xff]
    %v161 = vld [vmem:[#allocation6 + $0x2e8] sm:$0xff]
    %v162 = vld [vmem:[#allocation6 + $0x2f0] sm:$0xff]
    %v163 = vld [vmem:[#allocation6 + $0x2f8] sm:$0xff]
    %v164 = vld [vmem:[#allocation6 + $0x300] sm:$0xff]
    %v165 = vld [vmem:[#allocation6 + $0x308] sm:$0xff]
    %v166 = vld [vmem:[#allocation6 + $0x310] sm:$0xff]
    %v167 = vld [vmem:[#allocation6 + $0x318] sm:$0xff]
    %v168 = vld [vmem:[#allocation6 + $0x320] sm:$0xff]
    %v169 = vld [vmem:[#allocation6 + $0x328] sm:$0xff]
    %v170 = vld [vmem:[#allocation6 + $0x330] sm:$0xff]
    %v171 = vld [vmem:[#allocation6 + $0x338] sm:$0xff]
    %v172 = vld [vmem:[#allocation6 + $0x340] sm:$0xff]
    %v173 = vld [vmem:[#allocation6 + $0x348] sm:$0xff]
    %v174 = vld [vmem:[#allocation6 + $0x350] sm:$0xff]
    %v175 = vld [vmem:[#allocation6 + $0x358] sm:$0xff]
    %v176 = vld [vmem:[#allocation6 + $0x360] sm:$0xff]
    %v177 = vld [vmem:[#allocation6 + $0x368] sm:$0xff]
    %v178 = vld [vmem:[#allocation6 + $0x370] sm:$0xff]
    %v179 = vld [vmem:[#allocation6 + $0x378] sm:$0xff]
    %v180 = vld [vmem:[#allocation6 + $0x380] sm:$0xff]
    %v181 = vld [vmem:[#allocation6 + $0x388] sm:$0xff]
    %v182 = vld [vmem:[#allocation6 + $0x390] sm:$0xff]
    %v183 = vld [vmem:[#allocation6 + $0x398] sm:$0xff]
    %v184 = vld [vmem:[#allocation6 + $0x3a0] sm:$0xff]
    %v185 = vld [vmem:[#allocation6 + $0x3a8] sm:$0xff]
    %v186 = vld [vmem:[#allocation6 + $0x3b0] sm:$0xff]
    %v187 = vld [vmem:[#allocation6 + $0x3b8] sm:$0xff]
    %v188 = vld [vmem:[#allocation6 + $0x3c0] sm:$0xff]
    %v189 = vld [vmem:[#allocation6 + $0x3c8] sm:$0xff]
    %v190 = vld [vmem:[#allocation6 + $0x3d0] sm:$0xff]
    %v191 = vld [vmem:[#allocation6 + $0x3d8] sm:$0xff]
    %v192 = vld [vmem:[#allocation6 + $0x3e0] sm:$0xff]
    %v193 = vld [vmem:[#allocation6 + $0x3e8] sm:$0xff]
    %v194 = vld [vmem:[#allocation6 + $0x3f0] sm:$0xff]
    %v195 = vld [vmem:[#allocation6 + $0x3f8] sm:$0xff]
    %v196 = vld [vmem:[#allocation6 + $0x400] sm:$0xff]
    %v197 = vld [vmem:[#allocation6 + $0x408] sm:$0xff]
    %v198 = vld [vmem:[#allocation6 + $0x410] sm:$0xff]
    %v199 = vld [vmem:[#allocation6 + $0x418] sm:$0xff]
    %v200 = vld [vmem:[%s0] sm:$0xff]
    %v201 = vld [vmem:[%s0 + $0x8] sm:$0xff]
    %v202 = vld [vmem:[%s0 + $0x10] sm:$0xff]
    %v203 = vld [vmem:[%s0 + $0x18] sm:$0xff]
    %v204 = vld [vmem:[%s0 + $0x20] sm:$0xff]
    %v205 = vld [vmem:[%s0 + $0x28] sm:$0xff]
    %v206 = vld [vmem:[%s0 + $0x30] sm:$0xff]
    %v207 = vld [vmem:[%s0 + $0x38] sm:$0xff]
    %vm208 = vcmask 64512
    %v210 = vsel %vm208, %v200, 0
    %v213 = vsel %vm208, %v201, 0
    %v216 = vsel %vm208, %v202, 0
    %v219 = vsel %vm208, %v203, 0
    %v222 = vsel %vm208, %v204, 0
    %v225 = vsel %vm208, %v205, 0
    %v228 = vsel %vm208, %v206, 0
    %v231 = vsel %vm208, %v207, 0
    %233 = vmatprep.subr.mxu0 0.0
    %234 = vmatpush1.msra.mxu0 0.0
    %235 = vmatprep.subr.mxu0 0.0
    %236 = vmatpush1.msra.mxu0 0.0
    %237 = vmatprep.subr.mxu0 0.0
    %238 = vmatpush1.msra.mxu0 0.0
    %239 = vmatprep.subr.mxu0 0.0
    %240 = vmatpush1.msra.mxu0 0.0
    %241 = vmatprep.subr.mxu0 0.0
    %242 = vmatpush1.msra.mxu0 0.0
    %243 = vmatprep.subr.mxu0 0.0
    %244 = vmatpush1.msra.mxu0 0.0
    %245 = vmatprep.subr.mxu0 0.0
    %246 = vmatpush1.msra.mxu0 0.0
    %247 = vmatprep.subr.mxu0 0.0
    %248 = vmatpush1.msra.mxu0 0.0
    %249 = vmatprep.subr.mxu0 0.0
    %250 = vmatpush1.msra.mxu0 0.0
    %251 = vmatprep.subr.mxu0 0.0
    %252 = vmatpush1.msra.mxu0 0.0
    %253 = vmatprep.subr.mxu0 0.0
    %254 = vmatpush1.msra.mxu0 0.0
    %255 = vmatprep.subr.mxu0 0.0
    %256 = vmatpush1.msra.mxu0 0.0
    %257 = vmatprep.subr.mxu0 0.0
    %258 = vmatpush1.msra.mxu0 0.0
    %259 = vmatprep.subr.mxu0 0.0
    %260 = vmatpush1.msra.mxu0 0.0
    %261 = vmatprep.subr.mxu0 0.0
    %262 = vmatpush1.msra.mxu0 0.0
    %263 = vmatprep.subr.mxu0 %v197
    %264 = vmatpush1.msra.mxu0 %v196
    %265 = vmatprep.subr.mxu0 0.0
    %266 = vmatpush2.msra.mxu0 0.0
    %267 = vmatprep.subr.mxu0 0.0
    %268 = vmatpush2.msra.mxu0 0.0
    %269 = vmatprep.subr.mxu0 0.0
    %270 = vmatpush2.msra.mxu0 0.0
    %271 = vmatprep.subr.mxu0 0.0
    %272 = vmatpush2.msra.mxu0 0.0
    %273 = vmatprep.subr.mxu0 0.0
    %274 = vmatpush2.msra.mxu0 0.0
    %275 = vmatprep.subr.mxu0 0.0
    %276 = vmatpush2.msra.mxu0 0.0
    %277 = vmatprep.subr.mxu0 0.0
    %278 = vmatpush2.msra.mxu0 0.0
    %279 = vmatprep.subr.mxu0 0.0
    %280 = vmatpush2.msra.mxu0 0.0
    %281 = vmatprep.subr.mxu0 0.0
    %282 = vmatpush2.msra.mxu0 0.0
    %283 = vmatprep.subr.mxu0 0.0
    %284 = vmatpush2.msra.mxu0 0.0
    %285 = vmatprep.subr.mxu0 0.0
    %286 = vmatpush2.msra.mxu0 0.0
    %287 = vmatprep.subr.mxu0 0.0
    %288 = vmatpush2.msra.mxu0 0.0
    %289 = vmatprep.subr.mxu0 0.0
    %290 = vmatpush2.msra.mxu0 0.0
    %291 = vmatprep.subr.mxu0 0.0
    %292 = vmatpush2.msra.mxu0 0.0
    %293 = vmatprep.subr.mxu0 0.0
    %294 = vmatpush2.msra.mxu0 0.0
    %295 = vmatprep.subr.mxu0 0.0
    %296 = vmatpush2.msra.mxu0 0.0
    %297 = vmatprep.mubr.f32.mxu0 0.0
    %298 = vmatmul.mubr.f32.gmra.mxu0 %v210
    %v299 = vpop.f32.mrf.mxu0
    %v300 = vadd.f32 0.0, %v299
    %v301 = vpop.f32.mrf.mxu0
    %v302 = vadd.f32 0.0, %v301
    %303 = vmatprep.mubr.f32.mxu0 0.0
    %304 = vmatmul.mubr.f32.gmra.mxu0 %v213
    %v305 = vpop.f32.mrf.mxu0
    %v306 = vadd.f32 0.0, %v305
    %v307 = vpop.f32.mrf.mxu0
    %v308 = vadd.f32 0.0, %v307
    %309 = vmatprep.mubr.f32.mxu0 0.0
    %310 = vmatmul.mubr.f32.gmra.mxu0 %v216
    %v311 = vpop.f32.mrf.mxu0
    %v312 = vadd.f32 0.0, %v311
    %v313 = vpop.f32.mrf.mxu0
    %v314 = vadd.f32 0.0, %v313
    %315 = vmatprep.mubr.f32.mxu0 0.0
    %316 = vmatmul.mubr.f32.gmra.mxu0 %v219
    %v317 = vpop.f32.mrf.mxu0
    %v318 = vadd.f32 0.0, %v317
    %v319 = vpop.f32.mrf.mxu0
    %v320 = vadd.f32 0.0, %v319
    %321 = vmatprep.mubr.f32.mxu0 0.0
    %322 = vmatmul.mubr.f32.gmra.mxu0 %v222
    %v323 = vpop.f32.mrf.mxu0
    %v324 = vadd.f32 0.0, %v323
    %v325 = vpop.f32.mrf.mxu0
    %v326 = vadd.f32 0.0, %v325
    %327 = vmatprep.mubr.f32.mxu0 0.0
    %328 = vmatmul.mubr.f32.gmra.mxu0 %v225
    %v329 = vpop.f32.mrf.mxu0
    %v330 = vadd.f32 0.0, %v329
    %v331 = vpop.f32.mrf.mxu0
    %v332 = vadd.f32 0.0, %v331
    %333 = vmatprep.mubr.f32.mxu0 0.0
    %334 = vmatmul.mubr.f32.gmra.mxu0 %v228
    %v335 = vpop.f32.mrf.mxu0
    %v336 = vadd.f32 0.0, %v335
    %v337 = vpop.f32.mrf.mxu0
    %v338 = vadd.f32 0.0, %v337
    %339 = vmatprep.mubr.f32.mxu0 0.0
    %340 = vmatmul.mubr.f32.gmra.mxu0 %v231
    %v341 = vpop.f32.mrf.mxu0
    %v342 = vadd.f32 0.0, %v341
    %v343 = vpop.f32.mrf.mxu0
    %v344 = vadd.f32 0.0, %v343
    %345 = vdwg.mxu0
    %346 = vmatprep.subr.mxu0 0.0
    %347 = vmatpush1.msra.mxu0 0.0
    %348 = vmatprep.subr.mxu0 0.0
    %349 = vmatpush1.msra.mxu0 0.0
    %350 = vmatprep.subr.mxu0 0.0
    %351 = vmatpush1.msra.mxu0 0.0
    %352 = vmatprep.subr.mxu0 0.0
    %353 = vmatpush1.msra.mxu0 0.0
    %354 = vmatprep.subr.mxu0 0.0
    %355 = vmatpush1.msra.mxu0 0.0
    %356 = vmatprep.subr.mxu0 0.0
    %357 = vmatpush1.msra.mxu0 0.0
    %358 = vmatprep.subr.mxu0 0.0
    %359 = vmatpush1.msra.mxu0 0.0
    %360 = vmatprep.subr.mxu0 0.0
    %361 = vmatpush1.msra.mxu0 0.0
    %362 = vmatprep.subr.mxu0 0.0
    %363 = vmatpush1.msra.mxu0 0.0
    %364 = vmatprep.subr.mxu0 0.0
    %365 = vmatpush1.msra.mxu0 0.0
    %366 = vmatprep.subr.mxu0 0.0
    %367 = vmatpush1.msra.mxu0 0.0
    %368 = vmatprep.subr.mxu0 0.0
    %369 = vmatpush1.msra.mxu0 0.0
    %370 = vmatprep.subr.mxu0 0.0
    %371 = vmatpush1.msra.mxu0 0.0
    %372 = vmatprep.subr.mxu0 0.0
    %373 = vmatpush1.msra.mxu0 0.0
    %374 = vmatprep.subr.mxu0 0.0
    %375 = vmatpush1.msra.mxu0 0.0
    %376 = vmatprep.subr.mxu0 %v199
    %377 = vmatpush1.msra.mxu0 %v198
    %378 = vmatprep.subr.mxu0 0.0
    %379 = vmatpush2.msra.mxu0 0.0
    %380 = vmatprep.subr.mxu0 0.0
    %381 = vmatpush2.msra.mxu0 0.0
    %382 = vmatprep.subr.mxu0 0.0
    %383 = vmatpush2.msra.mxu0 0.0
    %384 = vmatprep.subr.mxu0 0.0
    %385 = vmatpush2.msra.mxu0 0.0
    %386 = vmatprep.subr.mxu0 0.0
    %387 = vmatpush2.msra.mxu0 0.0
    %388 = vmatprep.subr.mxu0 0.0
    %389 = vmatpush2.msra.mxu0 0.0
    %390 = vmatprep.subr.mxu0 0.0
    %391 = vmatpush2.msra.mxu0 0.0
    %392 = vmatprep.subr.mxu0 0.0
    %393 = vmatpush2.msra.mxu0 0.0
    %394 = vmatprep.subr.mxu0 0.0
    %395 = vmatpush2.msra.mxu0 0.0
    %396 = vmatprep.subr.mxu0 0.0
    %397 = vmatpush2.msra.mxu0 0.0
    %398 = vmatprep.subr.mxu0 0.0
    %399 = vmatpush2.msra.mxu0 0.0
    %400 = vmatprep.subr.mxu0 0.0
    %401 = vmatpush2.msra.mxu0 0.0
    %402 = vmatprep.subr.mxu0 0.0
    %403 = vmatpush2.msra.mxu0 0.0
    %404 = vmatprep.subr.mxu0 0.0
    %405 = vmatpush2.msra.mxu0 0.0
    %406 = vmatprep.subr.mxu0 0.0
    %407 = vmatpush2.msra.mxu0 0.0
    %408 = vmatprep.subr.mxu0 0.0
    %409 = vmatpush2.msra.mxu0 0.0
    %410 = vmatprep.mubr.f32.mxu0 0.0
    %411 = vmatmul.mubr.f32.gmra.mxu0 %v210
    %v412 = vpop.f32.mrf.mxu0
    %v413 = vadd.f32 0.0, %v412
    %v414 = vpop.f32.mrf.mxu0
    %v415 = vadd.f32 0.0, %v414
    %416 = vmatprep.mubr.f32.mxu0 0.0
    %417 = vmatmul.mubr.f32.gmra.mxu0 %v213
    %v418 = vpop.f32.mrf.mxu0
    %v419 = vadd.f32 0.0, %v418
    %v420 = vpop.f32.mrf.mxu0
    %v421 = vadd.f32 0.0, %v420
    %422 = vmatprep.mubr.f32.mxu0 0.0
    %423 = vmatmul.mubr.f32.gmra.mxu0 %v216
    %v424 = vpop.f32.mrf.mxu0
    %v425 = vadd.f32 0.0, %v424
    %v426 = vpop.f32.mrf.mxu0
    %v427 = vadd.f32 0.0, %v426
    %428 = vmatprep.mubr.f32.mxu0 0.0
    %429 = vmatmul.mubr.f32.gmra.mxu0 %v219
    %v430 = vpop.f32.mrf.mxu0
    %v431 = vadd.f32 0.0, %v430
    %v432 = vpop.f32.mrf.mxu0
    %v433 = vadd.f32 0.0, %v432
    %434 = vmatprep.mubr.f32.mxu0 0.0
    %435 = vmatmul.mubr.f32.gmra.mxu0 %v222
    %v436 = vpop.f32.mrf.mxu0
    %v437 = vadd.f32 0.0, %v436
    %v438 = vpop.f32.mrf.mxu0
    %v439 = vadd.f32 0.0, %v438
    %440 = vmatprep.mubr.f32.mxu0 0.0
    %441 = vmatmul.mubr.f32.gmra.mxu0 %v225
    %v442 = vpop.f32.mrf.mxu0
    %v443 = vadd.f32 0.0, %v442
    %v444 = vpop.f32.mrf.mxu0
    %v445 = vadd.f32 0.0, %v444
    %446 = vmatprep.mubr.f32.mxu0 0.0
    %447 = vmatmul.mubr.f32.gmra.mxu0 %v228
    %v448 = vpop.f32.mrf.mxu0
    %v449 = vadd.f32 0.0, %v448
    %v450 = vpop.f32.mrf.mxu0
    %v451 = vadd.f32 0.0, %v450
    %452 = vmatprep.mubr.f32.mxu0 0.0
    %453 = vmatmul.mubr.f32.gmra.mxu0 %v231
    %v454 = vpop.f32.mrf.mxu0
    %v455 = vadd.f32 0.0, %v454
    %v456 = vpop.f32.mrf.mxu0
    %v457 = vadd.f32 0.0, %v456
    %458 = vdwg.mxu0
    %v459 = vlaneseq
    %v460 = vshrl.u32 %v459, 7
    %vm461 = vcmp.lt.s32.totalorder %v460, 2
    %v462 = vsel %vm461, 1, 0
    %v463 = vcvt.s32.f32 %v462
    %vm464 = vcmp.ge.s32.totalorder %v460, 2
    %vm465 = vcmp.lt.s32.totalorder %v460, 4
    %vm466 = vmand %vm464, %vm465
    %v467 = vsel %vm466, 1, 0
    %v468 = vcvt.s32.f32 %v467
    %v469 = vld [vmem:[#allocation9] sm:$0xff]
    %v470 = vld [vmem:[#allocation9 + $0x8] sm:$0xff]
    %s471 = scalar_lea.vmem [#allocation9], 16
    %v472 = vld [vmem:[%s471] sm:$0xff]
    %473 = vmatprep.subr.mxu0 %v129
    %474 = vmatpush1.msra.mxu0 %v128
    %475 = vmatprep.subr.mxu0 %v125
    %476 = vmatpush1.msra.mxu0 %v124
    %477 = vmatprep.subr.mxu0 %v121
    %478 = vmatpush1.msra.mxu0 %v120
    %479 = vmatprep.subr.mxu0 %v117
    %480 = vmatpush1.msra.mxu0 %v116
    %481 = vmatprep.subr.mxu0 %v113
    %482 = vmatpush1.msra.mxu0 %v112
    %483 = vmatprep.subr.mxu0 %v109
    %484 = vmatpush1.msra.mxu0 %v108
    %485 = vmatprep.subr.mxu0 %v105
    %486 = vmatpush1.msra.mxu0 %v104
    %487 = vmatprep.subr.mxu0 %v101
    %488 = vmatpush1.msra.mxu0 %v100
    %489 = vmatprep.subr.mxu0 %v97
    %490 = vmatpush1.msra.mxu0 %v96
    %491 = vmatprep.subr.mxu0 %v93
    %492 = vmatpush1.msra.mxu0 %v92
    %493 = vmatprep.subr.mxu0 %v89
    %494 = vmatpush1.msra.mxu0 %v88
    %495 = vmatprep.subr.mxu0 %v85
    %496 = vmatpush1.msra.mxu0 %v84
    %497 = vmatprep.subr.mxu0 %v81
    %498 = vmatpush1.msra.mxu0 %v80
    %499 = vmatprep.subr.mxu0 %v77
    %500 = vmatpush1.msra.mxu0 %v76
    %501 = vmatprep.subr.mxu0 %v73
    %502 = vmatpush1.msra.mxu0 %v72
    %503 = vmatprep.subr.mxu0 %v69
    %504 = vmatpush1.msra.mxu0 %v68
    %505 = vmatprep.subr.mxu0 %v193
    %506 = vmatpush2.msra.mxu0 %v192
    %507 = vmatprep.subr.mxu0 %v189
    %508 = vmatpush2.msra.mxu0 %v188
    %509 = vmatprep.subr.mxu0 %v185
    %510 = vmatpush2.msra.mxu0 %v184
    %511 = vmatprep.subr.mxu0 %v181
    %512 = vmatpush2.msra.mxu0 %v180
    %513 = vmatprep.subr.mxu0 %v177
    %514 = vmatpush2.msra.mxu0 %v176
    %515 = vmatprep.subr.mxu0 %v173
    %516 = vmatpush2.msra.mxu0 %v172
    %517 = vmatprep.subr.mxu0 %v169
    %518 = vmatpush2.msra.mxu0 %v168
    %519 = vmatprep.subr.mxu0 %v165
    %520 = vmatpush2.msra.mxu0 %v164
    %521 = vmatprep.subr.mxu0 %v161
    %522 = vmatpush2.msra.mxu0 %v160
    %523 = vmatprep.subr.mxu0 %v157
    %524 = vmatpush2.msra.mxu0 %v156
    %525 = vmatprep.subr.mxu0 %v153
    %526 = vmatpush2.msra.mxu0 %v152
    %527 = vmatprep.subr.mxu0 %v149
    %528 = vmatpush2.msra.mxu0 %v148
    %529 = vmatprep.subr.mxu0 %v145
    %530 = vmatpush2.msra.mxu0 %v144
    %531 = vmatprep.subr.mxu0 %v141
    %532 = vmatpush2.msra.mxu0 %v140
    %533 = vmatprep.subr.mxu0 %v137
    %534 = vmatpush2.msra.mxu0 %v136
    %535 = vmatprep.subr.mxu0 %v133
    %536 = vmatpush2.msra.mxu0 %v132
    %537 = vmatprep.mubr.f32.mxu0 %v470
    %538 = vmatmul.mubr.f32.gmra.mxu0 %v469
    %v539 = vpop.f32.mrf.mxu0
    %v540 = vadd.f32 0.0, %v539
    %v541 = vpop.f32.mrf.mxu0
    %v542 = vadd.f32 0.0, %v541
    %543 = vdwg.mxu0
    %544 = vmatprep.subr.mxu0 %v131
    %545 = vmatpush1.msra.mxu0 %v130
    %546 = vmatprep.subr.mxu0 %v127
    %547 = vmatpush1.msra.mxu0 %v126
    %548 = vmatprep.subr.mxu0 %v123
    %549 = vmatpush1.msra.mxu0 %v122
    %550 = vmatprep.subr.mxu0 %v119
    %551 = vmatpush1.msra.mxu0 %v118
    %552 = vmatprep.subr.mxu0 %v115
    %553 = vmatpush1.msra.mxu0 %v114
    %554 = vmatprep.subr.mxu0 %v111
    %555 = vmatpush1.msra.mxu0 %v110
    %556 = vmatprep.subr.mxu0 %v107
    %557 = vmatpush1.msra.mxu0 %v106
    %558 = vmatprep.subr.mxu0 %v103
    %559 = vmatpush1.msra.mxu0 %v102
    %560 = vmatprep.subr.mxu0 %v99
    %561 = vmatpush1.msra.mxu0 %v98
    %562 = vmatprep.subr.mxu0 %v95
    %563 = vmatpush1.msra.mxu0 %v94
    %564 = vmatprep.subr.mxu0 %v91
    %565 = vmatpush1.msra.mxu0 %v90
    %566 = vmatprep.subr.mxu0 %v87
    %567 = vmatpush1.msra.mxu0 %v86
    %568 = vmatprep.subr.mxu0 %v83
    %569 = vmatpush1.msra.mxu0 %v82
    %570 = vmatprep.subr.mxu0 %v79
    %571 = vmatpush1.msra.mxu0 %v78
    %572 = vmatprep.subr.mxu0 %v75
    %573 = vmatpush1.msra.mxu0 %v74
    %574 = vmatprep.subr.mxu0 %v71
    %575 = vmatpush1.msra.mxu0 %v70
    %576 = vmatprep.subr.mxu0 %v195
    %577 = vmatpush2.msra.mxu0 %v194
    %578 = vmatprep.subr.mxu0 %v191
    %579 = vmatpush2.msra.mxu0 %v190
    %580 = vmatprep.subr.mxu0 %v187
    %581 = vmatpush2.msra.mxu0 %v186
    %582 = vmatprep.subr.mxu0 %v183
    %583 = vmatpush2.msra.mxu0 %v182
    %584 = vmatprep.subr.mxu0 %v179
    %585 = vmatpush2.msra.mxu0 %v178
    %586 = vmatprep.subr.mxu0 %v175
    %587 = vmatpush2.msra.mxu0 %v174
    %588 = vmatprep.subr.mxu0 %v171
    %589 = vmatpush2.msra.mxu0 %v170
    %590 = vmatprep.subr.mxu0 %v167
    %591 = vmatpush2.msra.mxu0 %v166
    %592 = vmatprep.subr.mxu0 %v163
    %593 = vmatpush2.msra.mxu0 %v162
    %594 = vmatprep.subr.mxu0 %v159
    %595 = vmatpush2.msra.mxu0 %v158
    %596 = vmatprep.subr.mxu0 %v155
    %597 = vmatpush2.msra.mxu0 %v154
    %598 = vmatprep.subr.mxu0 %v151
    %599 = vmatpush2.msra.mxu0 %v150
    %600 = vmatprep.subr.mxu0 %v147
    %601 = vmatpush2.msra.mxu0 %v146
    %602 = vmatprep.subr.mxu0 %v143
    %603 = vmatpush2.msra.mxu0 %v142
    %604 = vmatprep.subr.mxu0 %v139
    %605 = vmatpush2.msra.mxu0 %v138
    %606 = vmatprep.subr.mxu0 %v135
    %607 = vmatpush2.msra.mxu0 %v134
    %608 = vmatprep.mubr.f32.mxu0 %v470
    %609 = vmatmul.mubr.f32.gmra.mxu0 %v469
    %v610 = vpop.f32.mrf.mxu0
    %v611 = vadd.f32 0.0, %v610
    %v612 = vpop.f32.mrf.mxu0
    %v613 = vadd.f32 0.0, %v612
    %614 = vdwg.mxu0
    %v615 = vadd.f32 %v300, %v540
    %v616 = vadd.f32 %v302, %v542
    %v617 = vadd.f32 %v413, %v611
    %v618 = vadd.f32 %v415, %v613
    %v619 = vxor.u32 %v615, 2147483648
    %v620 = vmul.f32 %v619, 1.442695
    %v621 = vpow.pop %v620
    %v622 = vadd.f32 %v621, 1.0
    %v623 = vrcp.pop %v622
    %v624 = vmul.f32 1.0, %v623
    %v625 = vxor.u32 %v616, 2147483648
    %v626 = vmul.f32 %v625, 1.442695
    %v627 = vpow.pop %v626
    %v628 = vadd.f32 %v627, 1.0
    %v629 = vrcp.pop %v628
    %v630 = vmul.f32 1.0, %v629
    %v631 = vtanh.pop %v617
    %v632 = vxor.u32 %v618, 2147483648
    %v633 = vmul.f32 %v632, 1.442695
    %v634 = vpow.pop %v633
    %v635 = vadd.f32 %v634, 1.0
    %v636 = vrcp.pop %v635
    %v637 = vmul.f32 1.0, %v636
    %v638 = vmul.f32 %v630, %v472
    %v639 = vmul.f32 %v624, %v631
    %v640 = vadd.f32 %v638, %v639
    %v641 = vtanh.pop %v640
    %v642 = vmul.f32 %v637, %v641
    %v643 = vmul.f32 %v642, %v463
    %v644 = vmul.f32 %v642, %v468
    %645 = vst [vmem:[#allocation4] sm:$0x3] %v642
    %v647 = vrot.slane %v642, 2
    %s649 = scalar_lea.vmem [#allocation4], 112
    %650 = vst [vmem:[%s649 + $0x8] sm:$0x3] %v647
    %651 = vmatprep.subr.mxu0 %v129
    %652 = vmatpush1.msra.mxu0 %v128
    %653 = vmatprep.subr.mxu0 %v125
    %654 = vmatpush1.msra.mxu0 %v124
    %655 = vmatprep.subr.mxu0 %v121
    %656 = vmatpush1.msra.mxu0 %v120
    %657 = vmatprep.subr.mxu0 %v117
    %658 = vmatpush1.msra.mxu0 %v116
    %659 = vmatprep.subr.mxu0 %v113
    %660 = vmatpush1.msra.mxu0 %v112
    %661 = vmatprep.subr.mxu0 %v109
    %662 = vmatpush1.msra.mxu0 %v108
    %663 = vmatprep.subr.mxu0 %v105
    %664 = vmatpush1.msra.mxu0 %v104
    %665 = vmatprep.subr.mxu0 %v101
    %666 = vmatpush1.msra.mxu0 %v100
    %667 = vmatprep.subr.mxu0 %v97
    %668 = vmatpush1.msra.mxu0 %v96
    %669 = vmatprep.subr.mxu0 %v93
    %670 = vmatpush1.msra.mxu0 %v92
    %671 = vmatprep.subr.mxu0 %v89
    %672 = vmatpush1.msra.mxu0 %v88
    %673 = vmatprep.subr.mxu0 %v85
    %674 = vmatpush1.msra.mxu0 %v84
    %675 = vmatprep.subr.mxu0 %v81
    %676 = vmatpush1.msra.mxu0 %v80
    %677 = vmatprep.subr.mxu0 %v77
    %678 = vmatpush1.msra.mxu0 %v76
    %679 = vmatprep.subr.mxu0 %v73
    %680 = vmatpush1.msra.mxu0 %v72
    %681 = vmatprep.subr.mxu0 %v69
    %682 = vmatpush1.msra.mxu0 %v68
    %683 = vmatprep.subr.mxu0 %v193
    %684 = vmatpush2.msra.mxu0 %v192
    %685 = vmatprep.subr.mxu0 %v189
    %686 = vmatpush2.msra.mxu0 %v188
    %687 = vmatprep.subr.mxu0 %v185
    %688 = vmatpush2.msra.mxu0 %v184
    %689 = vmatprep.subr.mxu0 %v181
    %690 = vmatpush2.msra.mxu0 %v180
    %691 = vmatprep.subr.mxu0 %v177
    %692 = vmatpush2.msra.mxu0 %v176
    %693 = vmatprep.subr.mxu0 %v173
    %694 = vmatpush2.msra.mxu0 %v172
    %695 = vmatprep.subr.mxu0 %v169
    %696 = vmatpush2.msra.mxu0 %v168
    %697 = vmatprep.subr.mxu0 %v165
    %698 = vmatpush2.msra.mxu0 %v164
    %699 = vmatprep.subr.mxu0 %v161
    %700 = vmatpush2.msra.mxu0 %v160
    %701 = vmatprep.subr.mxu0 %v157
    %702 = vmatpush2.msra.mxu0 %v156
    %703 = vmatprep.subr.mxu0 %v153
    %704 = vmatpush2.msra.mxu0 %v152
    %705 = vmatprep.subr.mxu0 %v149
    %706 = vmatpush2.msra.mxu0 %v148
    %707 = vmatprep.subr.mxu0 %v145
    %708 = vmatpush2.msra.mxu0 %v144
    %709 = vmatprep.subr.mxu0 %v141
    %710 = vmatpush2.msra.mxu0 %v140
    %711 = vmatprep.subr.mxu0 %v137
    %712 = vmatpush2.msra.mxu0 %v136
    %713 = vmatprep.subr.mxu0 %v133
    %714 = vmatpush2.msra.mxu0 %v132
    %715 = vmatprep.mubr.f32.mxu0 %v644
    %716 = vmatmul.mubr.f32.gmra.mxu0 %v643
    %v717 = vpop.f32.mrf.mxu0
    %v718 = vadd.f32 0.0, %v717
    %v719 = vpop.f32.mrf.mxu0
    %v720 = vadd.f32 0.0, %v719
    %721 = vdwg.mxu0
    %722 = vmatprep.subr.mxu0 %v131
    %723 = vmatpush1.msra.mxu0 %v130
    %724 = vmatprep.subr.mxu0 %v127
    %725 = vmatpush1.msra.mxu0 %v126
    %726 = vmatprep.subr.mxu0 %v123
    %727 = vmatpush1.msra.mxu0 %v122
    %728 = vmatprep.subr.mxu0 %v119
    %729 = vmatpush1.msra.mxu0 %v118
    %730 = vmatprep.subr.mxu0 %v115
    %731 = vmatpush1.msra.mxu0 %v114
    %732 = vmatprep.subr.mxu0 %v111
    %733 = vmatpush1.msra.mxu0 %v110
    %734 = vmatprep.subr.mxu0 %v107
    %735 = vmatpush1.msra.mxu0 %v106
    %736 = vmatprep.subr.mxu0 %v103
    %737 = vmatpush1.msra.mxu0 %v102
    %738 = vmatprep.subr.mxu0 %v99
    %739 = vmatpush1.msra.mxu0 %v98
    %740 = vmatprep.subr.mxu0 %v95
    %741 = vmatpush1.msra.mxu0 %v94
    %742 = vmatprep.subr.mxu0 %v91
    %743 = vmatpush1.msra.mxu0 %v90
    %744 = vmatprep.subr.mxu0 %v87
    %745 = vmatpush1.msra.mxu0 %v86
    %746 = vmatprep.subr.mxu0 %v83
    %747 = vmatpush1.msra.mxu0 %v82
    %748 = vmatprep.subr.mxu0 %v79
    %749 = vmatpush1.msra.mxu0 %v78
    %750 = vmatprep.subr.mxu0 %v75
    %751 = vmatpush1.msra.mxu0 %v74
    %752 = vmatprep.subr.mxu0 %v71
    %753 = vmatpush1.msra.mxu0 %v70
    %754 = vmatprep.subr.mxu0 %v195
    %755 = vmatpush2.msra.mxu0 %v194
    %756 = vmatprep.subr.mxu0 %v191
    %757 = vmatpush2.msra.mxu0 %v190
    %758 = vmatprep.subr.mxu0 %v187
    %759 = vmatpush2.msra.mxu0 %v186
    %760 = vmatprep.subr.mxu0 %v183
    %761 = vmatpush2.msra.mxu0 %v182
    %762 = vmatprep.subr.mxu0 %v179
    %763 = vmatpush2.msra.mxu0 %v178
    %764 = vmatprep.subr.mxu0 %v175
    %765 = vmatpush2.msra.mxu0 %v174
    %766 = vmatprep.subr.mxu0 %v171
    %767 = vmatpush2.msra.mxu0 %v170
    %768 = vmatprep.subr.mxu0 %v167
    %769 = vmatpush2.msra.mxu0 %v166
    %770 = vmatprep.subr.mxu0 %v163
    %771 = vmatpush2.msra.mxu0 %v162
    %772 = vmatprep.subr.mxu0 %v159
    %773 = vmatpush2.msra.mxu0 %v158
    %774 = vmatprep.subr.mxu0 %v155
    %775 = vmatpush2.msra.mxu0 %v154
    %776 = vmatprep.subr.mxu0 %v151
    %777 = vmatpush2.msra.mxu0 %v150
    %778 = vmatprep.subr.mxu0 %v147
    %779 = vmatpush2.msra.mxu0 %v146
    %780 = vmatprep.subr.mxu0 %v143
    %781 = vmatpush2.msra.mxu0 %v142
    %782 = vmatprep.subr.mxu0 %v139
    %783 = vmatpush2.msra.mxu0 %v138
    %784 = vmatprep.subr.mxu0 %v135
    %785 = vmatpush2.msra.mxu0 %v134
    %786 = vmatprep.mubr.f32.mxu0 %v644
    %787 = vmatmul.mubr.f32.gmra.mxu0 %v643
    %v788 = vpop.f32.mrf.mxu0
    %v789 = vadd.f32 0.0, %v788
    %v790 = vpop.f32.mrf.mxu0
    %v791 = vadd.f32 0.0, %v790
    %792 = vdwg.mxu0
    %v793 = vadd.f32 %v306, %v718
    %v794 = vadd.f32 %v308, %v720
    %v795 = vadd.f32 %v419, %v789
    %v796 = vadd.f32 %v421, %v791
    %v797 = vxor.u32 %v793, 2147483648
    %v798 = vmul.f32 %v797, 1.442695
    %v799 = vpow.pop %v798
    %v800 = vadd.f32 %v799, 1.0
    %v801 = vrcp.pop %v800
    %v802 = vmul.f32 1.0, %v801
    %v803 = vxor.u32 %v794, 2147483648
    %v804 = vmul.f32 %v803, 1.442695
    %v805 = vpow.pop %v804
    %v806 = vadd.f32 %v805, 1.0
    %v807 = vrcp.pop %v806
    %v808 = vmul.f32 1.0, %v807
    %v809 = vtanh.pop %v795
    %v810 = vxor.u32 %v796, 2147483648
    %v811 = vmul.f32 %v810, 1.442695
    %v812 = vpow.pop %v811
    %v813 = vadd.f32 %v812, 1.0
    %v814 = vrcp.pop %v813
    %v815 = vmul.f32 1.0, %v814
    %v816 = vmul.f32 %v808, %v640
    %v817 = vmul.f32 %v802, %v809
    %v818 = vadd.f32 %v816, %v817
    %v819 = vtanh.pop %v818
    %v820 = vmul.f32 %v815, %v819
    %v821 = vmul.f32 %v820, %v463
    %v822 = vmul.f32 %v820, %v468
    %s823 = scalar_lea.vmem [#allocation4], 16
    %824 = vst [vmem:[%s823] sm:$0x3] %v820
    %v826 = vrot.slane %v820, 2
    %s828 = scalar_lea.vmem [#allocation4], 96
    %829 = vst [vmem:[%s828 + $0x8] sm:$0x3] %v826
    %830 = vmatprep.subr.mxu0 %v129
    %831 = vmatpush1.msra.mxu0 %v128
    %832 = vmatprep.subr.mxu0 %v125
    %833 = vmatpush1.msra.mxu0 %v124
    %834 = vmatprep.subr.mxu0 %v121
    %835 = vmatpush1.msra.mxu0 %v120
    %836 = vmatprep.subr.mxu0 %v117
    %837 = vmatpush1.msra.mxu0 %v116
    %838 = vmatprep.subr.mxu0 %v113
    %839 = vmatpush1.msra.mxu0 %v112
    %840 = vmatprep.subr.mxu0 %v109
    %841 = vmatpush1.msra.mxu0 %v108
    %842 = vmatprep.subr.mxu0 %v105
    %843 = vmatpush1.msra.mxu0 %v104
    %844 = vmatprep.subr.mxu0 %v101
    %845 = vmatpush1.msra.mxu0 %v100
    %846 = vmatprep.subr.mxu0 %v97
    %847 = vmatpush1.msra.mxu0 %v96
    %848 = vmatprep.subr.mxu0 %v93
    %849 = vmatpush1.msra.mxu0 %v92
    %850 = vmatprep.subr.mxu0 %v89
    %851 = vmatpush1.msra.mxu0 %v88
    %852 = vmatprep.subr.mxu0 %v85
    %853 = vmatpush1.msra.mxu0 %v84
    %854 = vmatprep.subr.mxu0 %v81
    %855 = vmatpush1.msra.mxu0 %v80
    %856 = vmatprep.subr.mxu0 %v77
    %857 = vmatpush1.msra.mxu0 %v76
    %858 = vmatprep.subr.mxu0 %v73
    %859 = vmatpush1.msra.mxu0 %v72
    %860 = vmatprep.subr.mxu0 %v69
    %861 = vmatpush1.msra.mxu0 %v68
    %862 = vmatprep.subr.mxu0 %v193
    %863 = vmatpush2.msra.mxu0 %v192
    %864 = vmatprep.subr.mxu0 %v189
    %865 = vmatpush2.msra.mxu0 %v188
    %866 = vmatprep.subr.mxu0 %v185
    %867 = vmatpush2.msra.mxu0 %v184
    %868 = vmatprep.subr.mxu0 %v181
    %869 = vmatpush2.msra.mxu0 %v180
    %870 = vmatprep.subr.mxu0 %v177
    %871 = vmatpush2.msra.mxu0 %v176
    %872 = vmatprep.subr.mxu0 %v173
    %873 = vmatpush2.msra.mxu0 %v172
    %874 = vmatprep.subr.mxu0 %v169
    %875 = vmatpush2.msra.mxu0 %v168
    %876 = vmatprep.subr.mxu0 %v165
    %877 = vmatpush2.msra.mxu0 %v164
    %878 = vmatprep.subr.mxu0 %v161
    %879 = vmatpush2.msra.mxu0 %v160
    %880 = vmatprep.subr.mxu0 %v157
    %881 = vmatpush2.msra.mxu0 %v156
    %882 = vmatprep.subr.mxu0 %v153
    %883 = vmatpush2.msra.mxu0 %v152
    %884 = vmatprep.subr.mxu0 %v149
    %885 = vmatpush2.msra.mxu0 %v148
    %886 = vmatprep.subr.mxu0 %v145
    %887 = vmatpush2.msra.mxu0 %v144
    %888 = vmatprep.subr.mxu0 %v141
    %889 = vmatpush2.msra.mxu0 %v140
    %890 = vmatprep.subr.mxu0 %v137
    %891 = vmatpush2.msra.mxu0 %v136
    %892 = vmatprep.subr.mxu0 %v133
    %893 = vmatpush2.msra.mxu0 %v132
    %894 = vmatprep.mubr.f32.mxu0 %v822
    %895 = vmatmul.mubr.f32.gmra.mxu0 %v821
    %v896 = vpop.f32.mrf.mxu0
    %v897 = vadd.f32 0.0, %v896
    %v898 = vpop.f32.mrf.mxu0
    %v899 = vadd.f32 0.0, %v898
    %900 = vdwg.mxu0
    %901 = vmatprep.subr.mxu0 %v131
    %902 = vmatpush1.msra.mxu0 %v130
    %903 = vmatprep.subr.mxu0 %v127
    %904 = vmatpush1.msra.mxu0 %v126
    %905 = vmatprep.subr.mxu0 %v123
    %906 = vmatpush1.msra.mxu0 %v122
    %907 = vmatprep.subr.mxu0 %v119
    %908 = vmatpush1.msra.mxu0 %v118
    %909 = vmatprep.subr.mxu0 %v115
    %910 = vmatpush1.msra.mxu0 %v114
    %911 = vmatprep.subr.mxu0 %v111
    %912 = vmatpush1.msra.mxu0 %v110
    %913 = vmatprep.subr.mxu0 %v107
    %914 = vmatpush1.msra.mxu0 %v106
    %915 = vmatprep.subr.mxu0 %v103
    %916 = vmatpush1.msra.mxu0 %v102
    %917 = vmatprep.subr.mxu0 %v99
    %918 = vmatpush1.msra.mxu0 %v98
    %919 = vmatprep.subr.mxu0 %v95
    %920 = vmatpush1.msra.mxu0 %v94
    %921 = vmatprep.subr.mxu0 %v91
    %922 = vmatpush1.msra.mxu0 %v90
    %923 = vmatprep.subr.mxu0 %v87
    %924 = vmatpush1.msra.mxu0 %v86
    %925 = vmatprep.subr.mxu0 %v83
    %926 = vmatpush1.msra.mxu0 %v82
    %927 = vmatprep.subr.mxu0 %v79
    %928 = vmatpush1.msra.mxu0 %v78
    %929 = vmatprep.subr.mxu0 %v75
    %930 = vmatpush1.msra.mxu0 %v74
    %931 = vmatprep.subr.mxu0 %v71
    %932 = vmatpush1.msra.mxu0 %v70
    %933 = vmatprep.subr.mxu0 %v195
    %934 = vmatpush2.msra.mxu0 %v194
    %935 = vmatprep.subr.mxu0 %v191
    %936 = vmatpush2.msra.mxu0 %v190
    %937 = vmatprep.subr.mxu0 %v187
    %938 = vmatpush2.msra.mxu0 %v186
    %939 = vmatprep.subr.mxu0 %v183
    %940 = vmatpush2.msra.mxu0 %v182
    %941 = vmatprep.subr.mxu0 %v179
    %942 = vmatpush2.msra.mxu0 %v178
    %943 = vmatprep.subr.mxu0 %v175
    %944 = vmatpush2.msra.mxu0 %v174
    %945 = vmatprep.subr.mxu0 %v171
    %946 = vmatpush2.msra.mxu0 %v170
    %947 = vmatprep.subr.mxu0 %v167
    %948 = vmatpush2.msra.mxu0 %v166
    %949 = vmatprep.subr.mxu0 %v163
    %950 = vmatpush2.msra.mxu0 %v162
    %951 = vmatprep.subr.mxu0 %v159
    %952 = vmatpush2.msra.mxu0 %v158
    %953 = vmatprep.subr.mxu0 %v155
    %954 = vmatpush2.msra.mxu0 %v154
    %955 = vmatprep.subr.mxu0 %v151
    %956 = vmatpush2.msra.mxu0 %v150
    %957 = vmatprep.subr.mxu0 %v147
    %958 = vmatpush2.msra.mxu0 %v146
    %959 = vmatprep.subr.mxu0 %v143
    %960 = vmatpush2.msra.mxu0 %v142
    %961 = vmatprep.subr.mxu0 %v139
    %962 = vmatpush2.msra.mxu0 %v138
    %963 = vmatprep.subr.mxu0 %v135
    %964 = vmatpush2.msra.mxu0 %v134
    %965 = vmatprep.mubr.f32.mxu0 %v822
    %966 = vmatmul.mubr.f32.gmra.mxu0 %v821
    %v967 = vpop.f32.mrf.mxu0
    %v968 = vadd.f32 0.0, %v967
    %v969 = vpop.f32.mrf.mxu0
    %v970 = vadd.f32 0.0, %v969
    %971 = vdwg.mxu0
    %v972 = vadd.f32 %v312, %v897
    %v973 = vadd.f32 %v314, %v899
    %v974 = vadd.f32 %v425, %v968
    %v975 = vadd.f32 %v427, %v970
    %v976 = vxor.u32 %v972, 2147483648
    %v977 = vmul.f32 %v976, 1.442695
    %v978 = vpow.pop %v977
    %v979 = vadd.f32 %v978, 1.0
    %v980 = vrcp.pop %v979
    %v981 = vmul.f32 1.0, %v980
    %v982 = vxor.u32 %v973, 2147483648
    %v983 = vmul.f32 %v982, 1.442695
    %v984 = vpow.pop %v983
    %v985 = vadd.f32 %v984, 1.0
    %v986 = vrcp.pop %v985
    %v987 = vmul.f32 1.0, %v986
    %v988 = vtanh.pop %v974
    %v989 = vxor.u32 %v975, 2147483648
    %v990 = vmul.f32 %v989, 1.442695
    %v991 = vpow.pop %v990
    %v992 = vadd.f32 %v991, 1.0
    %v993 = vrcp.pop %v992
    %v994 = vmul.f32 1.0, %v993
    %v995 = vmul.f32 %v987, %v818
    %v996 = vmul.f32 %v981, %v988
    %v997 = vadd.f32 %v995, %v996
    %v998 = vtanh.pop %v997
    %v999 = vmul.f32 %v994, %v998
    %v1000 = vmul.f32 %v999, %v463
    %v1001 = vmul.f32 %v999, %v468
    %s1002 = scalar_lea.vmem [#allocation4], 32
    %1003 = vst [vmem:[%s1002] sm:$0x3] %v999
    %v1005 = vrot.slane %v999, 2
    %s1007 = scalar_lea.vmem [#allocation4], 80
    %1008 = vst [vmem:[%s1007 + $0x8] sm:$0x3] %v1005
    %1009 = vmatprep.subr.mxu0 %v129
    %1010 = vmatpush1.msra.mxu0 %v128
    %1011 = vmatprep.subr.mxu0 %v125
    %1012 = vmatpush1.msra.mxu0 %v124
    %1013 = vmatprep.subr.mxu0 %v121
    %1014 = vmatpush1.msra.mxu0 %v120
    %1015 = vmatprep.subr.mxu0 %v117
    %1016 = vmatpush1.msra.mxu0 %v116
    %1017 = vmatprep.subr.mxu0 %v113
    %1018 = vmatpush1.msra.mxu0 %v112
    %1019 = vmatprep.subr.mxu0 %v109
    %1020 = vmatpush1.msra.mxu0 %v108
    %1021 = vmatprep.subr.mxu0 %v105
    %1022 = vmatpush1.msra.mxu0 %v104
    %1023 = vmatprep.subr.mxu0 %v101
    %1024 = vmatpush1.msra.mxu0 %v100
    %1025 = vmatprep.subr.mxu0 %v97
    %1026 = vmatpush1.msra.mxu0 %v96
    %1027 = vmatprep.subr.mxu0 %v93
    %1028 = vmatpush1.msra.mxu0 %v92
    %1029 = vmatprep.subr.mxu0 %v89
    %1030 = vmatpush1.msra.mxu0 %v88
    %1031 = vmatprep.subr.mxu0 %v85
    %1032 = vmatpush1.msra.mxu0 %v84
    %1033 = vmatprep.subr.mxu0 %v81
    %1034 = vmatpush1.msra.mxu0 %v80
    %1035 = vmatprep.subr.mxu0 %v77
    %1036 = vmatpush1.msra.mxu0 %v76
    %1037 = vmatprep.subr.mxu0 %v73
    %1038 = vmatpush1.msra.mxu0 %v72
    %1039 = vmatprep.subr.mxu0 %v69
    %1040 = vmatpush1.msra.mxu0 %v68
    %1041 = vmatprep.subr.mxu0 %v193
    %1042 = vmatpush2.msra.mxu0 %v192
    %1043 = vmatprep.subr.mxu0 %v189
    %1044 = vmatpush2.msra.mxu0 %v188
    %1045 = vmatprep.subr.mxu0 %v185
    %1046 = vmatpush2.msra.mxu0 %v184
    %1047 = vmatprep.subr.mxu0 %v181
    %1048 = vmatpush2.msra.mxu0 %v180
    %1049 = vmatprep.subr.mxu0 %v177
    %1050 = vmatpush2.msra.mxu0 %v176
    %1051 = vmatprep.subr.mxu0 %v173
    %1052 = vmatpush2.msra.mxu0 %v172
    %1053 = vmatprep.subr.mxu0 %v169
    %1054 = vmatpush2.msra.mxu0 %v168
    %1055 = vmatprep.subr.mxu0 %v165
    %1056 = vmatpush2.msra.mxu0 %v164
    %1057 = vmatprep.subr.mxu0 %v161
    %1058 = vmatpush2.msra.mxu0 %v160
    %1059 = vmatprep.subr.mxu0 %v157
    %1060 = vmatpush2.msra.mxu0 %v156
    %1061 = vmatprep.subr.mxu0 %v153
    %1062 = vmatpush2.msra.mxu0 %v152
    %1063 = vmatprep.subr.mxu0 %v149
    %1064 = vmatpush2.msra.mxu0 %v148
    %1065 = vmatprep.subr.mxu0 %v145
    %1066 = vmatpush2.msra.mxu0 %v144
    %1067 = vmatprep.subr.mxu0 %v141
    %1068 = vmatpush2.msra.mxu0 %v140
    %1069 = vmatprep.subr.mxu0 %v137
    %1070 = vmatpush2.msra.mxu0 %v136
    %1071 = vmatprep.subr.mxu0 %v133
    %1072 = vmatpush2.msra.mxu0 %v132
    %1073 = vmatprep.mubr.f32.mxu0 %v1001
    %1074 = vmatmul.mubr.f32.gmra.mxu0 %v1000
    %v1075 = vpop.f32.mrf.mxu0
    %v1076 = vadd.f32 0.0, %v1075
    %v1077 = vpop.f32.mrf.mxu0
    %v1078 = vadd.f32 0.0, %v1077
    %1079 = vdwg.mxu0
    %1080 = vmatprep.subr.mxu0 %v131
    %1081 = vmatpush1.msra.mxu0 %v130
    %1082 = vmatprep.subr.mxu0 %v127
    %1083 = vmatpush1.msra.mxu0 %v126
    %1084 = vmatprep.subr.mxu0 %v123
    %1085 = vmatpush1.msra.mxu0 %v122
    %1086 = vmatprep.subr.mxu0 %v119
    %1087 = vmatpush1.msra.mxu0 %v118
    %1088 = vmatprep.subr.mxu0 %v115
    %1089 = vmatpush1.msra.mxu0 %v114
    %1090 = vmatprep.subr.mxu0 %v111
    %1091 = vmatpush1.msra.mxu0 %v110
    %1092 = vmatprep.subr.mxu0 %v107
    %1093 = vmatpush1.msra.mxu0 %v106
    %1094 = vmatprep.subr.mxu0 %v103
    %1095 = vmatpush1.msra.mxu0 %v102
    %1096 = vmatprep.subr.mxu0 %v99
    %1097 = vmatpush1.msra.mxu0 %v98
    %1098 = vmatprep.subr.mxu0 %v95
    %1099 = vmatpush1.msra.mxu0 %v94
    %1100 = vmatprep.subr.mxu0 %v91
    %1101 = vmatpush1.msra.mxu0 %v90
    %1102 = vmatprep.subr.mxu0 %v87
    %1103 = vmatpush1.msra.mxu0 %v86
    %1104 = vmatprep.subr.mxu0 %v83
    %1105 = vmatpush1.msra.mxu0 %v82
    %1106 = vmatprep.subr.mxu0 %v79
    %1107 = vmatpush1.msra.mxu0 %v78
    %1108 = vmatprep.subr.mxu0 %v75
    %1109 = vmatpush1.msra.mxu0 %v74
    %1110 = vmatprep.subr.mxu0 %v71
    %1111 = vmatpush1.msra.mxu0 %v70
    %1112 = vmatprep.subr.mxu0 %v195
    %1113 = vmatpush2.msra.mxu0 %v194
    %1114 = vmatprep.subr.mxu0 %v191
    %1115 = vmatpush2.msra.mxu0 %v190
    %1116 = vmatprep.subr.mxu0 %v187
    %1117 = vmatpush2.msra.mxu0 %v186
    %1118 = vmatprep.subr.mxu0 %v183
    %1119 = vmatpush2.msra.mxu0 %v182
    %1120 = vmatprep.subr.mxu0 %v179
    %1121 = vmatpush2.msra.mxu0 %v178
    %1122 = vmatprep.subr.mxu0 %v175
    %1123 = vmatpush2.msra.mxu0 %v174
    %1124 = vmatprep.subr.mxu0 %v171
    %1125 = vmatpush2.msra.mxu0 %v170
    %1126 = vmatprep.subr.mxu0 %v167
    %1127 = vmatpush2.msra.mxu0 %v166
    %1128 = vmatprep.subr.mxu0 %v163
    %1129 = vmatpush2.msra.mxu0 %v162
    %1130 = vmatprep.subr.mxu0 %v159
    %1131 = vmatpush2.msra.mxu0 %v158
    %1132 = vmatprep.subr.mxu0 %v155
    %1133 = vmatpush2.msra.mxu0 %v154
    %1134 = vmatprep.subr.mxu0 %v151
    %1135 = vmatpush2.msra.mxu0 %v150
    %1136 = vmatprep.subr.mxu0 %v147
    %1137 = vmatpush2.msra.mxu0 %v146
    %1138 = vmatprep.subr.mxu0 %v143
    %1139 = vmatpush2.msra.mxu0 %v142
    %1140 = vmatprep.subr.mxu0 %v139
    %1141 = vmatpush2.msra.mxu0 %v138
    %1142 = vmatprep.subr.mxu0 %v135
    %1143 = vmatpush2.msra.mxu0 %v134
    %1144 = vmatprep.mubr.f32.mxu0 %v1001
    %1145 = vmatmul.mubr.f32.gmra.mxu0 %v1000
    %v1146 = vpop.f32.mrf.mxu0
    %v1147 = vadd.f32 0.0, %v1146
    %v1148 = vpop.f32.mrf.mxu0
    %v1149 = vadd.f32 0.0, %v1148
    %1150 = vdwg.mxu0
    %v1151 = vadd.f32 %v318, %v1076
    %v1152 = vadd.f32 %v320, %v1078
    %v1153 = vadd.f32 %v431, %v1147
    %v1154 = vadd.f32 %v433, %v1149
    %v1155 = vxor.u32 %v1151, 2147483648
    %v1156 = vmul.f32 %v1155, 1.442695
    %v1157 = vpow.pop %v1156
    %v1158 = vadd.f32 %v1157, 1.0
    %v1159 = vrcp.pop %v1158
    %v1160 = vmul.f32 1.0, %v1159
    %v1161 = vxor.u32 %v1152, 2147483648
    %v1162 = vmul.f32 %v1161, 1.442695
    %v1163 = vpow.pop %v1162
    %v1164 = vadd.f32 %v1163, 1.0
    %v1165 = vrcp.pop %v1164
    %v1166 = vmul.f32 1.0, %v1165
    %v1167 = vtanh.pop %v1153
    %v1168 = vxor.u32 %v1154, 2147483648
    %v1169 = vmul.f32 %v1168, 1.442695
    %v1170 = vpow.pop %v1169
    %v1171 = vadd.f32 %v1170, 1.0
    %v1172 = vrcp.pop %v1171
    %v1173 = vmul.f32 1.0, %v1172
    %v1174 = vmul.f32 %v1166, %v997
    %v1175 = vmul.f32 %v1160, %v1167
    %v1176 = vadd.f32 %v1174, %v1175
    %v1177 = vtanh.pop %v1176
    %v1178 = vmul.f32 %v1173, %v1177
    %v1179 = vmul.f32 %v1178, %v463
    %v1180 = vmul.f32 %v1178, %v468
    %s1181 = scalar_lea.vmem [#allocation4], 48
    %1182 = vst [vmem:[%s1181] sm:$0x3] %v1178
    %v1184 = vrot.slane %v1178, 2
    %s1186 = scalar_lea.vmem [#allocation4], 64
    %1187 = vst [vmem:[%s1186 + $0x8] sm:$0x3] %v1184
    %1188 = vmatprep.subr.mxu0 %v129
    %1189 = vmatpush1.msra.mxu0 %v128
    %1190 = vmatprep.subr.mxu0 %v125
    %1191 = vmatpush1.msra.mxu0 %v124
    %1192 = vmatprep.subr.mxu0 %v121
    %1193 = vmatpush1.msra.mxu0 %v120
    %1194 = vmatprep.subr.mxu0 %v117
    %1195 = vmatpush1.msra.mxu0 %v116
    %1196 = vmatprep.subr.mxu0 %v113
    %1197 = vmatpush1.msra.mxu0 %v112
    %1198 = vmatprep.subr.mxu0 %v109
    %1199 = vmatpush1.msra.mxu0 %v108
    %1200 = vmatprep.subr.mxu0 %v105
    %1201 = vmatpush1.msra.mxu0 %v104
    %1202 = vmatprep.subr.mxu0 %v101
    %1203 = vmatpush1.msra.mxu0 %v100
    %1204 = vmatprep.subr.mxu0 %v97
    %1205 = vmatpush1.msra.mxu0 %v96
    %1206 = vmatprep.subr.mxu0 %v93
    %1207 = vmatpush1.msra.mxu0 %v92
    %1208 = vmatprep.subr.mxu0 %v89
    %1209 = vmatpush1.msra.mxu0 %v88
    %1210 = vmatprep.subr.mxu0 %v85
    %1211 = vmatpush1.msra.mxu0 %v84
    %1212 = vmatprep.subr.mxu0 %v81
    %1213 = vmatpush1.msra.mxu0 %v80
    %1214 = vmatprep.subr.mxu0 %v77
    %1215 = vmatpush1.msra.mxu0 %v76
    %1216 = vmatprep.subr.mxu0 %v73
    %1217 = vmatpush1.msra.mxu0 %v72
    %1218 = vmatprep.subr.mxu0 %v69
    %1219 = vmatpush1.msra.mxu0 %v68
    %1220 = vmatprep.subr.mxu0 %v193
    %1221 = vmatpush2.msra.mxu0 %v192
    %1222 = vmatprep.subr.mxu0 %v189
    %1223 = vmatpush2.msra.mxu0 %v188
    %1224 = vmatprep.subr.mxu0 %v185
    %1225 = vmatpush2.msra.mxu0 %v184
    %1226 = vmatprep.subr.mxu0 %v181
    %1227 = vmatpush2.msra.mxu0 %v180
    %1228 = vmatprep.subr.mxu0 %v177
    %1229 = vmatpush2.msra.mxu0 %v176
    %1230 = vmatprep.subr.mxu0 %v173
    %1231 = vmatpush2.msra.mxu0 %v172
    %1232 = vmatprep.subr.mxu0 %v169
    %1233 = vmatpush2.msra.mxu0 %v168
    %1234 = vmatprep.subr.mxu0 %v165
    %1235 = vmatpush2.msra.mxu0 %v164
    %1236 = vmatprep.subr.mxu0 %v161
    %1237 = vmatpush2.msra.mxu0 %v160
    %1238 = vmatprep.subr.mxu0 %v157
    %1239 = vmatpush2.msra.mxu0 %v156
    %1240 = vmatprep.subr.mxu0 %v153
    %1241 = vmatpush2.msra.mxu0 %v152
    %1242 = vmatprep.subr.mxu0 %v149
    %1243 = vmatpush2.msra.mxu0 %v148
    %1244 = vmatprep.subr.mxu0 %v145
    %1245 = vmatpush2.msra.mxu0 %v144
    %1246 = vmatprep.subr.mxu0 %v141
    %1247 = vmatpush2.msra.mxu0 %v140
    %1248 = vmatprep.subr.mxu0 %v137
    %1249 = vmatpush2.msra.mxu0 %v136
    %1250 = vmatprep.subr.mxu0 %v133
    %1251 = vmatpush2.msra.mxu0 %v132
    %1252 = vmatprep.mubr.f32.mxu0 %v1180
    %1253 = vmatmul.mubr.f32.gmra.mxu0 %v1179
    %v1254 = vpop.f32.mrf.mxu0
    %v1255 = vadd.f32 0.0, %v1254
    %v1256 = vpop.f32.mrf.mxu0
    %v1257 = vadd.f32 0.0, %v1256
    %1258 = vdwg.mxu0
    %1259 = vmatprep.subr.mxu0 %v131
    %1260 = vmatpush1.msra.mxu0 %v130
    %1261 = vmatprep.subr.mxu0 %v127
    %1262 = vmatpush1.msra.mxu0 %v126
    %1263 = vmatprep.subr.mxu0 %v123
    %1264 = vmatpush1.msra.mxu0 %v122
    %1265 = vmatprep.subr.mxu0 %v119
    %1266 = vmatpush1.msra.mxu0 %v118
    %1267 = vmatprep.subr.mxu0 %v115
    %1268 = vmatpush1.msra.mxu0 %v114
    %1269 = vmatprep.subr.mxu0 %v111
    %1270 = vmatpush1.msra.mxu0 %v110
    %1271 = vmatprep.subr.mxu0 %v107
    %1272 = vmatpush1.msra.mxu0 %v106
    %1273 = vmatprep.subr.mxu0 %v103
    %1274 = vmatpush1.msra.mxu0 %v102
    %1275 = vmatprep.subr.mxu0 %v99
    %1276 = vmatpush1.msra.mxu0 %v98
    %1277 = vmatprep.subr.mxu0 %v95
    %1278 = vmatpush1.msra.mxu0 %v94
    %1279 = vmatprep.subr.mxu0 %v91
    %1280 = vmatpush1.msra.mxu0 %v90
    %1281 = vmatprep.subr.mxu0 %v87
    %1282 = vmatpush1.msra.mxu0 %v86
    %1283 = vmatprep.subr.mxu0 %v83
    %1284 = vmatpush1.msra.mxu0 %v82
    %1285 = vmatprep.subr.mxu0 %v79
    %1286 = vmatpush1.msra.mxu0 %v78
    %1287 = vmatprep.subr.mxu0 %v75
    %1288 = vmatpush1.msra.mxu0 %v74
    %1289 = vmatprep.subr.mxu0 %v71
    %1290 = vmatpush1.msra.mxu0 %v70
    %1291 = vmatprep.subr.mxu0 %v195
    %1292 = vmatpush2.msra.mxu0 %v194
    %1293 = vmatprep.subr.mxu0 %v191
    %1294 = vmatpush2.msra.mxu0 %v190
    %1295 = vmatprep.subr.mxu0 %v187
    %1296 = vmatpush2.msra.mxu0 %v186
    %1297 = vmatprep.subr.mxu0 %v183
    %1298 = vmatpush2.msra.mxu0 %v182
    %1299 = vmatprep.subr.mxu0 %v179
    %1300 = vmatpush2.msra.mxu0 %v178
    %1301 = vmatprep.subr.mxu0 %v175
    %1302 = vmatpush2.msra.mxu0 %v174
    %1303 = vmatprep.subr.mxu0 %v171
    %1304 = vmatpush2.msra.mxu0 %v170
    %1305 = vmatprep.subr.mxu0 %v167
    %1306 = vmatpush2.msra.mxu0 %v166
    %1307 = vmatprep.subr.mxu0 %v163
    %1308 = vmatpush2.msra.mxu0 %v162
    %1309 = vmatprep.subr.mxu0 %v159
    %1310 = vmatpush2.msra.mxu0 %v158
    %1311 = vmatprep.subr.mxu0 %v155
    %1312 = vmatpush2.msra.mxu0 %v154
    %1313 = vmatprep.subr.mxu0 %v151
    %1314 = vmatpush2.msra.mxu0 %v150
    %1315 = vmatprep.subr.mxu0 %v147
    %1316 = vmatpush2.msra.mxu0 %v146
    %1317 = vmatprep.subr.mxu0 %v143
    %1318 = vmatpush2.msra.mxu0 %v142
    %1319 = vmatprep.subr.mxu0 %v139
    %1320 = vmatpush2.msra.mxu0 %v138
    %1321 = vmatprep.subr.mxu0 %v135
    %1322 = vmatpush2.msra.mxu0 %v134
    %1323 = vmatprep.mubr.f32.mxu0 %v1180
    %1324 = vmatmul.mubr.f32.gmra.mxu0 %v1179
    %v1325 = vpop.f32.mrf.mxu0
    %v1326 = vadd.f32 0.0, %v1325
    %v1327 = vpop.f32.mrf.mxu0
    %v1328 = vadd.f32 0.0, %v1327
    %1329 = vdwg.mxu0
    %v1330 = vadd.f32 %v324, %v1255
    %v1331 = vadd.f32 %v326, %v1257
    %v1332 = vadd.f32 %v437, %v1326
    %v1333 = vadd.f32 %v439, %v1328
    %v1334 = vxor.u32 %v1330, 2147483648
    %v1335 = vmul.f32 %v1334, 1.442695
    %v1336 = vpow.pop %v1335
    %v1337 = vadd.f32 %v1336, 1.0
    %v1338 = vrcp.pop %v1337
    %v1339 = vmul.f32 1.0, %v1338
    %v1340 = vxor.u32 %v1331, 2147483648
    %v1341 = vmul.f32 %v1340, 1.442695
    %v1342 = vpow.pop %v1341
    %v1343 = vadd.f32 %v1342, 1.0
    %v1344 = vrcp.pop %v1343
    %v1345 = vmul.f32 1.0, %v1344
    %v1346 = vtanh.pop %v1332
    %v1347 = vxor.u32 %v1333, 2147483648
    %v1348 = vmul.f32 %v1347, 1.442695
    %v1349 = vpow.pop %v1348
    %v1350 = vadd.f32 %v1349, 1.0
    %v1351 = vrcp.pop %v1350
    %v1352 = vmul.f32 1.0, %v1351
    %v1353 = vmul.f32 %v1345, %v1176
    %v1354 = vmul.f32 %v1339, %v1346
    %v1355 = vadd.f32 %v1353, %v1354
    %v1356 = vtanh.pop %v1355
    %v1357 = vmul.f32 %v1352, %v1356
    %v1358 = vmul.f32 %v1357, %v463
    %v1359 = vmul.f32 %v1357, %v468
    %1360 = vst [vmem:[%s1186] sm:$0x3] %v1357
    %v1362 = vrot.slane %v1357, 2
    %1364 = vst [vmem:[%s1181 + $0x8] sm:$0x3] %v1362
    %1365 = vmatprep.subr.mxu0 %v129
    %1366 = vmatpush1.msra.mxu0 %v128
    %1367 = vmatprep.subr.mxu0 %v125
    %1368 = vmatpush1.msra.mxu0 %v124
    %1369 = vmatprep.subr.mxu0 %v121
    %1370 = vmatpush1.msra.mxu0 %v120
    %1371 = vmatprep.subr.mxu0 %v117
    %1372 = vmatpush1.msra.mxu0 %v116
    %1373 = vmatprep.subr.mxu0 %v113
    %1374 = vmatpush1.msra.mxu0 %v112
    %1375 = vmatprep.subr.mxu0 %v109
    %1376 = vmatpush1.msra.mxu0 %v108
    %1377 = vmatprep.subr.mxu0 %v105
    %1378 = vmatpush1.msra.mxu0 %v104
    %1379 = vmatprep.subr.mxu0 %v101
    %1380 = vmatpush1.msra.mxu0 %v100
    %1381 = vmatprep.subr.mxu0 %v97
    %1382 = vmatpush1.msra.mxu0 %v96
    %1383 = vmatprep.subr.mxu0 %v93
    %1384 = vmatpush1.msra.mxu0 %v92
    %1385 = vmatprep.subr.mxu0 %v89
    %1386 = vmatpush1.msra.mxu0 %v88
    %1387 = vmatprep.subr.mxu0 %v85
    %1388 = vmatpush1.msra.mxu0 %v84
    %1389 = vmatprep.subr.mxu0 %v81
    %1390 = vmatpush1.msra.mxu0 %v80
    %1391 = vmatprep.subr.mxu0 %v77
    %1392 = vmatpush1.msra.mxu0 %v76
    %1393 = vmatprep.subr.mxu0 %v73
    %1394 = vmatpush1.msra.mxu0 %v72
    %1395 = vmatprep.subr.mxu0 %v69
    %1396 = vmatpush1.msra.mxu0 %v68
    %1397 = vmatprep.subr.mxu0 %v193
    %1398 = vmatpush2.msra.mxu0 %v192
    %1399 = vmatprep.subr.mxu0 %v189
    %1400 = vmatpush2.msra.mxu0 %v188
    %1401 = vmatprep.subr.mxu0 %v185
    %1402 = vmatpush2.msra.mxu0 %v184
    %1403 = vmatprep.subr.mxu0 %v181
    %1404 = vmatpush2.msra.mxu0 %v180
    %1405 = vmatprep.subr.mxu0 %v177
    %1406 = vmatpush2.msra.mxu0 %v176
    %1407 = vmatprep.subr.mxu0 %v173
    %1408 = vmatpush2.msra.mxu0 %v172
    %1409 = vmatprep.subr.mxu0 %v169
    %1410 = vmatpush2.msra.mxu0 %v168
    %1411 = vmatprep.subr.mxu0 %v165
    %1412 = vmatpush2.msra.mxu0 %v164
    %1413 = vmatprep.subr.mxu0 %v161
    %1414 = vmatpush2.msra.mxu0 %v160
    %1415 = vmatprep.subr.mxu0 %v157
    %1416 = vmatpush2.msra.mxu0 %v156
    %1417 = vmatprep.subr.mxu0 %v153
    %1418 = vmatpush2.msra.mxu0 %v152
    %1419 = vmatprep.subr.mxu0 %v149
    %1420 = vmatpush2.msra.mxu0 %v148
    %1421 = vmatprep.subr.mxu0 %v145
    %1422 = vmatpush2.msra.mxu0 %v144
    %1423 = vmatprep.subr.mxu0 %v141
    %1424 = vmatpush2.msra.mxu0 %v140
    %1425 = vmatprep.subr.mxu0 %v137
    %1426 = vmatpush2.msra.mxu0 %v136
    %1427 = vmatprep.subr.mxu0 %v133
    %1428 = vmatpush2.msra.mxu0 %v132
    %1429 = vmatprep.mubr.f32.mxu0 %v1359
    %1430 = vmatmul.mubr.f32.gmra.mxu0 %v1358
    %v1431 = vpop.f32.mrf.mxu0
    %v1432 = vadd.f32 0.0, %v1431
    %v1433 = vpop.f32.mrf.mxu0
    %v1434 = vadd.f32 0.0, %v1433
    %1435 = vdwg.mxu0
    %1436 = vmatprep.subr.mxu0 %v131
    %1437 = vmatpush1.msra.mxu0 %v130
    %1438 = vmatprep.subr.mxu0 %v127
    %1439 = vmatpush1.msra.mxu0 %v126
    %1440 = vmatprep.subr.mxu0 %v123
    %1441 = vmatpush1.msra.mxu0 %v122
    %1442 = vmatprep.subr.mxu0 %v119
    %1443 = vmatpush1.msra.mxu0 %v118
    %1444 = vmatprep.subr.mxu0 %v115
    %1445 = vmatpush1.msra.mxu0 %v114
    %1446 = vmatprep.subr.mxu0 %v111
    %1447 = vmatpush1.msra.mxu0 %v110
    %1448 = vmatprep.subr.mxu0 %v107
    %1449 = vmatpush1.msra.mxu0 %v106
    %1450 = vmatprep.subr.mxu0 %v103
    %1451 = vmatpush1.msra.mxu0 %v102
    %1452 = vmatprep.subr.mxu0 %v99
    %1453 = vmatpush1.msra.mxu0 %v98
    %1454 = vmatprep.subr.mxu0 %v95
    %1455 = vmatpush1.msra.mxu0 %v94
    %1456 = vmatprep.subr.mxu0 %v91
    %1457 = vmatpush1.msra.mxu0 %v90
    %1458 = vmatprep.subr.mxu0 %v87
    %1459 = vmatpush1.msra.mxu0 %v86
    %1460 = vmatprep.subr.mxu0 %v83
    %1461 = vmatpush1.msra.mxu0 %v82
    %1462 = vmatprep.subr.mxu0 %v79
    %1463 = vmatpush1.msra.mxu0 %v78
    %1464 = vmatprep.subr.mxu0 %v75
    %1465 = vmatpush1.msra.mxu0 %v74
    %1466 = vmatprep.subr.mxu0 %v71
    %1467 = vmatpush1.msra.mxu0 %v70
    %1468 = vmatprep.subr.mxu0 %v195
    %1469 = vmatpush2.msra.mxu0 %v194
    %1470 = vmatprep.subr.mxu0 %v191
    %1471 = vmatpush2.msra.mxu0 %v190
    %1472 = vmatprep.subr.mxu0 %v187
    %1473 = vmatpush2.msra.mxu0 %v186
    %1474 = vmatprep.subr.mxu0 %v183
    %1475 = vmatpush2.msra.mxu0 %v182
    %1476 = vmatprep.subr.mxu0 %v179
    %1477 = vmatpush2.msra.mxu0 %v178
    %1478 = vmatprep.subr.mxu0 %v175
    %1479 = vmatpush2.msra.mxu0 %v174
    %1480 = vmatprep.subr.mxu0 %v171
    %1481 = vmatpush2.msra.mxu0 %v170
    %1482 = vmatprep.subr.mxu0 %v167
    %1483 = vmatpush2.msra.mxu0 %v166
    %1484 = vmatprep.subr.mxu0 %v163
    %1485 = vmatpush2.msra.mxu0 %v162
    %1486 = vmatprep.subr.mxu0 %v159
    %1487 = vmatpush2.msra.mxu0 %v158
    %1488 = vmatprep.subr.mxu0 %v155
    %1489 = vmatpush2.msra.mxu0 %v154
    %1490 = vmatprep.subr.mxu0 %v151
    %1491 = vmatpush2.msra.mxu0 %v150
    %1492 = vmatprep.subr.mxu0 %v147
    %1493 = vmatpush2.msra.mxu0 %v146
    %1494 = vmatprep.subr.mxu0 %v143
    %1495 = vmatpush2.msra.mxu0 %v142
    %1496 = vmatprep.subr.mxu0 %v139
    %1497 = vmatpush2.msra.mxu0 %v138
    %1498 = vmatprep.subr.mxu0 %v135
    %1499 = vmatpush2.msra.mxu0 %v134
    %1500 = vmatprep.mubr.f32.mxu0 %v1359
    %1501 = vmatmul.mubr.f32.gmra.mxu0 %v1358
    %v1502 = vpop.f32.mrf.mxu0
    %v1503 = vadd.f32 0.0, %v1502
    %v1504 = vpop.f32.mrf.mxu0
    %v1505 = vadd.f32 0.0, %v1504
    %1506 = vdwg.mxu0
    %v1507 = vadd.f32 %v330, %v1432
    %v1508 = vadd.f32 %v332, %v1434
    %v1509 = vadd.f32 %v443, %v1503
    %v1510 = vadd.f32 %v445, %v1505
    %v1511 = vxor.u32 %v1507, 2147483648
    %v1512 = vmul.f32 %v1511, 1.442695
    %v1513 = vpow.pop %v1512
    %v1514 = vadd.f32 %v1513, 1.0
    %v1515 = vrcp.pop %v1514
    %v1516 = vmul.f32 1.0, %v1515
    %v1517 = vxor.u32 %v1508, 2147483648
    %v1518 = vmul.f32 %v1517, 1.442695
    %v1519 = vpow.pop %v1518
    %v1520 = vadd.f32 %v1519, 1.0
    %v1521 = vrcp.pop %v1520
    %v1522 = vmul.f32 1.0, %v1521
    %v1523 = vtanh.pop %v1509
    %v1524 = vxor.u32 %v1510, 2147483648
    %v1525 = vmul.f32 %v1524, 1.442695
    %v1526 = vpow.pop %v1525
    %v1527 = vadd.f32 %v1526, 1.0
    %v1528 = vrcp.pop %v1527
    %v1529 = vmul.f32 1.0, %v1528
    %v1530 = vmul.f32 %v1522, %v1355
    %v1531 = vmul.f32 %v1516, %v1523
    %v1532 = vadd.f32 %v1530, %v1531
    %v1533 = vtanh.pop %v1532
    %v1534 = vmul.f32 %v1529, %v1533
    %v1535 = vmul.f32 %v1534, %v463
    %v1536 = vmul.f32 %v1534, %v468
    %1537 = vst [vmem:[%s1007] sm:$0x3] %v1534
    %v1539 = vrot.slane %v1534, 2
    %1541 = vst [vmem:[%s1002 + $0x8] sm:$0x3] %v1539
    %1542 = vmatprep.subr.mxu0 %v129
    %1543 = vmatpush1.msra.mxu0 %v128
    %1544 = vmatprep.subr.mxu0 %v125
    %1545 = vmatpush1.msra.mxu0 %v124
    %1546 = vmatprep.subr.mxu0 %v121
    %1547 = vmatpush1.msra.mxu0 %v120
    %1548 = vmatprep.subr.mxu0 %v117
    %1549 = vmatpush1.msra.mxu0 %v116
    %1550 = vmatprep.subr.mxu0 %v113
    %1551 = vmatpush1.msra.mxu0 %v112
    %1552 = vmatprep.subr.mxu0 %v109
    %1553 = vmatpush1.msra.mxu0 %v108
    %1554 = vmatprep.subr.mxu0 %v105
    %1555 = vmatpush1.msra.mxu0 %v104
    %1556 = vmatprep.subr.mxu0 %v101
    %1557 = vmatpush1.msra.mxu0 %v100
    %1558 = vmatprep.subr.mxu0 %v97
    %1559 = vmatpush1.msra.mxu0 %v96
    %1560 = vmatprep.subr.mxu0 %v93
    %1561 = vmatpush1.msra.mxu0 %v92
    %1562 = vmatprep.subr.mxu0 %v89
    %1563 = vmatpush1.msra.mxu0 %v88
    %1564 = vmatprep.subr.mxu0 %v85
    %1565 = vmatpush1.msra.mxu0 %v84
    %1566 = vmatprep.subr.mxu0 %v81
    %1567 = vmatpush1.msra.mxu0 %v80
    %1568 = vmatprep.subr.mxu0 %v77
    %1569 = vmatpush1.msra.mxu0 %v76
    %1570 = vmatprep.subr.mxu0 %v73
    %1571 = vmatpush1.msra.mxu0 %v72
    %1572 = vmatprep.subr.mxu0 %v69
    %1573 = vmatpush1.msra.mxu0 %v68
    %1574 = vmatprep.subr.mxu0 %v193
    %1575 = vmatpush2.msra.mxu0 %v192
    %1576 = vmatprep.subr.mxu0 %v189
    %1577 = vmatpush2.msra.mxu0 %v188
    %1578 = vmatprep.subr.mxu0 %v185
    %1579 = vmatpush2.msra.mxu0 %v184
    %1580 = vmatprep.subr.mxu0 %v181
    %1581 = vmatpush2.msra.mxu0 %v180
    %1582 = vmatprep.subr.mxu0 %v177
    %1583 = vmatpush2.msra.mxu0 %v176
    %1584 = vmatprep.subr.mxu0 %v173
    %1585 = vmatpush2.msra.mxu0 %v172
    %1586 = vmatprep.subr.mxu0 %v169
    %1587 = vmatpush2.msra.mxu0 %v168
    %1588 = vmatprep.subr.mxu0 %v165
    %1589 = vmatpush2.msra.mxu0 %v164
    %1590 = vmatprep.subr.mxu0 %v161
    %1591 = vmatpush2.msra.mxu0 %v160
    %1592 = vmatprep.subr.mxu0 %v157
    %1593 = vmatpush2.msra.mxu0 %v156
    %1594 = vmatprep.subr.mxu0 %v153
    %1595 = vmatpush2.msra.mxu0 %v152
    %1596 = vmatprep.subr.mxu0 %v149
    %1597 = vmatpush2.msra.mxu0 %v148
    %1598 = vmatprep.subr.mxu0 %v145
    %1599 = vmatpush2.msra.mxu0 %v144
    %1600 = vmatprep.subr.mxu0 %v141
    %1601 = vmatpush2.msra.mxu0 %v140
    %1602 = vmatprep.subr.mxu0 %v137
    %1603 = vmatpush2.msra.mxu0 %v136
    %1604 = vmatprep.subr.mxu0 %v133
    %1605 = vmatpush2.msra.mxu0 %v132
    %1606 = vmatprep.mubr.f32.mxu0 %v1536
    %1607 = vmatmul.mubr.f32.gmra.mxu0 %v1535
    %v1608 = vpop.f32.mrf.mxu0
    %v1609 = vadd.f32 0.0, %v1608
    %v1610 = vpop.f32.mrf.mxu0
    %v1611 = vadd.f32 0.0, %v1610
    %1612 = vdwg.mxu0
    %1613 = vmatprep.subr.mxu0 %v131
    %1614 = vmatpush1.msra.mxu0 %v130
    %1615 = vmatprep.subr.mxu0 %v127
    %1616 = vmatpush1.msra.mxu0 %v126
    %1617 = vmatprep.subr.mxu0 %v123
    %1618 = vmatpush1.msra.mxu0 %v122
    %1619 = vmatprep.subr.mxu0 %v119
    %1620 = vmatpush1.msra.mxu0 %v118
    %1621 = vmatprep.subr.mxu0 %v115
    %1622 = vmatpush1.msra.mxu0 %v114
    %1623 = vmatprep.subr.mxu0 %v111
    %1624 = vmatpush1.msra.mxu0 %v110
    %1625 = vmatprep.subr.mxu0 %v107
    %1626 = vmatpush1.msra.mxu0 %v106
    %1627 = vmatprep.subr.mxu0 %v103
    %1628 = vmatpush1.msra.mxu0 %v102
    %1629 = vmatprep.subr.mxu0 %v99
    %1630 = vmatpush1.msra.mxu0 %v98
    %1631 = vmatprep.subr.mxu0 %v95
    %1632 = vmatpush1.msra.mxu0 %v94
    %1633 = vmatprep.subr.mxu0 %v91
    %1634 = vmatpush1.msra.mxu0 %v90
    %1635 = vmatprep.subr.mxu0 %v87
    %1636 = vmatpush1.msra.mxu0 %v86
    %1637 = vmatprep.subr.mxu0 %v83
    %1638 = vmatpush1.msra.mxu0 %v82
    %1639 = vmatprep.subr.mxu0 %v79
    %1640 = vmatpush1.msra.mxu0 %v78
    %1641 = vmatprep.subr.mxu0 %v75
    %1642 = vmatpush1.msra.mxu0 %v74
    %1643 = vmatprep.subr.mxu0 %v71
    %1644 = vmatpush1.msra.mxu0 %v70
    %1645 = vmatprep.subr.mxu0 %v195
    %1646 = vmatpush2.msra.mxu0 %v194
    %1647 = vmatprep.subr.mxu0 %v191
    %1648 = vmatpush2.msra.mxu0 %v190
    %1649 = vmatprep.subr.mxu0 %v187
    %1650 = vmatpush2.msra.mxu0 %v186
    %1651 = vmatprep.subr.mxu0 %v183
    %1652 = vmatpush2.msra.mxu0 %v182
    %1653 = vmatprep.subr.mxu0 %v179
    %1654 = vmatpush2.msra.mxu0 %v178
    %1655 = vmatprep.subr.mxu0 %v175
    %1656 = vmatpush2.msra.mxu0 %v174
    %1657 = vmatprep.subr.mxu0 %v171
    %1658 = vmatpush2.msra.mxu0 %v170
    %1659 = vmatprep.subr.mxu0 %v167
    %1660 = vmatpush2.msra.mxu0 %v166
    %1661 = vmatprep.subr.mxu0 %v163
    %1662 = vmatpush2.msra.mxu0 %v162
    %1663 = vmatprep.subr.mxu0 %v159
    %1664 = vmatpush2.msra.mxu0 %v158
    %1665 = vmatprep.subr.mxu0 %v155
    %1666 = vmatpush2.msra.mxu0 %v154
    %1667 = vmatprep.subr.mxu0 %v151
    %1668 = vmatpush2.msra.mxu0 %v150
    %1669 = vmatprep.subr.mxu0 %v147
    %1670 = vmatpush2.msra.mxu0 %v146
    %1671 = vmatprep.subr.mxu0 %v143
    %1672 = vmatpush2.msra.mxu0 %v142
    %1673 = vmatprep.subr.mxu0 %v139
    %1674 = vmatpush2.msra.mxu0 %v138
    %1675 = vmatprep.subr.mxu0 %v135
    %1676 = vmatpush2.msra.mxu0 %v134
    %1677 = vmatprep.mubr.f32.mxu0 %v1536
    %1678 = vmatmul.mubr.f32.gmra.mxu0 %v1535
    %v1679 = vpop.f32.mrf.mxu0
    %v1680 = vadd.f32 0.0, %v1679
    %v1681 = vpop.f32.mrf.mxu0
    %v1682 = vadd.f32 0.0, %v1681
    %1683 = vdwg.mxu0
    %v1684 = vadd.f32 %v336, %v1609
    %v1685 = vadd.f32 %v338, %v1611
    %v1686 = vadd.f32 %v449, %v1680
    %v1687 = vadd.f32 %v451, %v1682
    %v1688 = vxor.u32 %v1684, 2147483648
    %v1689 = vmul.f32 %v1688, 1.442695
    %v1690 = vpow.pop %v1689
    %v1691 = vadd.f32 %v1690, 1.0
    %v1692 = vrcp.pop %v1691
    %v1693 = vmul.f32 1.0, %v1692
    %v1694 = vxor.u32 %v1685, 2147483648
    %v1695 = vmul.f32 %v1694, 1.442695
    %v1696 = vpow.pop %v1695
    %v1697 = vadd.f32 %v1696, 1.0
    %v1698 = vrcp.pop %v1697
    %v1699 = vmul.f32 1.0, %v1698
    %v1700 = vtanh.pop %v1686
    %v1701 = vxor.u32 %v1687, 2147483648
    %v1702 = vmul.f32 %v1701, 1.442695
    %v1703 = vpow.pop %v1702
    %v1704 = vadd.f32 %v1703, 1.0
    %v1705 = vrcp.pop %v1704
    %v1706 = vmul.f32 1.0, %v1705
    %v1707 = vmul.f32 %v1699, %v1532
    %v1708 = vmul.f32 %v1693, %v1700
    %v1709 = vadd.f32 %v1707, %v1708
    %v1710 = vtanh.pop %v1709
    %v1711 = vmul.f32 %v1706, %v1710
    %v1712 = vmul.f32 %v1711, %v463
    %v1713 = vmul.f32 %v1711, %v468
    %1714 = vst [vmem:[%s828] sm:$0x3] %v1711
    %v1716 = vrot.slane %v1711, 2
    %1718 = vst [vmem:[%s823 + $0x8] sm:$0x3] %v1716
    %1719 = vmatprep.subr.mxu0 %v129
    %1720 = vmatpush1.msra.mxu0 %v128
    %1721 = vmatprep.subr.mxu0 %v125
    %1722 = vmatpush1.msra.mxu0 %v124
    %1723 = vmatprep.subr.mxu0 %v121
    %1724 = vmatpush1.msra.mxu0 %v120
    %1725 = vmatprep.subr.mxu0 %v117
    %1726 = vmatpush1.msra.mxu0 %v116
    %1727 = vmatprep.subr.mxu0 %v113
    %1728 = vmatpush1.msra.mxu0 %v112
    %1729 = vmatprep.subr.mxu0 %v109
    %1730 = vmatpush1.msra.mxu0 %v108
    %1731 = vmatprep.subr.mxu0 %v105
    %1732 = vmatpush1.msra.mxu0 %v104
    %1733 = vmatprep.subr.mxu0 %v101
    %1734 = vmatpush1.msra.mxu0 %v100
    %1735 = vmatprep.subr.mxu0 %v97
    %1736 = vmatpush1.msra.mxu0 %v96
    %1737 = vmatprep.subr.mxu0 %v93
    %1738 = vmatpush1.msra.mxu0 %v92
    %1739 = vmatprep.subr.mxu0 %v89
    %1740 = vmatpush1.msra.mxu0 %v88
    %1741 = vmatprep.subr.mxu0 %v85
    %1742 = vmatpush1.msra.mxu0 %v84
    %1743 = vmatprep.subr.mxu0 %v81
    %1744 = vmatpush1.msra.mxu0 %v80
    %1745 = vmatprep.subr.mxu0 %v77
    %1746 = vmatpush1.msra.mxu0 %v76
    %1747 = vmatprep.subr.mxu0 %v73
    %1748 = vmatpush1.msra.mxu0 %v72
    %1749 = vmatprep.subr.mxu0 %v69
    %1750 = vmatpush1.msra.mxu0 %v68
    %1751 = vmatprep.subr.mxu0 %v193
    %1752 = vmatpush2.msra.mxu0 %v192
    %1753 = vmatprep.subr.mxu0 %v189
    %1754 = vmatpush2.msra.mxu0 %v188
    %1755 = vmatprep.subr.mxu0 %v185
    %1756 = vmatpush2.msra.mxu0 %v184
    %1757 = vmatprep.subr.mxu0 %v181
    %1758 = vmatpush2.msra.mxu0 %v180
    %1759 = vmatprep.subr.mxu0 %v177
    %1760 = vmatpush2.msra.mxu0 %v176
    %1761 = vmatprep.subr.mxu0 %v173
    %1762 = vmatpush2.msra.mxu0 %v172
    %1763 = vmatprep.subr.mxu0 %v169
    %1764 = vmatpush2.msra.mxu0 %v168
    %1765 = vmatprep.subr.mxu0 %v165
    %1766 = vmatpush2.msra.mxu0 %v164
    %1767 = vmatprep.subr.mxu0 %v161
    %1768 = vmatpush2.msra.mxu0 %v160
    %1769 = vmatprep.subr.mxu0 %v157
    %1770 = vmatpush2.msra.mxu0 %v156
    %1771 = vmatprep.subr.mxu0 %v153
    %1772 = vmatpush2.msra.mxu0 %v152
    %1773 = vmatprep.subr.mxu0 %v149
    %1774 = vmatpush2.msra.mxu0 %v148
    %1775 = vmatprep.subr.mxu0 %v145
    %1776 = vmatpush2.msra.mxu0 %v144
    %1777 = vmatprep.subr.mxu0 %v141
    %1778 = vmatpush2.msra.mxu0 %v140
    %1779 = vmatprep.subr.mxu0 %v137
    %1780 = vmatpush2.msra.mxu0 %v136
    %1781 = vmatprep.subr.mxu0 %v133
    %1782 = vmatpush2.msra.mxu0 %v132
    %1783 = vmatprep.mubr.f32.mxu0 %v1713
    %1784 = vmatmul.mubr.f32.gmra.mxu0 %v1712
    %v1785 = vpop.f32.mrf.mxu0
    %v1786 = vadd.f32 0.0, %v1785
    %v1787 = vpop.f32.mrf.mxu0
    %v1788 = vadd.f32 0.0, %v1787
    %1789 = vdwg.mxu0
    %1790 = vmatprep.subr.mxu0 %v131
    %1791 = vmatpush1.msra.mxu0 %v130
    %1792 = vmatprep.subr.mxu0 %v127
    %1793 = vmatpush1.msra.mxu0 %v126
    %1794 = vmatprep.subr.mxu0 %v123
    %1795 = vmatpush1.msra.mxu0 %v122
    %1796 = vmatprep.subr.mxu0 %v119
    %1797 = vmatpush1.msra.mxu0 %v118
    %1798 = vmatprep.subr.mxu0 %v115
    %1799 = vmatpush1.msra.mxu0 %v114
    %1800 = vmatprep.subr.mxu0 %v111
    %1801 = vmatpush1.msra.mxu0 %v110
    %1802 = vmatprep.subr.mxu0 %v107
    %1803 = vmatpush1.msra.mxu0 %v106
    %1804 = vmatprep.subr.mxu0 %v103
    %1805 = vmatpush1.msra.mxu0 %v102
    %1806 = vmatprep.subr.mxu0 %v99
    %1807 = vmatpush1.msra.mxu0 %v98
    %1808 = vmatprep.subr.mxu0 %v95
    %1809 = vmatpush1.msra.mxu0 %v94
    %1810 = vmatprep.subr.mxu0 %v91
    %1811 = vmatpush1.msra.mxu0 %v90
    %1812 = vmatprep.subr.mxu0 %v87
    %1813 = vmatpush1.msra.mxu0 %v86
    %1814 = vmatprep.subr.mxu0 %v83
    %1815 = vmatpush1.msra.mxu0 %v82
    %1816 = vmatprep.subr.mxu0 %v79
    %1817 = vmatpush1.msra.mxu0 %v78
    %1818 = vmatprep.subr.mxu0 %v75
    %1819 = vmatpush1.msra.mxu0 %v74
    %1820 = vmatprep.subr.mxu0 %v71
    %1821 = vmatpush1.msra.mxu0 %v70
    %1822 = vmatprep.subr.mxu0 %v195
    %1823 = vmatpush2.msra.mxu0 %v194
    %1824 = vmatprep.subr.mxu0 %v191
    %1825 = vmatpush2.msra.mxu0 %v190
    %1826 = vmatprep.subr.mxu0 %v187
    %1827 = vmatpush2.msra.mxu0 %v186
    %1828 = vmatprep.subr.mxu0 %v183
    %1829 = vmatpush2.msra.mxu0 %v182
    %1830 = vmatprep.subr.mxu0 %v179
    %1831 = vmatpush2.msra.mxu0 %v178
    %1832 = vmatprep.subr.mxu0 %v175
    %1833 = vmatpush2.msra.mxu0 %v174
    %1834 = vmatprep.subr.mxu0 %v171
    %1835 = vmatpush2.msra.mxu0 %v170
    %1836 = vmatprep.subr.mxu0 %v167
    %1837 = vmatpush2.msra.mxu0 %v166
    %1838 = vmatprep.subr.mxu0 %v163
    %1839 = vmatpush2.msra.mxu0 %v162
    %1840 = vmatprep.subr.mxu0 %v159
    %1841 = vmatpush2.msra.mxu0 %v158
    %1842 = vmatprep.subr.mxu0 %v155
    %1843 = vmatpush2.msra.mxu0 %v154
    %1844 = vmatprep.subr.mxu0 %v151
    %1845 = vmatpush2.msra.mxu0 %v150
    %1846 = vmatprep.subr.mxu0 %v147
    %1847 = vmatpush2.msra.mxu0 %v146
    %1848 = vmatprep.subr.mxu0 %v143
    %1849 = vmatpush2.msra.mxu0 %v142
    %1850 = vmatprep.subr.mxu0 %v139
    %1851 = vmatpush2.msra.mxu0 %v138
    %1852 = vmatprep.subr.mxu0 %v135
    %1853 = vmatpush2.msra.mxu0 %v134
    %1854 = vmatprep.mubr.f32.mxu0 %v1713
    %1855 = vmatmul.mubr.f32.gmra.mxu0 %v1712
    %v1856 = vpop.f32.mrf.mxu0
    %v1857 = vadd.f32 0.0, %v1856
    %v1858 = vpop.f32.mrf.mxu0
    %v1859 = vadd.f32 0.0, %v1858
    %1860 = vdwg.mxu0
    %v1861 = vadd.f32 %v342, %v1786
    %v1862 = vadd.f32 %v344, %v1788
    %v1863 = vadd.f32 %v455, %v1857
    %v1864 = vadd.f32 %v457, %v1859
    %v1865 = vxor.u32 %v1861, 2147483648
    %v1866 = vmul.f32 %v1865, 1.442695
    %v1867 = vpow.pop %v1866
    %v1868 = vadd.f32 %v1867, 1.0
    %v1869 = vrcp.pop %v1868
    %v1870 = vmul.f32 1.0, %v1869
    %v1871 = vxor.u32 %v1862, 2147483648
    %v1872 = vmul.f32 %v1871, 1.442695
    %v1873 = vpow.pop %v1872
    %v1874 = vadd.f32 %v1873, 1.0
    %v1875 = vrcp.pop %v1874
    %v1876 = vmul.f32 1.0, %v1875
    %v1877 = vtanh.pop %v1863
    %v1878 = vxor.u32 %v1864, 2147483648
    %v1879 = vmul.f32 %v1878, 1.442695
    %v1880 = vpow.pop %v1879
    %v1881 = vadd.f32 %v1880, 1.0
    %v1882 = vrcp.pop %v1881
    %v1883 = vmul.f32 1.0, %v1882
    %v1884 = vmul.f32 %v1876, %v1709
    %v1885 = vmul.f32 %v1870, %v1877
    %v1886 = vadd.f32 %v1884, %v1885
    %v1887 = vtanh.pop %v1886
    %v1888 = vmul.f32 %v1883, %v1887
    %1889 = vst [vmem:[%s649] sm:$0x3] %v1888
    %v1891 = vrot.slane %v1888, 2
    %1893 = vst [vmem:[#allocation4 + $0x8] sm:$0x3] %v1891
    %s1894 = smul.u32 8, 49
    %s1895 = smul.u32 %s1894, 8
    %s1896 = sshll.u32 %s1895, 4
    %1897 = dma.done [#allocation5], %s1896
    %v1898 = vld [vmem:[#allocation2] sm:$0xff]
    %v1899 = vld [vmem:[#allocation2 + $0x8] sm:$0xff]
    %v1900 = vld [vmem:[#allocation2 + $0x10] sm:$0xff]
    %v1901 = vld [vmem:[#allocation2 + $0x18] sm:$0xff]
    %v1902 = vld [vmem:[#allocation2 + $0x20] sm:$0xff]
    %v1903 = vld [vmem:[#allocation2 + $0x28] sm:$0xff]
    %v1904 = vld [vmem:[#allocation2 + $0x30] sm:$0xff]
    %v1905 = vld [vmem:[#allocation2 + $0x38] sm:$0xff]
    %v1906 = vld [vmem:[#allocation2 + $0x40] sm:$0xff]
    %v1907 = vld [vmem:[#allocation2 + $0x48] sm:$0xff]
    %v1908 = vld [vmem:[#allocation2 + $0x50] sm:$0xff]
    %v1909 = vld [vmem:[#allocation2 + $0x58] sm:$0xff]
    %v1910 = vld [vmem:[#allocation2 + $0x60] sm:$0xff]
    %v1911 = vld [vmem:[#allocation2 + $0x68] sm:$0xff]
    %v1912 = vld [vmem:[#allocation2 + $0x70] sm:$0xff]
    %v1913 = vld [vmem:[#allocation2 + $0x78] sm:$0xff]
    %v1914 = vld [vmem:[#allocation2 + $0x80] sm:$0xff]
    %v1915 = vld [vmem:[#allocation2 + $0x88] sm:$0xff]
    %v1916 = vld [vmem:[#allocation2 + $0x90] sm:$0xff]
    %v1917 = vld [vmem:[#allocation2 + $0x98] sm:$0xff]
    %v1918 = vld [vmem:[#allocation2 + $0xa0] sm:$0xff]
    %v1919 = vld [vmem:[#allocation2 + $0xa8] sm:$0xff]
    %v1920 = vld [vmem:[#allocation2 + $0xb0] sm:$0xff]
    %v1921 = vld [vmem:[#allocation2 + $0xb8] sm:$0xff]
    %v1922 = vld [vmem:[#allocation2 + $0xc0] sm:$0xff]
    %v1923 = vld [vmem:[#allocation2 + $0xc8] sm:$0xff]
    %v1924 = vld [vmem:[#allocation2 + $0xd0] sm:$0xff]
    %v1925 = vld [vmem:[#allocation2 + $0xd8] sm:$0xff]
    %v1926 = vld [vmem:[#allocation2 + $0xe0] sm:$0xff]
    %v1927 = vld [vmem:[#allocation2 + $0xe8] sm:$0xff]
    %v1928 = vld [vmem:[#allocation2 + $0xf0] sm:$0xff]
    %v1929 = vld [vmem:[#allocation2 + $0xf8] sm:$0xff]
    %v1930 = vld [vmem:[#allocation2 + $0x100] sm:$0xff]
    %v1931 = vld [vmem:[#allocation2 + $0x108] sm:$0xff]
    %v1932 = vld [vmem:[#allocation2 + $0x110] sm:$0xff]
    %v1933 = vld [vmem:[#allocation2 + $0x118] sm:$0xff]
    %v1934 = vld [vmem:[#allocation2 + $0x120] sm:$0xff]
    %v1935 = vld [vmem:[#allocation2 + $0x128] sm:$0xff]
    %v1936 = vld [vmem:[#allocation2 + $0x130] sm:$0xff]
    %v1937 = vld [vmem:[#allocation2 + $0x138] sm:$0xff]
    %v1938 = vld [vmem:[#allocation2 + $0x140] sm:$0xff]
    %v1939 = vld [vmem:[#allocation2 + $0x148] sm:$0xff]
    %v1940 = vld [vmem:[#allocation2 + $0x150] sm:$0xff]
    %v1941 = vld [vmem:[#allocation2 + $0x158] sm:$0xff]
    %v1942 = vld [vmem:[#allocation2 + $0x160] sm:$0xff]
    %v1943 = vld [vmem:[#allocation2 + $0x168] sm:$0xff]
    %v1944 = vld [vmem:[#allocation2 + $0x170] sm:$0xff]
    %v1945 = vld [vmem:[#allocation2 + $0x178] sm:$0xff]
    %v1946 = vld [vmem:[#allocation2 + $0x180] sm:$0xff]
    %v1947 = vld [vmem:[#allocation2 + $0x188] sm:$0xff]
    %v1948 = vld [vmem:[#allocation2 + $0x190] sm:$0xff]
    %v1949 = vld [vmem:[#allocation2 + $0x198] sm:$0xff]
    %v1950 = vld [vmem:[#allocation2 + $0x1a0] sm:$0xff]
    %v1951 = vld [vmem:[#allocation2 + $0x1a8] sm:$0xff]
    %v1952 = vld [vmem:[#allocation2 + $0x1b0] sm:$0xff]
    %v1953 = vld [vmem:[#allocation2 + $0x1b8] sm:$0xff]
    %v1954 = vld [vmem:[#allocation2 + $0x1c0] sm:$0xff]
    %v1955 = vld [vmem:[#allocation2 + $0x1c8] sm:$0xff]
    %v1956 = vld [vmem:[#allocation2 + $0x1d0] sm:$0xff]
    %v1957 = vld [vmem:[#allocation2 + $0x1d8] sm:$0xff]
    %v1958 = vld [vmem:[#allocation2 + $0x1e0] sm:$0xff]
    %v1959 = vld [vmem:[#allocation2 + $0x1e8] sm:$0xff]
    %v1960 = vld [vmem:[#allocation2 + $0x1f0] sm:$0xff]
    %v1961 = vld [vmem:[#allocation2 + $0x1f8] sm:$0xff]
    %v1962 = vld [vmem:[#allocation2 + $0x200] sm:$0xff]
    %v1963 = vld [vmem:[#allocation2 + $0x208] sm:$0xff]
    %v1964 = vld [vmem:[#allocation2 + $0x210] sm:$0xff]
    %v1965 = vld [vmem:[#allocation2 + $0x218] sm:$0xff]
    %v1966 = vld [vmem:[#allocation2 + $0x220] sm:$0xff]
    %v1967 = vld [vmem:[#allocation2 + $0x228] sm:$0xff]
    %v1968 = vld [vmem:[#allocation2 + $0x230] sm:$0xff]
    %v1969 = vld [vmem:[#allocation2 + $0x238] sm:$0xff]
    %v1970 = vld [vmem:[#allocation2 + $0x240] sm:$0xff]
    %v1971 = vld [vmem:[#allocation2 + $0x248] sm:$0xff]
    %v1972 = vld [vmem:[#allocation2 + $0x250] sm:$0xff]
    %v1973 = vld [vmem:[#allocation2 + $0x258] sm:$0xff]
    %v1974 = vld [vmem:[#allocation2 + $0x260] sm:$0xff]
    %v1975 = vld [vmem:[#allocation2 + $0x268] sm:$0xff]
    %v1976 = vld [vmem:[#allocation2 + $0x270] sm:$0xff]
    %v1977 = vld [vmem:[#allocation2 + $0x278] sm:$0xff]
    %v1978 = vld [vmem:[#allocation2 + $0x280] sm:$0xff]
    %v1979 = vld [vmem:[#allocation2 + $0x288] sm:$0xff]
    %v1980 = vld [vmem:[#allocation2 + $0x290] sm:$0xff]
    %v1981 = vld [vmem:[#allocation2 + $0x298] sm:$0xff]
    %v1982 = vld [vmem:[#allocation2 + $0x2a0] sm:$0xff]
    %v1983 = vld [vmem:[#allocation2 + $0x2a8] sm:$0xff]
    %v1984 = vld [vmem:[#allocation2 + $0x2b0] sm:$0xff]
    %v1985 = vld [vmem:[#allocation2 + $0x2b8] sm:$0xff]
    %v1986 = vld [vmem:[#allocation2 + $0x2c0] sm:$0xff]
    %v1987 = vld [vmem:[#allocation2 + $0x2c8] sm:$0xff]
    %v1988 = vld [vmem:[#allocation2 + $0x2d0] sm:$0xff]
    %v1989 = vld [vmem:[#allocation2 + $0x2d8] sm:$0xff]
    %v1990 = vld [vmem:[#allocation2 + $0x2e0] sm:$0xff]
    %v1991 = vld [vmem:[#allocation2 + $0x2e8] sm:$0xff]
    %v1992 = vld [vmem:[#allocation2 + $0x2f0] sm:$0xff]
    %v1993 = vld [vmem:[#allocation2 + $0x2f8] sm:$0xff]
    %v1994 = vld [vmem:[#allocation2 + $0x300] sm:$0xff]
    %v1995 = vld [vmem:[#allocation2 + $0x308] sm:$0xff]
    %v1996 = vld [vmem:[#allocation2 + $0x310] sm:$0xff]
    %v1997 = vld [vmem:[#allocation2 + $0x318] sm:$0xff]
    %v1998 = vld [vmem:[#allocation2 + $0x320] sm:$0xff]
    %v1999 = vld [vmem:[#allocation2 + $0x328] sm:$0xff]
    %v2000 = vld [vmem:[#allocation2 + $0x330] sm:$0xff]
    %v2001 = vld [vmem:[#allocation2 + $0x338] sm:$0xff]
    %v2002 = vld [vmem:[#allocation2 + $0x340] sm:$0xff]
    %v2003 = vld [vmem:[#allocation2 + $0x348] sm:$0xff]
    %v2004 = vld [vmem:[#allocation2 + $0x350] sm:$0xff]
    %v2005 = vld [vmem:[#allocation2 + $0x358] sm:$0xff]
    %v2006 = vld [vmem:[#allocation2 + $0x360] sm:$0xff]
    %v2007 = vld [vmem:[#allocation2 + $0x368] sm:$0xff]
    %v2008 = vld [vmem:[#allocation2 + $0x370] sm:$0xff]
    %v2009 = vld [vmem:[#allocation2 + $0x378] sm:$0xff]
    %v2010 = vld [vmem:[#allocation2 + $0x380] sm:$0xff]
    %v2011 = vld [vmem:[#allocation2 + $0x388] sm:$0xff]
    %v2012 = vld [vmem:[#allocation2 + $0x390] sm:$0xff]
    %v2013 = vld [vmem:[#allocation2 + $0x398] sm:$0xff]
    %v2014 = vld [vmem:[#allocation2 + $0x3a0] sm:$0xff]
    %v2015 = vld [vmem:[#allocation2 + $0x3a8] sm:$0xff]
    %v2016 = vld [vmem:[#allocation2 + $0x3b0] sm:$0xff]
    %v2017 = vld [vmem:[#allocation2 + $0x3b8] sm:$0xff]
    %v2018 = vld [vmem:[#allocation2 + $0x3c0] sm:$0xff]
    %v2019 = vld [vmem:[#allocation2 + $0x3c8] sm:$0xff]
    %v2020 = vld [vmem:[#allocation2 + $0x3d0] sm:$0xff]
    %v2021 = vld [vmem:[#allocation2 + $0x3d8] sm:$0xff]
    %v2022 = vld [vmem:[#allocation2 + $0x3e0] sm:$0xff]
    %v2023 = vld [vmem:[#allocation2 + $0x3e8] sm:$0xff]
    %v2024 = vld [vmem:[#allocation2 + $0x3f0] sm:$0xff]
    %v2025 = vld [vmem:[#allocation2 + $0x3f8] sm:$0xff]
    %v2026 = vld [vmem:[#allocation2 + $0x400] sm:$0xff]
    %v2027 = vld [vmem:[#allocation2 + $0x408] sm:$0xff]
    %v2028 = vld [vmem:[#allocation2 + $0x410] sm:$0xff]
    %v2029 = vld [vmem:[#allocation2 + $0x418] sm:$0xff]
    %v2030 = vld [vmem:[#allocation2 + $0x420] sm:$0xff]
    %v2031 = vld [vmem:[#allocation2 + $0x428] sm:$0xff]
    %v2032 = vld [vmem:[#allocation2 + $0x430] sm:$0xff]
    %v2033 = vld [vmem:[#allocation2 + $0x438] sm:$0xff]
    %v2034 = vld [vmem:[#allocation2 + $0x440] sm:$0xff]
    %v2035 = vld [vmem:[#allocation2 + $0x448] sm:$0xff]
    %v2036 = vld [vmem:[#allocation2 + $0x450] sm:$0xff]
    %v2037 = vld [vmem:[#allocation2 + $0x458] sm:$0xff]
    %v2038 = vld [vmem:[#allocation2 + $0x460] sm:$0xff]
    %v2039 = vld [vmem:[#allocation2 + $0x468] sm:$0xff]
    %v2040 = vld [vmem:[#allocation2 + $0x470] sm:$0xff]
    %v2041 = vld [vmem:[#allocation2 + $0x478] sm:$0xff]
    %v2042 = vld [vmem:[#allocation2 + $0x480] sm:$0xff]
    %v2043 = vld [vmem:[#allocation2 + $0x488] sm:$0xff]
    %v2044 = vld [vmem:[#allocation2 + $0x490] sm:$0xff]
    %v2045 = vld [vmem:[#allocation2 + $0x498] sm:$0xff]
    %v2046 = vld [vmem:[#allocation2 + $0x4a0] sm:$0xff]
    %v2047 = vld [vmem:[#allocation2 + $0x4a8] sm:$0xff]
    %v2048 = vld [vmem:[#allocation2 + $0x4b0] sm:$0xff]
    %v2049 = vld [vmem:[#allocation2 + $0x4b8] sm:$0xff]
    %v2050 = vld [vmem:[#allocation2 + $0x4c0] sm:$0xff]
    %v2051 = vld [vmem:[#allocation2 + $0x4c8] sm:$0xff]
    %v2052 = vld [vmem:[#allocation2 + $0x4d0] sm:$0xff]
    %v2053 = vld [vmem:[#allocation2 + $0x4d8] sm:$0xff]
    %v2054 = vld [vmem:[#allocation2 + $0x4e0] sm:$0xff]
    %v2055 = vld [vmem:[#allocation2 + $0x4e8] sm:$0xff]
    %v2056 = vld [vmem:[#allocation2 + $0x4f0] sm:$0xff]
    %v2057 = vld [vmem:[#allocation2 + $0x4f8] sm:$0xff]
    %v2058 = vld [vmem:[#allocation2 + $0x500] sm:$0xff]
    %v2059 = vld [vmem:[#allocation2 + $0x508] sm:$0xff]
    %v2060 = vld [vmem:[#allocation2 + $0x510] sm:$0xff]
    %v2061 = vld [vmem:[#allocation2 + $0x518] sm:$0xff]
    %v2062 = vld [vmem:[#allocation2 + $0x520] sm:$0xff]
    %v2063 = vld [vmem:[#allocation2 + $0x528] sm:$0xff]
    %v2064 = vld [vmem:[#allocation2 + $0x530] sm:$0xff]
    %v2065 = vld [vmem:[#allocation2 + $0x538] sm:$0xff]
    %v2066 = vld [vmem:[#allocation2 + $0x540] sm:$0xff]
    %v2067 = vld [vmem:[#allocation2 + $0x548] sm:$0xff]
    %v2068 = vld [vmem:[#allocation2 + $0x550] sm:$0xff]
    %v2069 = vld [vmem:[#allocation2 + $0x558] sm:$0xff]
    %v2070 = vld [vmem:[#allocation2 + $0x560] sm:$0xff]
    %v2071 = vld [vmem:[#allocation2 + $0x568] sm:$0xff]
    %v2072 = vld [vmem:[#allocation2 + $0x570] sm:$0xff]
    %v2073 = vld [vmem:[#allocation2 + $0x578] sm:$0xff]
    %v2074 = vld [vmem:[#allocation2 + $0x580] sm:$0xff]
    %v2075 = vld [vmem:[#allocation2 + $0x588] sm:$0xff]
    %v2076 = vld [vmem:[#allocation2 + $0x590] sm:$0xff]
    %v2077 = vld [vmem:[#allocation2 + $0x598] sm:$0xff]
    %v2078 = vld [vmem:[#allocation2 + $0x5a0] sm:$0xff]
    %v2079 = vld [vmem:[#allocation2 + $0x5a8] sm:$0xff]
    %v2080 = vld [vmem:[#allocation2 + $0x5b0] sm:$0xff]
    %v2081 = vld [vmem:[#allocation2 + $0x5b8] sm:$0xff]
    %v2082 = vld [vmem:[#allocation2 + $0x5c0] sm:$0xff]
    %v2083 = vld [vmem:[#allocation2 + $0x5c8] sm:$0xff]
    %v2084 = vld [vmem:[#allocation2 + $0x5d0] sm:$0xff]
    %v2085 = vld [vmem:[#allocation2 + $0x5d8] sm:$0xff]
    %v2086 = vld [vmem:[#allocation2 + $0x5e0] sm:$0xff]
    %v2087 = vld [vmem:[#allocation2 + $0x5e8] sm:$0xff]
    %v2088 = vld [vmem:[#allocation2 + $0x5f0] sm:$0xff]
    %v2089 = vld [vmem:[#allocation2 + $0x5f8] sm:$0xff]
    %v2090 = vld [vmem:[#allocation2 + $0x600] sm:$0xff]
    %v2091 = vld [vmem:[#allocation2 + $0x608] sm:$0xff]
    %v2092 = vld [vmem:[#allocation2 + $0x610] sm:$0xff]
    %v2093 = vld [vmem:[#allocation2 + $0x618] sm:$0xff]
    %v2094 = vld [vmem:[#allocation2 + $0x620] sm:$0xff]
    %v2095 = vld [vmem:[#allocation2 + $0x628] sm:$0xff]
    %v2096 = vld [vmem:[#allocation2 + $0x630] sm:$0xff]
    %v2097 = vld [vmem:[#allocation2 + $0x638] sm:$0xff]
    %v2098 = vld [vmem:[#allocation2 + $0x640] sm:$0xff]
    %v2099 = vld [vmem:[#allocation2 + $0x648] sm:$0xff]
    %v2100 = vld [vmem:[#allocation2 + $0x650] sm:$0xff]
    %v2101 = vld [vmem:[#allocation2 + $0x658] sm:$0xff]
    %v2102 = vld [vmem:[#allocation2 + $0x660] sm:$0xff]
    %v2103 = vld [vmem:[#allocation2 + $0x668] sm:$0xff]
    %v2104 = vld [vmem:[#allocation2 + $0x670] sm:$0xff]
    %v2105 = vld [vmem:[#allocation2 + $0x678] sm:$0xff]
    %v2106 = vld [vmem:[#allocation2 + $0x680] sm:$0xff]
    %v2107 = vld [vmem:[#allocation2 + $0x688] sm:$0xff]
    %v2108 = vld [vmem:[#allocation2 + $0x690] sm:$0xff]
    %v2109 = vld [vmem:[#allocation2 + $0x698] sm:$0xff]
    %v2110 = vld [vmem:[#allocation2 + $0x6a0] sm:$0xff]
    %v2111 = vld [vmem:[#allocation2 + $0x6a8] sm:$0xff]
    %v2112 = vld [vmem:[#allocation2 + $0x6b0] sm:$0xff]
    %v2113 = vld [vmem:[#allocation2 + $0x6b8] sm:$0xff]
    %v2114 = vld [vmem:[#allocation2 + $0x6c0] sm:$0xff]
    %v2115 = vld [vmem:[#allocation2 + $0x6c8] sm:$0xff]
    %v2116 = vld [vmem:[#allocation2 + $0x6d0] sm:$0xff]
    %v2117 = vld [vmem:[#allocation2 + $0x6d8] sm:$0xff]
    %v2118 = vld [vmem:[#allocation2 + $0x6e0] sm:$0xff]
    %v2119 = vld [vmem:[#allocation2 + $0x6e8] sm:$0xff]
    %v2120 = vld [vmem:[#allocation2 + $0x6f0] sm:$0xff]
    %v2121 = vld [vmem:[#allocation2 + $0x6f8] sm:$0xff]
    %v2122 = vld [vmem:[#allocation2 + $0x700] sm:$0xff]
    %v2123 = vld [vmem:[#allocation2 + $0x708] sm:$0xff]
    %v2124 = vld [vmem:[#allocation2 + $0x710] sm:$0xff]
    %v2125 = vld [vmem:[#allocation2 + $0x718] sm:$0xff]
    %v2126 = vld [vmem:[#allocation2 + $0x720] sm:$0xff]
    %v2127 = vld [vmem:[#allocation2 + $0x728] sm:$0xff]
    %v2128 = vld [vmem:[#allocation2 + $0x730] sm:$0xff]
    %v2129 = vld [vmem:[#allocation2 + $0x738] sm:$0xff]
    %v2130 = vld [vmem:[#allocation2 + $0x740] sm:$0xff]
    %v2131 = vld [vmem:[#allocation2 + $0x748] sm:$0xff]
    %v2132 = vld [vmem:[#allocation2 + $0x750] sm:$0xff]
    %v2133 = vld [vmem:[#allocation2 + $0x758] sm:$0xff]
    %v2134 = vld [vmem:[#allocation2 + $0x760] sm:$0xff]
    %v2135 = vld [vmem:[#allocation2 + $0x768] sm:$0xff]
    %v2136 = vld [vmem:[#allocation2 + $0x770] sm:$0xff]
    %v2137 = vld [vmem:[#allocation2 + $0x778] sm:$0xff]
    %v2138 = vld [vmem:[#allocation2 + $0x780] sm:$0xff]
    %v2139 = vld [vmem:[#allocation2 + $0x788] sm:$0xff]
    %v2140 = vld [vmem:[#allocation2 + $0x790] sm:$0xff]
    %v2141 = vld [vmem:[#allocation2 + $0x798] sm:$0xff]
    %v2142 = vld [vmem:[#allocation2 + $0x7a0] sm:$0xff]
    %v2143 = vld [vmem:[#allocation2 + $0x7a8] sm:$0xff]
    %v2144 = vld [vmem:[#allocation2 + $0x7b0] sm:$0xff]
    %v2145 = vld [vmem:[#allocation2 + $0x7b8] sm:$0xff]
    %v2146 = vld [vmem:[#allocation2 + $0x7c0] sm:$0xff]
    %v2147 = vld [vmem:[#allocation2 + $0x7c8] sm:$0xff]
    %v2148 = vld [vmem:[#allocation2 + $0x7d0] sm:$0xff]
    %v2149 = vld [vmem:[#allocation2 + $0x7d8] sm:$0xff]
    %v2150 = vld [vmem:[#allocation2 + $0x7e0] sm:$0xff]
    %v2151 = vld [vmem:[#allocation2 + $0x7e8] sm:$0xff]
    %v2152 = vld [vmem:[#allocation2 + $0x7f0] sm:$0xff]
    %v2153 = vld [vmem:[#allocation2 + $0x7f8] sm:$0xff]
    %v2154 = vld [vmem:[#allocation2 + $0x800] sm:$0xff]
    %v2155 = vld [vmem:[#allocation2 + $0x808] sm:$0xff]
    %v2156 = vld [vmem:[#allocation2 + $0x810] sm:$0xff]
    %v2157 = vld [vmem:[#allocation2 + $0x818] sm:$0xff]
    %v2158 = vld [vmem:[#allocation2 + $0x840] sm:$0xff]
    %v2159 = vld [vmem:[#allocation2 + $0x848] sm:$0xff]
    %v2160 = vld [vmem:[#allocation2 + $0x850] sm:$0xff]
    %v2161 = vld [vmem:[#allocation2 + $0x858] sm:$0xff]
    %v2162 = vld [vmem:[#allocation2 + $0x880] sm:$0xff]
    %v2163 = vld [vmem:[#allocation2 + $0x888] sm:$0xff]
    %v2164 = vld [vmem:[#allocation2 + $0x890] sm:$0xff]
    %v2165 = vld [vmem:[#allocation2 + $0x898] sm:$0xff]
    %v2166 = vld [vmem:[#allocation2 + $0x8c0] sm:$0xff]
    %v2167 = vld [vmem:[#allocation2 + $0x8c8] sm:$0xff]
    %v2168 = vld [vmem:[#allocation2 + $0x8d0] sm:$0xff]
    %v2169 = vld [vmem:[#allocation2 + $0x8d8] sm:$0xff]
    %v2170 = vld [vmem:[#allocation2 + $0x900] sm:$0xff]
    %v2171 = vld [vmem:[#allocation2 + $0x908] sm:$0xff]
    %v2172 = vld [vmem:[#allocation2 + $0x910] sm:$0xff]
    %v2173 = vld [vmem:[#allocation2 + $0x918] sm:$0xff]
    %v2174 = vld [vmem:[#allocation2 + $0x940] sm:$0xff]
    %v2175 = vld [vmem:[#allocation2 + $0x948] sm:$0xff]
    %v2176 = vld [vmem:[#allocation2 + $0x950] sm:$0xff]
    %v2177 = vld [vmem:[#allocation2 + $0x958] sm:$0xff]
    %v2178 = vld [vmem:[#allocation2 + $0x980] sm:$0xff]
    %v2179 = vld [vmem:[#allocation2 + $0x988] sm:$0xff]
    %v2180 = vld [vmem:[#allocation2 + $0x990] sm:$0xff]
    %v2181 = vld [vmem:[#allocation2 + $0x998] sm:$0xff]
    %v2182 = vld [vmem:[#allocation2 + $0x9c0] sm:$0xff]
    %v2183 = vld [vmem:[#allocation2 + $0x9c8] sm:$0xff]
    %v2184 = vld [vmem:[#allocation2 + $0x9d0] sm:$0xff]
    %v2185 = vld [vmem:[#allocation2 + $0x9d8] sm:$0xff]
    %v2186 = vld [vmem:[#allocation2 + $0xa00] sm:$0xff]
    %v2187 = vld [vmem:[#allocation2 + $0xa08] sm:$0xff]
    %v2188 = vld [vmem:[#allocation2 + $0xa10] sm:$0xff]
    %v2189 = vld [vmem:[#allocation2 + $0xa18] sm:$0xff]
    %v2190 = vld [vmem:[#allocation2 + $0xa40] sm:$0xff]
    %v2191 = vld [vmem:[#allocation2 + $0xa48] sm:$0xff]
    %v2192 = vld [vmem:[#allocation2 + $0xa50] sm:$0xff]
    %v2193 = vld [vmem:[#allocation2 + $0xa58] sm:$0xff]
    %v2194 = vld [vmem:[#allocation2 + $0xa80] sm:$0xff]
    %v2195 = vld [vmem:[#allocation2 + $0xa88] sm:$0xff]
    %v2196 = vld [vmem:[#allocation2 + $0xa90] sm:$0xff]
    %v2197 = vld [vmem:[#allocation2 + $0xa98] sm:$0xff]
    %v2198 = vld [vmem:[#allocation2 + $0xac0] sm:$0xff]
    %v2199 = vld [vmem:[#allocation2 + $0xac8] sm:$0xff]
    %v2200 = vld [vmem:[#allocation2 + $0xad0] sm:$0xff]
    %v2201 = vld [vmem:[#allocation2 + $0xad8] sm:$0xff]
    %v2202 = vld [vmem:[#allocation2 + $0xb00] sm:$0xff]
    %v2203 = vld [vmem:[#allocation2 + $0xb08] sm:$0xff]
    %v2204 = vld [vmem:[#allocation2 + $0xb10] sm:$0xff]
    %v2205 = vld [vmem:[#allocation2 + $0xb18] sm:$0xff]
    %v2206 = vld [vmem:[#allocation2 + $0xb40] sm:$0xff]
    %v2207 = vld [vmem:[#allocation2 + $0xb48] sm:$0xff]
    %v2208 = vld [vmem:[#allocation2 + $0xb50] sm:$0xff]
    %v2209 = vld [vmem:[#allocation2 + $0xb58] sm:$0xff]
    %v2210 = vld [vmem:[#allocation2 + $0xb80] sm:$0xff]
    %v2211 = vld [vmem:[#allocation2 + $0xb88] sm:$0xff]
    %v2212 = vld [vmem:[#allocation2 + $0xb90] sm:$0xff]
    %v2213 = vld [vmem:[#allocation2 + $0xb98] sm:$0xff]
    %v2214 = vld [vmem:[#allocation2 + $0xbc0] sm:$0xff]
    %v2215 = vld [vmem:[#allocation2 + $0xbc8] sm:$0xff]
    %v2216 = vld [vmem:[#allocation2 + $0xbd0] sm:$0xff]
    %v2217 = vld [vmem:[#allocation2 + $0xbd8] sm:$0xff]
    %v2218 = vld [vmem:[#allocation2 + $0x820] sm:$0xff]
    %v2219 = vld [vmem:[#allocation2 + $0x828] sm:$0xff]
    %v2220 = vld [vmem:[#allocation2 + $0x830] sm:$0xff]
    %v2221 = vld [vmem:[#allocation2 + $0x838] sm:$0xff]
    %v2222 = vld [vmem:[#allocation2 + $0x860] sm:$0xff]
    %v2223 = vld [vmem:[#allocation2 + $0x868] sm:$0xff]
    %v2224 = vld [vmem:[#allocation2 + $0x870] sm:$0xff]
    %v2225 = vld [vmem:[#allocation2 + $0x878] sm:$0xff]
    %v2226 = vld [vmem:[#allocation2 + $0x8a0] sm:$0xff]
    %v2227 = vld [vmem:[#allocation2 + $0x8a8] sm:$0xff]
    %v2228 = vld [vmem:[#allocation2 + $0x8b0] sm:$0xff]
    %v2229 = vld [vmem:[#allocation2 + $0x8b8] sm:$0xff]
    %v2230 = vld [vmem:[#allocation2 + $0x8e0] sm:$0xff]
    %v2231 = vld [vmem:[#allocation2 + $0x8e8] sm:$0xff]
    %v2232 = vld [vmem:[#allocation2 + $0x8f0] sm:$0xff]
    %v2233 = vld [vmem:[#allocation2 + $0x8f8] sm:$0xff]
    %v2234 = vld [vmem:[#allocation2 + $0x920] sm:$0xff]
    %v2235 = vld [vmem:[#allocation2 + $0x928] sm:$0xff]
    %v2236 = vld [vmem:[#allocation2 + $0x930] sm:$0xff]
    %v2237 = vld [vmem:[#allocation2 + $0x938] sm:$0xff]
    %v2238 = vld [vmem:[#allocation2 + $0x960] sm:$0xff]
    %v2239 = vld [vmem:[#allocation2 + $0x968] sm:$0xff]
    %v2240 = vld [vmem:[#allocation2 + $0x970] sm:$0xff]
    %v2241 = vld [vmem:[#allocation2 + $0x978] sm:$0xff]
    %v2242 = vld [vmem:[#allocation2 + $0x9a0] sm:$0xff]
    %v2243 = vld [vmem:[#allocation2 + $0x9a8] sm:$0xff]
    %v2244 = vld [vmem:[#allocation2 + $0x9b0] sm:$0xff]
    %v2245 = vld [vmem:[#allocation2 + $0x9b8] sm:$0xff]
    %v2246 = vld [vmem:[#allocation2 + $0x9e0] sm:$0xff]
    %v2247 = vld [vmem:[#allocation2 + $0x9e8] sm:$0xff]
    %v2248 = vld [vmem:[#allocation2 + $0x9f0] sm:$0xff]
    %v2249 = vld [vmem:[#allocation2 + $0x9f8] sm:$0xff]
    %v2250 = vld [vmem:[#allocation2 + $0xa20] sm:$0xff]
    %v2251 = vld [vmem:[#allocation2 + $0xa28] sm:$0xff]
    %v2252 = vld [vmem:[#allocation2 + $0xa30] sm:$0xff]
    %v2253 = vld [vmem:[#allocation2 + $0xa38] sm:$0xff]
    %v2254 = vld [vmem:[#allocation2 + $0xa60] sm:$0xff]
    %v2255 = vld [vmem:[#allocation2 + $0xa68] sm:$0xff]
    %v2256 = vld [vmem:[#allocation2 + $0xa70] sm:$0xff]
    %v2257 = vld [vmem:[#allocation2 + $0xa78] sm:$0xff]
    %v2258 = vld [vmem:[#allocation2 + $0xaa0] sm:$0xff]
    %v2259 = vld [vmem:[#allocation2 + $0xaa8] sm:$0xff]
    %v2260 = vld [vmem:[#allocation2 + $0xab0] sm:$0xff]
    %v2261 = vld [vmem:[#allocation2 + $0xab8] sm:$0xff]
    %v2262 = vld [vmem:[#allocation2 + $0xae0] sm:$0xff]
    %v2263 = vld [vmem:[#allocation2 + $0xae8] sm:$0xff]
    %v2264 = vld [vmem:[#allocation2 + $0xaf0] sm:$0xff]
    %v2265 = vld [vmem:[#allocation2 + $0xaf8] sm:$0xff]
    %v2266 = vld [vmem:[#allocation2 + $0xb20] sm:$0xff]
    %v2267 = vld [vmem:[#allocation2 + $0xb28] sm:$0xff]
    %v2268 = vld [vmem:[#allocation2 + $0xb30] sm:$0xff]
    %v2269 = vld [vmem:[#allocation2 + $0xb38] sm:$0xff]
    %v2270 = vld [vmem:[#allocation2 + $0xb60] sm:$0xff]
    %v2271 = vld [vmem:[#allocation2 + $0xb68] sm:$0xff]
    %v2272 = vld [vmem:[#allocation2 + $0xb70] sm:$0xff]
    %v2273 = vld [vmem:[#allocation2 + $0xb78] sm:$0xff]
    %v2274 = vld [vmem:[#allocation2 + $0xba0] sm:$0xff]
    %v2275 = vld [vmem:[#allocation2 + $0xba8] sm:$0xff]
    %v2276 = vld [vmem:[#allocation2 + $0xbb0] sm:$0xff]
    %v2277 = vld [vmem:[#allocation2 + $0xbb8] sm:$0xff]
    %v2278 = vld [vmem:[#allocation2 + $0xbe0] sm:$0xff]
    %v2279 = vld [vmem:[#allocation2 + $0xbe8] sm:$0xff]
    %v2280 = vld [vmem:[#allocation2 + $0xbf0] sm:$0xff]
    %v2281 = vld [vmem:[#allocation2 + $0xbf8] sm:$0xff]
    %s2282 = scalar_lea.vmem [#allocation2], 3072
    %v2283 = vld [vmem:[%s2282] ss:$8 sm:$0xf]
    %v2284 = vld [vmem:[%s2282] ss:$8 sm:$0xf0]
    %v2285 = vor.u32 %v2283, %v2284
    %v2286 = vld [vmem:[#allocation4] sm:$0xff]
    %v2287 = vld [vmem:[#allocation4 + $0x8] sm:$0xff]
    %v2288 = vld [vmem:[#allocation4 + $0x10] sm:$0xff]
    %v2289 = vld [vmem:[#allocation4 + $0x18] sm:$0xff]
    %v2290 = vld [vmem:[#allocation4 + $0x20] sm:$0xff]
    %v2291 = vld [vmem:[#allocation4 + $0x28] sm:$0xff]
    %v2292 = vld [vmem:[#allocation4 + $0x30] sm:$0xff]
    %v2293 = vld [vmem:[#allocation4 + $0x38] sm:$0xff]
    %v2294 = vld [vmem:[#allocation4 + $0x40] sm:$0xff]
    %v2295 = vld [vmem:[#allocation4 + $0x48] sm:$0xff]
    %v2296 = vld [vmem:[#allocation4 + $0x50] sm:$0xff]
    %v2297 = vld [vmem:[#allocation4 + $0x58] sm:$0xff]
    %v2298 = vld [vmem:[#allocation4 + $0x60] sm:$0xff]
    %v2299 = vld [vmem:[#allocation4 + $0x68] sm:$0xff]
    %v2300 = vld [vmem:[#allocation4 + $0x70] sm:$0xff]
    %v2301 = vld [vmem:[#allocation4 + $0x78] sm:$0xff]
    %v2303 = vlaneseq
    %v2304 = vshrl.u32 %v2303, 7
    %v2305 = vsub.s32 0, %v2304
    %v2306 = vrot.slane %v2285, %v2305
    %v2307 = vlaneseq
    %v2308 = vshrl.u32 %v2307, 7
    %v2309 = vsub.s32 1, %v2308
    %v2310 = vrot.slane %v2285, %v2309
    %v2311 = vlaneseq
    %v2312 = vshrl.u32 %v2311, 7
    %v2313 = vsub.s32 2, %v2312
    %v2314 = vrot.slane %v2285, %v2313
    %v2315 = vlaneseq
    %v2316 = vshrl.u32 %v2315, 7
    %v2317 = vsub.s32 3, %v2316
    %v2318 = vrot.slane %v2285, %v2317
    %v2319 = vlaneseq
    %v2320 = vshrl.u32 %v2319, 7
    %v2321 = vsub.s32 4, %v2320
    %v2322 = vrot.slane %v2285, %v2321
    %v2323 = vlaneseq
    %v2324 = vshrl.u32 %v2323, 7
    %v2325 = vsub.s32 5, %v2324
    %v2326 = vrot.slane %v2285, %v2325
    %v2327 = vlaneseq
    %v2328 = vshrl.u32 %v2327, 7
    %v2329 = vsub.s32 6, %v2328
    %v2330 = vrot.slane %v2285, %v2329
    %v2331 = vlaneseq
    %v2332 = vshrl.u32 %v2331, 7
    %v2333 = vsub.s32 7, %v2332
    %v2334 = vrot.slane %v2285, %v2333
    %2343 = vmatprep.subr.mxu0 %v2019
    %2344 = vmatpush1.msra.mxu0 %v2018
    %2345 = vmatprep.subr.mxu0 %v2011
    %2346 = vmatpush1.msra.mxu0 %v2010
    %2347 = vmatprep.subr.mxu0 %v2003
    %2348 = vmatpush1.msra.mxu0 %v2002
    %2349 = vmatprep.subr.mxu0 %v1995
    %2350 = vmatpush1.msra.mxu0 %v1994
    %2351 = vmatprep.subr.mxu0 %v1987
    %2352 = vmatpush1.msra.mxu0 %v1986
    %2353 = vmatprep.subr.mxu0 %v1979
    %2354 = vmatpush1.msra.mxu0 %v1978
    %2355 = vmatprep.subr.mxu0 %v1971
    %2356 = vmatpush1.msra.mxu0 %v1970
    %2357 = vmatprep.subr.mxu0 %v1963
    %2358 = vmatpush1.msra.mxu0 %v1962
    %2359 = vmatprep.subr.mxu0 %v1955
    %2360 = vmatpush1.msra.mxu0 %v1954
    %2361 = vmatprep.subr.mxu0 %v1947
    %2362 = vmatpush1.msra.mxu0 %v1946
    %2363 = vmatprep.subr.mxu0 %v1939
    %2364 = vmatpush1.msra.mxu0 %v1938
    %2365 = vmatprep.subr.mxu0 %v1931
    %2366 = vmatpush1.msra.mxu0 %v1930
    %2367 = vmatprep.subr.mxu0 %v1923
    %2368 = vmatpush1.msra.mxu0 %v1922
    %2369 = vmatprep.subr.mxu0 %v1915
    %2370 = vmatpush1.msra.mxu0 %v1914
    %2371 = vmatprep.subr.mxu0 %v1907
    %2372 = vmatpush1.msra.mxu0 %v1906
    %2373 = vmatprep.subr.mxu0 %v1899
    %2374 = vmatpush1.msra.mxu0 %v1898
    %2375 = vmatprep.subr.mxu0 %v2147
    %2376 = vmatpush2.msra.mxu0 %v2146
    %2377 = vmatprep.subr.mxu0 %v2139
    %2378 = vmatpush2.msra.mxu0 %v2138
    %2379 = vmatprep.subr.mxu0 %v2131
    %2380 = vmatpush2.msra.mxu0 %v2130
    %2381 = vmatprep.subr.mxu0 %v2123
    %2382 = vmatpush2.msra.mxu0 %v2122
    %2383 = vmatprep.subr.mxu0 %v2115
    %2384 = vmatpush2.msra.mxu0 %v2114
    %2385 = vmatprep.subr.mxu0 %v2107
    %2386 = vmatpush2.msra.mxu0 %v2106
    %2387 = vmatprep.subr.mxu0 %v2099
    %2388 = vmatpush2.msra.mxu0 %v2098
    %2389 = vmatprep.subr.mxu0 %v2091
    %2390 = vmatpush2.msra.mxu0 %v2090
    %2391 = vmatprep.subr.mxu0 %v2083
    %2392 = vmatpush2.msra.mxu0 %v2082
    %2393 = vmatprep.subr.mxu0 %v2075
    %2394 = vmatpush2.msra.mxu0 %v2074
    %2395 = vmatprep.subr.mxu0 %v2067
    %2396 = vmatpush2.msra.mxu0 %v2066
    %2397 = vmatprep.subr.mxu0 %v2059
    %2398 = vmatpush2.msra.mxu0 %v2058
    %2399 = vmatprep.subr.mxu0 %v2051
    %2400 = vmatpush2.msra.mxu0 %v2050
    %2401 = vmatprep.subr.mxu0 %v2043
    %2402 = vmatpush2.msra.mxu0 %v2042
    %2403 = vmatprep.subr.mxu0 %v2035
    %2404 = vmatpush2.msra.mxu0 %v2034
    %2405 = vmatprep.subr.mxu0 %v2027
    %2406 = vmatpush2.msra.mxu0 %v2026
    %2407 = vmatprep.mubr.f32.mxu0 %v2287
    %2408 = vmatmul.mubr.f32.gmra.mxu0 %v2286
    %v2409 = vpop.f32.mrf.mxu0
    %v2410 = vadd.f32 %v2306, %v2409
    %v2411 = vpop.f32.mrf.mxu0
    %v2412 = vadd.f32 %v2310, %v2411
    %2413 = vmatprep.mubr.f32.mxu0 %v2289
    %2414 = vmatmul.mubr.f32.gmra.mxu0 %v2288
    %v2415 = vpop.f32.mrf.mxu0
    %v2416 = vadd.f32 %v2306, %v2415
    %v2417 = vpop.f32.mrf.mxu0
    %v2418 = vadd.f32 %v2310, %v2417
    %2419 = vmatprep.mubr.f32.mxu0 %v2291
    %2420 = vmatmul.mubr.f32.gmra.mxu0 %v2290
    %v2421 = vpop.f32.mrf.mxu0
    %v2422 = vadd.f32 %v2306, %v2421
    %v2423 = vpop.f32.mrf.mxu0
    %v2424 = vadd.f32 %v2310, %v2423
    %2425 = vmatprep.mubr.f32.mxu0 %v2293
    %2426 = vmatmul.mubr.f32.gmra.mxu0 %v2292
    %v2427 = vpop.f32.mrf.mxu0
    %v2428 = vadd.f32 %v2306, %v2427
    %v2429 = vpop.f32.mrf.mxu0
    %v2430 = vadd.f32 %v2310, %v2429
    %2431 = vmatprep.mubr.f32.mxu0 %v2295
    %2432 = vmatmul.mubr.f32.gmra.mxu0 %v2294
    %v2433 = vpop.f32.mrf.mxu0
    %v2434 = vadd.f32 %v2306, %v2433
    %v2435 = vpop.f32.mrf.mxu0
    %v2436 = vadd.f32 %v2310, %v2435
    %2437 = vmatprep.mubr.f32.mxu0 %v2297
    %2438 = vmatmul.mubr.f32.gmra.mxu0 %v2296
    %v2439 = vpop.f32.mrf.mxu0
    %v2440 = vadd.f32 %v2306, %v2439
    %v2441 = vpop.f32.mrf.mxu0
    %v2442 = vadd.f32 %v2310, %v2441
    %2443 = vmatprep.mubr.f32.mxu0 %v2299
    %2444 = vmatmul.mubr.f32.gmra.mxu0 %v2298
    %v2445 = vpop.f32.mrf.mxu0
    %v2446 = vadd.f32 %v2306, %v2445
    %v2447 = vpop.f32.mrf.mxu0
    %v2448 = vadd.f32 %v2310, %v2447
    %2449 = vmatprep.mubr.f32.mxu0 %v2301
    %2450 = vmatmul.mubr.f32.gmra.mxu0 %v2300
    %v2451 = vpop.f32.mrf.mxu0
    %v2452 = vadd.f32 %v2306, %v2451
    %v2453 = vpop.f32.mrf.mxu0
    %v2454 = vadd.f32 %v2310, %v2453
    %2455 = vdwg.mxu0
    %2456 = vmatprep.subr.mxu0 %v2021
    %2457 = vmatpush1.msra.mxu0 %v2020
    %2458 = vmatprep.subr.mxu0 %v2013
    %2459 = vmatpush1.msra.mxu0 %v2012
    %2460 = vmatprep.subr.mxu0 %v2005
    %2461 = vmatpush1.msra.mxu0 %v2004
    %2462 = vmatprep.subr.mxu0 %v1997
    %2463 = vmatpush1.msra.mxu0 %v1996
    %2464 = vmatprep.subr.mxu0 %v1989
    %2465 = vmatpush1.msra.mxu0 %v1988
    %2466 = vmatprep.subr.mxu0 %v1981
    %2467 = vmatpush1.msra.mxu0 %v1980
    %2468 = vmatprep.subr.mxu0 %v1973
    %2469 = vmatpush1.msra.mxu0 %v1972
    %2470 = vmatprep.subr.mxu0 %v1965
    %2471 = vmatpush1.msra.mxu0 %v1964
    %2472 = vmatprep.subr.mxu0 %v1957
    %2473 = vmatpush1.msra.mxu0 %v1956
    %2474 = vmatprep.subr.mxu0 %v1949
    %2475 = vmatpush1.msra.mxu0 %v1948
    %2476 = vmatprep.subr.mxu0 %v1941
    %2477 = vmatpush1.msra.mxu0 %v1940
    %2478 = vmatprep.subr.mxu0 %v1933
    %2479 = vmatpush1.msra.mxu0 %v1932
    %2480 = vmatprep.subr.mxu0 %v1925
    %2481 = vmatpush1.msra.mxu0 %v1924
    %2482 = vmatprep.subr.mxu0 %v1917
    %2483 = vmatpush1.msra.mxu0 %v1916
    %2484 = vmatprep.subr.mxu0 %v1909
    %2485 = vmatpush1.msra.mxu0 %v1908
    %2486 = vmatprep.subr.mxu0 %v1901
    %2487 = vmatpush1.msra.mxu0 %v1900
    %2488 = vmatprep.subr.mxu0 %v2149
    %2489 = vmatpush2.msra.mxu0 %v2148
    %2490 = vmatprep.subr.mxu0 %v2141
    %2491 = vmatpush2.msra.mxu0 %v2140
    %2492 = vmatprep.subr.mxu0 %v2133
    %2493 = vmatpush2.msra.mxu0 %v2132
    %2494 = vmatprep.subr.mxu0 %v2125
    %2495 = vmatpush2.msra.mxu0 %v2124
    %2496 = vmatprep.subr.mxu0 %v2117
    %2497 = vmatpush2.msra.mxu0 %v2116
    %2498 = vmatprep.subr.mxu0 %v2109
    %2499 = vmatpush2.msra.mxu0 %v2108
    %2500 = vmatprep.subr.mxu0 %v2101
    %2501 = vmatpush2.msra.mxu0 %v2100
    %2502 = vmatprep.subr.mxu0 %v2093
    %2503 = vmatpush2.msra.mxu0 %v2092
    %2504 = vmatprep.subr.mxu0 %v2085
    %2505 = vmatpush2.msra.mxu0 %v2084
    %2506 = vmatprep.subr.mxu0 %v2077
    %2507 = vmatpush2.msra.mxu0 %v2076
    %2508 = vmatprep.subr.mxu0 %v2069
    %2509 = vmatpush2.msra.mxu0 %v2068
    %2510 = vmatprep.subr.mxu0 %v2061
    %2511 = vmatpush2.msra.mxu0 %v2060
    %2512 = vmatprep.subr.mxu0 %v2053
    %2513 = vmatpush2.msra.mxu0 %v2052
    %2514 = vmatprep.subr.mxu0 %v2045
    %2515 = vmatpush2.msra.mxu0 %v2044
    %2516 = vmatprep.subr.mxu0 %v2037
    %2517 = vmatpush2.msra.mxu0 %v2036
    %2518 = vmatprep.subr.mxu0 %v2029
    %2519 = vmatpush2.msra.mxu0 %v2028
    %2520 = vmatprep.mubr.f32.mxu0 %v2287
    %2521 = vmatmul.mubr.f32.gmra.mxu0 %v2286
    %v2522 = vpop.f32.mrf.mxu0
    %v2523 = vadd.f32 %v2314, %v2522
    %v2524 = vpop.f32.mrf.mxu0
    %v2525 = vadd.f32 %v2318, %v2524
    %2526 = vmatprep.mubr.f32.mxu0 %v2289
    %2527 = vmatmul.mubr.f32.gmra.mxu0 %v2288
    %v2528 = vpop.f32.mrf.mxu0
    %v2529 = vadd.f32 %v2314, %v2528
    %v2530 = vpop.f32.mrf.mxu0
    %v2531 = vadd.f32 %v2318, %v2530
    %2532 = vmatprep.mubr.f32.mxu0 %v2291
    %2533 = vmatmul.mubr.f32.gmra.mxu0 %v2290
    %v2534 = vpop.f32.mrf.mxu0
    %v2535 = vadd.f32 %v2314, %v2534
    %v2536 = vpop.f32.mrf.mxu0
    %v2537 = vadd.f32 %v2318, %v2536
    %2538 = vmatprep.mubr.f32.mxu0 %v2293
    %2539 = vmatmul.mubr.f32.gmra.mxu0 %v2292
    %v2540 = vpop.f32.mrf.mxu0
    %v2541 = vadd.f32 %v2314, %v2540
    %v2542 = vpop.f32.mrf.mxu0
    %v2543 = vadd.f32 %v2318, %v2542
    %2544 = vmatprep.mubr.f32.mxu0 %v2295
    %2545 = vmatmul.mubr.f32.gmra.mxu0 %v2294
    %v2546 = vpop.f32.mrf.mxu0
    %v2547 = vadd.f32 %v2314, %v2546
    %v2548 = vpop.f32.mrf.mxu0
    %v2549 = vadd.f32 %v2318, %v2548
    %2550 = vmatprep.mubr.f32.mxu0 %v2297
    %2551 = vmatmul.mubr.f32.gmra.mxu0 %v2296
    %v2552 = vpop.f32.mrf.mxu0
    %v2553 = vadd.f32 %v2314, %v2552
    %v2554 = vpop.f32.mrf.mxu0
    %v2555 = vadd.f32 %v2318, %v2554
    %2556 = vmatprep.mubr.f32.mxu0 %v2299
    %2557 = vmatmul.mubr.f32.gmra.mxu0 %v2298
    %v2558 = vpop.f32.mrf.mxu0
    %v2559 = vadd.f32 %v2314, %v2558
    %v2560 = vpop.f32.mrf.mxu0
    %v2561 = vadd.f32 %v2318, %v2560
    %2562 = vmatprep.mubr.f32.mxu0 %v2301
    %2563 = vmatmul.mubr.f32.gmra.mxu0 %v2300
    %v2564 = vpop.f32.mrf.mxu0
    %v2565 = vadd.f32 %v2314, %v2564
    %v2566 = vpop.f32.mrf.mxu0
    %v2567 = vadd.f32 %v2318, %v2566
    %2568 = vdwg.mxu0
    %2569 = vmatprep.subr.mxu0 %v2023
    %2570 = vmatpush1.msra.mxu0 %v2022
    %2571 = vmatprep.subr.mxu0 %v2015
    %2572 = vmatpush1.msra.mxu0 %v2014
    %2573 = vmatprep.subr.mxu0 %v2007
    %2574 = vmatpush1.msra.mxu0 %v2006
    %2575 = vmatprep.subr.mxu0 %v1999
    %2576 = vmatpush1.msra.mxu0 %v1998
    %2577 = vmatprep.subr.mxu0 %v1991
    %2578 = vmatpush1.msra.mxu0 %v1990
    %2579 = vmatprep.subr.mxu0 %v1983
    %2580 = vmatpush1.msra.mxu0 %v1982
    %2581 = vmatprep.subr.mxu0 %v1975
    %2582 = vmatpush1.msra.mxu0 %v1974
    %2583 = vmatprep.subr.mxu0 %v1967
    %2584 = vmatpush1.msra.mxu0 %v1966
    %2585 = vmatprep.subr.mxu0 %v1959
    %2586 = vmatpush1.msra.mxu0 %v1958
    %2587 = vmatprep.subr.mxu0 %v1951
    %2588 = vmatpush1.msra.mxu0 %v1950
    %2589 = vmatprep.subr.mxu0 %v1943
    %2590 = vmatpush1.msra.mxu0 %v1942
    %2591 = vmatprep.subr.mxu0 %v1935
    %2592 = vmatpush1.msra.mxu0 %v1934
    %2593 = vmatprep.subr.mxu0 %v1927
    %2594 = vmatpush1.msra.mxu0 %v1926
    %2595 = vmatprep.subr.mxu0 %v1919
    %2596 = vmatpush1.msra.mxu0 %v1918
    %2597 = vmatprep.subr.mxu0 %v1911
    %2598 = vmatpush1.msra.mxu0 %v1910
    %2599 = vmatprep.subr.mxu0 %v1903
    %2600 = vmatpush1.msra.mxu0 %v1902
    %2601 = vmatprep.subr.mxu0 %v2151
    %2602 = vmatpush2.msra.mxu0 %v2150
    %2603 = vmatprep.subr.mxu0 %v2143
    %2604 = vmatpush2.msra.mxu0 %v2142
    %2605 = vmatprep.subr.mxu0 %v2135
    %2606 = vmatpush2.msra.mxu0 %v2134
    %2607 = vmatprep.subr.mxu0 %v2127
    %2608 = vmatpush2.msra.mxu0 %v2126
    %2609 = vmatprep.subr.mxu0 %v2119
    %2610 = vmatpush2.msra.mxu0 %v2118
    %2611 = vmatprep.subr.mxu0 %v2111
    %2612 = vmatpush2.msra.mxu0 %v2110
    %2613 = vmatprep.subr.mxu0 %v2103
    %2614 = vmatpush2.msra.mxu0 %v2102
    %2615 = vmatprep.subr.mxu0 %v2095
    %2616 = vmatpush2.msra.mxu0 %v2094
    %2617 = vmatprep.subr.mxu0 %v2087
    %2618 = vmatpush2.msra.mxu0 %v2086
    %2619 = vmatprep.subr.mxu0 %v2079
    %2620 = vmatpush2.msra.mxu0 %v2078
    %2621 = vmatprep.subr.mxu0 %v2071
    %2622 = vmatpush2.msra.mxu0 %v2070
    %2623 = vmatprep.subr.mxu0 %v2063
    %2624 = vmatpush2.msra.mxu0 %v2062
    %2625 = vmatprep.subr.mxu0 %v2055
    %2626 = vmatpush2.msra.mxu0 %v2054
    %2627 = vmatprep.subr.mxu0 %v2047
    %2628 = vmatpush2.msra.mxu0 %v2046
    %2629 = vmatprep.subr.mxu0 %v2039
    %2630 = vmatpush2.msra.mxu0 %v2038
    %2631 = vmatprep.subr.mxu0 %v2031
    %2632 = vmatpush2.msra.mxu0 %v2030
    %2633 = vmatprep.mubr.f32.mxu0 %v2287
    %2634 = vmatmul.mubr.f32.gmra.mxu0 %v2286
    %v2635 = vpop.f32.mrf.mxu0
    %v2636 = vpop.f32.mrf.mxu0
    %2637 = vmatprep.mubr.f32.mxu0 %v2289
    %2638 = vmatmul.mubr.f32.gmra.mxu0 %v2288
    %v2639 = vpop.f32.mrf.mxu0
    %v2640 = vpop.f32.mrf.mxu0
    %2641 = vmatprep.mubr.f32.mxu0 %v2291
    %2642 = vmatmul.mubr.f32.gmra.mxu0 %v2290
    %v2643 = vpop.f32.mrf.mxu0
    %v2644 = vpop.f32.mrf.mxu0
    %2645 = vmatprep.mubr.f32.mxu0 %v2293
    %2646 = vmatmul.mubr.f32.gmra.mxu0 %v2292
    %v2647 = vpop.f32.mrf.mxu0
    %v2648 = vpop.f32.mrf.mxu0
    %2649 = vmatprep.mubr.f32.mxu0 %v2295
    %2650 = vmatmul.mubr.f32.gmra.mxu0 %v2294
    %v2651 = vpop.f32.mrf.mxu0
    %v2652 = vpop.f32.mrf.mxu0
    %2653 = vmatprep.mubr.f32.mxu0 %v2297
    %2654 = vmatmul.mubr.f32.gmra.mxu0 %v2296
    %v2655 = vpop.f32.mrf.mxu0
    %v2656 = vpop.f32.mrf.mxu0
    %2657 = vmatprep.mubr.f32.mxu0 %v2299
    %2658 = vmatmul.mubr.f32.gmra.mxu0 %v2298
    %v2659 = vpop.f32.mrf.mxu0
    %v2660 = vpop.f32.mrf.mxu0
    %2661 = vmatprep.mubr.f32.mxu0 %v2301
    %2662 = vmatmul.mubr.f32.gmra.mxu0 %v2300
    %v2663 = vpop.f32.mrf.mxu0
    %v2664 = vadd.f32 %v2322, %v2663
    %v2665 = vpop.f32.mrf.mxu0
    %v2666 = vadd.f32 %v2326, %v2665
    %2667 = vdwg.mxu0
    %2668 = vmatprep.subr.mxu0 %v2025
    %2669 = vmatpush1.msra.mxu0 %v2024
    %2670 = vmatprep.subr.mxu0 %v2017
    %2671 = vmatpush1.msra.mxu0 %v2016
    %2672 = vmatprep.subr.mxu0 %v2009
    %2673 = vmatpush1.msra.mxu0 %v2008
    %2674 = vmatprep.subr.mxu0 %v2001
    %2675 = vmatpush1.msra.mxu0 %v2000
    %2676 = vmatprep.subr.mxu0 %v1993
    %2677 = vmatpush1.msra.mxu0 %v1992
    %2678 = vmatprep.subr.mxu0 %v1985
    %2679 = vmatpush1.msra.mxu0 %v1984
    %2680 = vmatprep.subr.mxu0 %v1977
    %2681 = vmatpush1.msra.mxu0 %v1976
    %2682 = vmatprep.subr.mxu0 %v1969
    %2683 = vmatpush1.msra.mxu0 %v1968
    %2684 = vmatprep.subr.mxu0 %v1961
    %2685 = vmatpush1.msra.mxu0 %v1960
    %2686 = vmatprep.subr.mxu0 %v1953
    %2687 = vmatpush1.msra.mxu0 %v1952
    %2688 = vmatprep.subr.mxu0 %v1945
    %2689 = vmatpush1.msra.mxu0 %v1944
    %2690 = vmatprep.subr.mxu0 %v1937
    %2691 = vmatpush1.msra.mxu0 %v1936
    %2692 = vmatprep.subr.mxu0 %v1929
    %2693 = vmatpush1.msra.mxu0 %v1928
    %2694 = vmatprep.subr.mxu0 %v1921
    %2695 = vmatpush1.msra.mxu0 %v1920
    %2696 = vmatprep.subr.mxu0 %v1913
    %2697 = vmatpush1.msra.mxu0 %v1912
    %2698 = vmatprep.subr.mxu0 %v1905
    %2699 = vmatpush1.msra.mxu0 %v1904
    %2700 = vmatprep.subr.mxu0 %v2153
    %2701 = vmatpush2.msra.mxu0 %v2152
    %2702 = vmatprep.subr.mxu0 %v2145
    %2703 = vmatpush2.msra.mxu0 %v2144
    %2704 = vmatprep.subr.mxu0 %v2137
    %2705 = vmatpush2.msra.mxu0 %v2136
    %2706 = vmatprep.subr.mxu0 %v2129
    %2707 = vmatpush2.msra.mxu0 %v2128
    %2708 = vmatprep.subr.mxu0 %v2121
    %2709 = vmatpush2.msra.mxu0 %v2120
    %2710 = vmatprep.subr.mxu0 %v2113
    %2711 = vmatpush2.msra.mxu0 %v2112
    %2712 = vmatprep.subr.mxu0 %v2105
    %2713 = vmatpush2.msra.mxu0 %v2104
    %2714 = vmatprep.subr.mxu0 %v2097
    %2715 = vmatpush2.msra.mxu0 %v2096
    %2716 = vmatprep.subr.mxu0 %v2089
    %2717 = vmatpush2.msra.mxu0 %v2088
    %2718 = vmatprep.subr.mxu0 %v2081
    %2719 = vmatpush2.msra.mxu0 %v2080
    %2720 = vmatprep.subr.mxu0 %v2073
    %2721 = vmatpush2.msra.mxu0 %v2072
    %2722 = vmatprep.subr.mxu0 %v2065
    %2723 = vmatpush2.msra.mxu0 %v2064
    %2724 = vmatprep.subr.mxu0 %v2057
    %2725 = vmatpush2.msra.mxu0 %v2056
    %2726 = vmatprep.subr.mxu0 %v2049
    %2727 = vmatpush2.msra.mxu0 %v2048
    %2728 = vmatprep.subr.mxu0 %v2041
    %2729 = vmatpush2.msra.mxu0 %v2040
    %2730 = vmatprep.subr.mxu0 %v2033
    %2731 = vmatpush2.msra.mxu0 %v2032
    %2732 = vmatprep.mubr.f32.mxu0 %v2287
    %2733 = vmatmul.mubr.f32.gmra.mxu0 %v2286
    %v2734 = vpop.f32.mrf.mxu0
    %v2735 = vpop.f32.mrf.mxu0
    %2736 = vmatprep.mubr.f32.mxu0 %v2289
    %2737 = vmatmul.mubr.f32.gmra.mxu0 %v2288
    %v2738 = vpop.f32.mrf.mxu0
    %v2739 = vpop.f32.mrf.mxu0
    %2740 = vmatprep.mubr.f32.mxu0 %v2291
    %2741 = vmatmul.mubr.f32.gmra.mxu0 %v2290
    %v2742 = vpop.f32.mrf.mxu0
    %v2743 = vpop.f32.mrf.mxu0
    %2744 = vmatprep.mubr.f32.mxu0 %v2293
    %2745 = vmatmul.mubr.f32.gmra.mxu0 %v2292
    %v2746 = vpop.f32.mrf.mxu0
    %v2747 = vpop.f32.mrf.mxu0
    %2748 = vmatprep.mubr.f32.mxu0 %v2295
    %2749 = vmatmul.mubr.f32.gmra.mxu0 %v2294
    %v2750 = vpop.f32.mrf.mxu0
    %v2751 = vpop.f32.mrf.mxu0
    %2752 = vmatprep.mubr.f32.mxu0 %v2297
    %2753 = vmatmul.mubr.f32.gmra.mxu0 %v2296
    %v2754 = vpop.f32.mrf.mxu0
    %v2755 = vpop.f32.mrf.mxu0
    %2756 = vmatprep.mubr.f32.mxu0 %v2299
    %2757 = vmatmul.mubr.f32.gmra.mxu0 %v2298
    %v2758 = vpop.f32.mrf.mxu0
    %v2759 = vpop.f32.mrf.mxu0
    %2760 = vmatprep.mubr.f32.mxu0 %v2301
    %2761 = vmatmul.mubr.f32.gmra.mxu0 %v2300
    %v2762 = vpop.f32.mrf.mxu0
    %v2763 = vadd.f32 %v2330, %v2762
    %v2764 = vpop.f32.mrf.mxu0
    %v2765 = vadd.f32 %v2334, %v2764
    %2766 = vdwg.mxu0
    %s2767 = scalar_lea.vmem [#allocation9], 48
    %v2768 = vld [vmem:[%s2767] sm:$0xff]
    %v2769 = vld [vmem:[%s2767 + $0x8] sm:$0xff]
    %2770 = vmatprep.subr.mxu0 %v2279
    %2771 = vmatpush1.msra.mxu0 %v2278
    %2772 = vmatprep.subr.mxu0 %v2275
    %2773 = vmatpush1.msra.mxu0 %v2274
    %2774 = vmatprep.subr.mxu0 %v2271
    %2775 = vmatpush1.msra.mxu0 %v2270
    %2776 = vmatprep.subr.mxu0 %v2267
    %2777 = vmatpush1.msra.mxu0 %v2266
    %2778 = vmatprep.subr.mxu0 %v2263
    %2779 = vmatpush1.msra.mxu0 %v2262
    %2780 = vmatprep.subr.mxu0 %v2259
    %2781 = vmatpush1.msra.mxu0 %v2258
    %2782 = vmatprep.subr.mxu0 %v2255
    %2783 = vmatpush1.msra.mxu0 %v2254
    %2784 = vmatprep.subr.mxu0 %v2251
    %2785 = vmatpush1.msra.mxu0 %v2250
    %2786 = vmatprep.subr.mxu0 %v2247
    %2787 = vmatpush1.msra.mxu0 %v2246
    %2788 = vmatprep.subr.mxu0 %v2243
    %2789 = vmatpush1.msra.mxu0 %v2242
    %2790 = vmatprep.subr.mxu0 %v2239
    %2791 = vmatpush1.msra.mxu0 %v2238
    %2792 = vmatprep.subr.mxu0 %v2235
    %2793 = vmatpush1.msra.mxu0 %v2234
    %2794 = vmatprep.subr.mxu0 %v2231
    %2795 = vmatpush1.msra.mxu0 %v2230
    %2796 = vmatprep.subr.mxu0 %v2227
    %2797 = vmatpush1.msra.mxu0 %v2226
    %2798 = vmatprep.subr.mxu0 %v2223
    %2799 = vmatpush1.msra.mxu0 %v2222
    %2800 = vmatprep.subr.mxu0 %v2219
    %2801 = vmatpush1.msra.mxu0 %v2218
    %2802 = vmatprep.subr.mxu0 0.0
    %2803 = vmatpush2.msra.mxu0 0.0
    %2804 = vmatprep.subr.mxu0 0.0
    %2805 = vmatpush2.msra.mxu0 0.0
    %2806 = vmatprep.subr.mxu0 0.0
    %2807 = vmatpush2.msra.mxu0 0.0
    %2808 = vmatprep.subr.mxu0 0.0
    %2809 = vmatpush2.msra.mxu0 0.0
    %2810 = vmatprep.subr.mxu0 0.0
    %2811 = vmatpush2.msra.mxu0 0.0
    %2812 = vmatprep.subr.mxu0 0.0
    %2813 = vmatpush2.msra.mxu0 0.0
    %2814 = vmatprep.subr.mxu0 0.0
    %2815 = vmatpush2.msra.mxu0 0.0
    %2816 = vmatprep.subr.mxu0 0.0
    %2817 = vmatpush2.msra.mxu0 0.0
    %2818 = vmatprep.subr.mxu0 0.0
    %2819 = vmatpush2.msra.mxu0 0.0
    %2820 = vmatprep.subr.mxu0 0.0
    %2821 = vmatpush2.msra.mxu0 0.0
    %2822 = vmatprep.subr.mxu0 0.0
    %2823 = vmatpush2.msra.mxu0 0.0
    %2824 = vmatprep.subr.mxu0 0.0
    %2825 = vmatpush2.msra.mxu0 0.0
    %2826 = vmatprep.subr.mxu0 0.0
    %2827 = vmatpush2.msra.mxu0 0.0
    %2828 = vmatprep.subr.mxu0 0.0
    %2829 = vmatpush2.msra.mxu0 0.0
    %2830 = vmatprep.subr.mxu0 0.0
    %2831 = vmatpush2.msra.mxu0 0.0
    %2832 = vmatprep.subr.mxu0 0.0
    %2833 = vmatpush2.msra.mxu0 0.0
    %2834 = vmatprep.mubr.f32.mxu0 0.0
    %2835 = vmatmul.mubr.f32.gmra.mxu0 %v2768
    %v2836 = vpop.f32.mrf.mxu0
    %v2837 = vadd.f32 0.0, %v2836
    %v2838 = vpop.f32.mrf.mxu0
    %v2839 = vadd.f32 0.0, %v2838
    %2840 = vdwg.mxu0
    %2841 = vmatprep.subr.mxu0 %v2281
    %2842 = vmatpush1.msra.mxu0 %v2280
    %2843 = vmatprep.subr.mxu0 %v2277
    %2844 = vmatpush1.msra.mxu0 %v2276
    %2845 = vmatprep.subr.mxu0 %v2273
    %2846 = vmatpush1.msra.mxu0 %v2272
    %2847 = vmatprep.subr.mxu0 %v2269
    %2848 = vmatpush1.msra.mxu0 %v2268
    %2849 = vmatprep.subr.mxu0 %v2265
    %2850 = vmatpush1.msra.mxu0 %v2264
    %2851 = vmatprep.subr.mxu0 %v2261
    %2852 = vmatpush1.msra.mxu0 %v2260
    %2853 = vmatprep.subr.mxu0 %v2257
    %2854 = vmatpush1.msra.mxu0 %v2256
    %2855 = vmatprep.subr.mxu0 %v2253
    %2856 = vmatpush1.msra.mxu0 %v2252
    %2857 = vmatprep.subr.mxu0 %v2249
    %2858 = vmatpush1.msra.mxu0 %v2248
    %2859 = vmatprep.subr.mxu0 %v2245
    %2860 = vmatpush1.msra.mxu0 %v2244
    %2861 = vmatprep.subr.mxu0 %v2241
    %2862 = vmatpush1.msra.mxu0 %v2240
    %2863 = vmatprep.subr.mxu0 %v2237
    %2864 = vmatpush1.msra.mxu0 %v2236
    %2865 = vmatprep.subr.mxu0 %v2233
    %2866 = vmatpush1.msra.mxu0 %v2232
    %2867 = vmatprep.subr.mxu0 %v2229
    %2868 = vmatpush1.msra.mxu0 %v2228
    %2869 = vmatprep.subr.mxu0 %v2225
    %2870 = vmatpush1.msra.mxu0 %v2224
    %2871 = vmatprep.subr.mxu0 %v2221
    %2872 = vmatpush1.msra.mxu0 %v2220
    %2873 = vmatprep.subr.mxu0 0.0
    %2874 = vmatpush2.msra.mxu0 0.0
    %2875 = vmatprep.subr.mxu0 0.0
    %2876 = vmatpush2.msra.mxu0 0.0
    %2877 = vmatprep.subr.mxu0 0.0
    %2878 = vmatpush2.msra.mxu0 0.0
    %2879 = vmatprep.subr.mxu0 0.0
    %2880 = vmatpush2.msra.mxu0 0.0
    %2881 = vmatprep.subr.mxu0 0.0
    %2882 = vmatpush2.msra.mxu0 0.0
    %2883 = vmatprep.subr.mxu0 0.0
    %2884 = vmatpush2.msra.mxu0 0.0
    %2885 = vmatprep.subr.mxu0 0.0
    %2886 = vmatpush2.msra.mxu0 0.0
    %2887 = vmatprep.subr.mxu0 0.0
    %2888 = vmatpush2.msra.mxu0 0.0
    %2889 = vmatprep.subr.mxu0 0.0
    %2890 = vmatpush2.msra.mxu0 0.0
    %2891 = vmatprep.subr.mxu0 0.0
    %2892 = vmatpush2.msra.mxu0 0.0
    %2893 = vmatprep.subr.mxu0 0.0
    %2894 = vmatpush2.msra.mxu0 0.0
    %2895 = vmatprep.subr.mxu0 0.0
    %2896 = vmatpush2.msra.mxu0 0.0
    %2897 = vmatprep.subr.mxu0 0.0
    %2898 = vmatpush2.msra.mxu0 0.0
    %2899 = vmatprep.subr.mxu0 0.0
    %2900 = vmatpush2.msra.mxu0 0.0
    %2901 = vmatprep.subr.mxu0 0.0
    %2902 = vmatpush2.msra.mxu0 0.0
    %2903 = vmatprep.subr.mxu0 0.0
    %2904 = vmatpush2.msra.mxu0 0.0
    %2905 = vmatprep.mubr.f32.mxu0 0.0
    %2906 = vmatmul.mubr.f32.gmra.mxu0 %v2768
    %v2907 = vpop.f32.mrf.mxu0
    %v2908 = vadd.f32 0.0, %v2907
    %v2909 = vpop.f32.mrf.mxu0
    %v2910 = vadd.f32 0.0, %v2909
    %2911 = vdwg.mxu0
    %v2912 = vadd.f32 %v2664, %v2837
    %v2913 = vadd.f32 %v2666, %v2839
    %v2914 = vadd.f32 %v2763, %v2908
    %v2915 = vadd.f32 %v2765, %v2910
    %v2916 = vxor.u32 %v2912, 2147483648
    %v2917 = vmul.f32 %v2916, 1.442695
    %v2918 = vpow.pop %v2917
    %v2919 = vadd.f32 %v2918, 1.0
    %v2920 = vrcp.pop %v2919
    %v2921 = vmul.f32 1.0, %v2920
    %v2922 = vxor.u32 %v2913, 2147483648
    %v2923 = vmul.f32 %v2922, 1.442695
    %v2924 = vpow.pop %v2923
    %v2925 = vadd.f32 %v2924, 1.0
    %v2926 = vrcp.pop %v2925
    %v2927 = vmul.f32 1.0, %v2926
    %v2928 = vtanh.pop %v2914
    %v2929 = vxor.u32 %v2915, 2147483648
    %v2930 = vmul.f32 %v2929, 1.442695
    %v2931 = vpow.pop %v2930
    %v2932 = vadd.f32 %v2931, 1.0
    %v2933 = vrcp.pop %v2932
    %v2934 = vmul.f32 1.0, %v2933
    %v2935 = vmul.f32 %v2927, %v2769
    %v2936 = vmul.f32 %v2921, %v2928
    %v2937 = vadd.f32 %v2935, %v2936
    %v2938 = vtanh.pop %v2937
    %v2939 = vmul.f32 %v2934, %v2938
    %s2940 = scalar_lea.vmem [#allocation9], 32
    %v2941 = vld [vmem:[%s2940] sm:$0xff]
    %v2942 = vld [vmem:[%s2940 + $0x8] sm:$0xff]
    %2943 = vmatprep.subr.mxu0 %v2215
    %2944 = vmatpush1.msra.mxu0 %v2214
    %2945 = vmatprep.subr.mxu0 %v2211
    %2946 = vmatpush1.msra.mxu0 %v2210
    %2947 = vmatprep.subr.mxu0 %v2207
    %2948 = vmatpush1.msra.mxu0 %v2206
    %2949 = vmatprep.subr.mxu0 %v2203
    %2950 = vmatpush1.msra.mxu0 %v2202
    %2951 = vmatprep.subr.mxu0 %v2199
    %2952 = vmatpush1.msra.mxu0 %v2198
    %2953 = vmatprep.subr.mxu0 %v2195
    %2954 = vmatpush1.msra.mxu0 %v2194
    %2955 = vmatprep.subr.mxu0 %v2191
    %2956 = vmatpush1.msra.mxu0 %v2190
    %2957 = vmatprep.subr.mxu0 %v2187
    %2958 = vmatpush1.msra.mxu0 %v2186
    %2959 = vmatprep.subr.mxu0 %v2183
    %2960 = vmatpush1.msra.mxu0 %v2182
    %2961 = vmatprep.subr.mxu0 %v2179
    %2962 = vmatpush1.msra.mxu0 %v2178
    %2963 = vmatprep.subr.mxu0 %v2175
    %2964 = vmatpush1.msra.mxu0 %v2174
    %2965 = vmatprep.subr.mxu0 %v2171
    %2966 = vmatpush1.msra.mxu0 %v2170
    %2967 = vmatprep.subr.mxu0 %v2167
    %2968 = vmatpush1.msra.mxu0 %v2166
    %2969 = vmatprep.subr.mxu0 %v2163
    %2970 = vmatpush1.msra.mxu0 %v2162
    %2971 = vmatprep.subr.mxu0 %v2159
    %2972 = vmatpush1.msra.mxu0 %v2158
    %2973 = vmatprep.subr.mxu0 %v2155
    %2974 = vmatpush1.msra.mxu0 %v2154
    %2975 = vmatprep.subr.mxu0 0.0
    %2976 = vmatpush2.msra.mxu0 0.0
    %2977 = vmatprep.subr.mxu0 0.0
    %2978 = vmatpush2.msra.mxu0 0.0
    %2979 = vmatprep.subr.mxu0 0.0
    %2980 = vmatpush2.msra.mxu0 0.0
    %2981 = vmatprep.subr.mxu0 0.0
    %2982 = vmatpush2.msra.mxu0 0.0
    %2983 = vmatprep.subr.mxu0 0.0
    %2984 = vmatpush2.msra.mxu0 0.0
    %2985 = vmatprep.subr.mxu0 0.0
    %2986 = vmatpush2.msra.mxu0 0.0
    %2987 = vmatprep.subr.mxu0 0.0
    %2988 = vmatpush2.msra.mxu0 0.0
    %2989 = vmatprep.subr.mxu0 0.0
    %2990 = vmatpush2.msra.mxu0 0.0
    %2991 = vmatprep.subr.mxu0 0.0
    %2992 = vmatpush2.msra.mxu0 0.0
    %2993 = vmatprep.subr.mxu0 0.0
    %2994 = vmatpush2.msra.mxu0 0.0
    %2995 = vmatprep.subr.mxu0 0.0
    %2996 = vmatpush2.msra.mxu0 0.0
    %2997 = vmatprep.subr.mxu0 0.0
    %2998 = vmatpush2.msra.mxu0 0.0
    %2999 = vmatprep.subr.mxu0 0.0
    %3000 = vmatpush2.msra.mxu0 0.0
    %3001 = vmatprep.subr.mxu0 0.0
    %3002 = vmatpush2.msra.mxu0 0.0
    %3003 = vmatprep.subr.mxu0 0.0
    %3004 = vmatpush2.msra.mxu0 0.0
    %3005 = vmatprep.subr.mxu0 0.0
    %3006 = vmatpush2.msra.mxu0 0.0
    %3007 = vmatprep.mubr.f32.mxu0 0.0
    %3008 = vmatmul.mubr.f32.gmra.mxu0 %v2941
    %v3009 = vpop.f32.mrf.mxu0
    %v3010 = vadd.f32 0.0, %v3009
    %v3011 = vpop.f32.mrf.mxu0
    %v3012 = vadd.f32 0.0, %v3011
    %3013 = vdwg.mxu0
    %3014 = vmatprep.subr.mxu0 %v2217
    %3015 = vmatpush1.msra.mxu0 %v2216
    %3016 = vmatprep.subr.mxu0 %v2213
    %3017 = vmatpush1.msra.mxu0 %v2212
    %3018 = vmatprep.subr.mxu0 %v2209
    %3019 = vmatpush1.msra.mxu0 %v2208
    %3020 = vmatprep.subr.mxu0 %v2205
    %3021 = vmatpush1.msra.mxu0 %v2204
    %3022 = vmatprep.subr.mxu0 %v2201
    %3023 = vmatpush1.msra.mxu0 %v2200
    %3024 = vmatprep.subr.mxu0 %v2197
    %3025 = vmatpush1.msra.mxu0 %v2196
    %3026 = vmatprep.subr.mxu0 %v2193
    %3027 = vmatpush1.msra.mxu0 %v2192
    %3028 = vmatprep.subr.mxu0 %v2189
    %3029 = vmatpush1.msra.mxu0 %v2188
    %3030 = vmatprep.subr.mxu0 %v2185
    %3031 = vmatpush1.msra.mxu0 %v2184
    %3032 = vmatprep.subr.mxu0 %v2181
    %3033 = vmatpush1.msra.mxu0 %v2180
    %3034 = vmatprep.subr.mxu0 %v2177
    %3035 = vmatpush1.msra.mxu0 %v2176
    %3036 = vmatprep.subr.mxu0 %v2173
    %3037 = vmatpush1.msra.mxu0 %v2172
    %3038 = vmatprep.subr.mxu0 %v2169
    %3039 = vmatpush1.msra.mxu0 %v2168
    %3040 = vmatprep.subr.mxu0 %v2165
    %3041 = vmatpush1.msra.mxu0 %v2164
    %3042 = vmatprep.subr.mxu0 %v2161
    %3043 = vmatpush1.msra.mxu0 %v2160
    %3044 = vmatprep.subr.mxu0 %v2157
    %3045 = vmatpush1.msra.mxu0 %v2156
    %3046 = vmatprep.subr.mxu0 0.0
    %3047 = vmatpush2.msra.mxu0 0.0
    %3048 = vmatprep.subr.mxu0 0.0
    %3049 = vmatpush2.msra.mxu0 0.0
    %3050 = vmatprep.subr.mxu0 0.0
    %3051 = vmatpush2.msra.mxu0 0.0
    %3052 = vmatprep.subr.mxu0 0.0
    %3053 = vmatpush2.msra.mxu0 0.0
    %3054 = vmatprep.subr.mxu0 0.0
    %3055 = vmatpush2.msra.mxu0 0.0
    %3056 = vmatprep.subr.mxu0 0.0
    %3057 = vmatpush2.msra.mxu0 0.0
    %3058 = vmatprep.subr.mxu0 0.0
    %3059 = vmatpush2.msra.mxu0 0.0
    %3060 = vmatprep.subr.mxu0 0.0
    %3061 = vmatpush2.msra.mxu0 0.0
    %3062 = vmatprep.subr.mxu0 0.0
    %3063 = vmatpush2.msra.mxu0 0.0
    %3064 = vmatprep.subr.mxu0 0.0
    %3065 = vmatpush2.msra.mxu0 0.0
    %3066 = vmatprep.subr.mxu0 0.0
    %3067 = vmatpush2.msra.mxu0 0.0
    %3068 = vmatprep.subr.mxu0 0.0
    %3069 = vmatpush2.msra.mxu0 0.0
    %3070 = vmatprep.subr.mxu0 0.0
    %3071 = vmatpush2.msra.mxu0 0.0
    %3072 = vmatprep.subr.mxu0 0.0
    %3073 = vmatpush2.msra.mxu0 0.0
    %3074 = vmatprep.subr.mxu0 0.0
    %3075 = vmatpush2.msra.mxu0 0.0
    %3076 = vmatprep.subr.mxu0 0.0
    %3077 = vmatpush2.msra.mxu0 0.0
    %3078 = vmatprep.mubr.f32.mxu0 0.0
    %3079 = vmatmul.mubr.f32.gmra.mxu0 %v2941
    %v3080 = vpop.f32.mrf.mxu0
    %v3081 = vadd.f32 0.0, %v3080
    %v3082 = vpop.f32.mrf.mxu0
    %v3083 = vadd.f32 0.0, %v3082
    %3084 = vdwg.mxu0
    %v3085 = vadd.f32 %v2410, %v3010
    %v3086 = vadd.f32 %v2412, %v3012
    %v3087 = vadd.f32 %v2523, %v3081
    %v3088 = vadd.f32 %v2525, %v3083
    %v3089 = vxor.u32 %v3085, 2147483648
    %v3090 = vmul.f32 %v3089, 1.442695
    %v3091 = vpow.pop %v3090
    %v3092 = vadd.f32 %v3091, 1.0
    %v3093 = vrcp.pop %v3092
    %v3094 = vmul.f32 1.0, %v3093
    %v3095 = vxor.u32 %v3086, 2147483648
    %v3096 = vmul.f32 %v3095, 1.442695
    %v3097 = vpow.pop %v3096
    %v3098 = vadd.f32 %v3097, 1.0
    %v3099 = vrcp.pop %v3098
    %v3100 = vmul.f32 1.0, %v3099
    %v3101 = vtanh.pop %v3087
    %v3102 = vxor.u32 %v3088, 2147483648
    %v3103 = vmul.f32 %v3102, 1.442695
    %v3104 = vpow.pop %v3103
    %v3105 = vadd.f32 %v3104, 1.0
    %v3106 = vrcp.pop %v3105
    %v3107 = vmul.f32 1.0, %v3106
    %v3108 = vmul.f32 %v3100, %v2942
    %v3109 = vmul.f32 %v3094, %v3101
    %v3110 = vadd.f32 %v3108, %v3109
    %v3111 = vtanh.pop %v3110
    %v3112 = vmul.f32 %v3107, %v3111
    %3113 = vmatprep.subr.mxu0 %v2215
    %3114 = vmatpush1.msra.mxu0 %v2214
    %3115 = vmatprep.subr.mxu0 %v2211
    %3116 = vmatpush1.msra.mxu0 %v2210
    %3117 = vmatprep.subr.mxu0 %v2207
    %3118 = vmatpush1.msra.mxu0 %v2206
    %3119 = vmatprep.subr.mxu0 %v2203
    %3120 = vmatpush1.msra.mxu0 %v2202
    %3121 = vmatprep.subr.mxu0 %v2199
    %3122 = vmatpush1.msra.mxu0 %v2198
    %3123 = vmatprep.subr.mxu0 %v2195
    %3124 = vmatpush1.msra.mxu0 %v2194
    %3125 = vmatprep.subr.mxu0 %v2191
    %3126 = vmatpush1.msra.mxu0 %v2190
    %3127 = vmatprep.subr.mxu0 %v2187
    %3128 = vmatpush1.msra.mxu0 %v2186
    %3129 = vmatprep.subr.mxu0 %v2183
    %3130 = vmatpush1.msra.mxu0 %v2182
    %3131 = vmatprep.subr.mxu0 %v2179
    %3132 = vmatpush1.msra.mxu0 %v2178
    %3133 = vmatprep.subr.mxu0 %v2175
    %3134 = vmatpush1.msra.mxu0 %v2174
    %3135 = vmatprep.subr.mxu0 %v2171
    %3136 = vmatpush1.msra.mxu0 %v2170
    %3137 = vmatprep.subr.mxu0 %v2167
    %3138 = vmatpush1.msra.mxu0 %v2166
    %3139 = vmatprep.subr.mxu0 %v2163
    %3140 = vmatpush1.msra.mxu0 %v2162
    %3141 = vmatprep.subr.mxu0 %v2159
    %3142 = vmatpush1.msra.mxu0 %v2158
    %3143 = vmatprep.subr.mxu0 %v2155
    %3144 = vmatpush1.msra.mxu0 %v2154
    %3145 = vmatprep.subr.mxu0 0.0
    %3146 = vmatpush2.msra.mxu0 0.0
    %3147 = vmatprep.subr.mxu0 0.0
    %3148 = vmatpush2.msra.mxu0 0.0
    %3149 = vmatprep.subr.mxu0 0.0
    %3150 = vmatpush2.msra.mxu0 0.0
    %3151 = vmatprep.subr.mxu0 0.0
    %3152 = vmatpush2.msra.mxu0 0.0
    %3153 = vmatprep.subr.mxu0 0.0
    %3154 = vmatpush2.msra.mxu0 0.0
    %3155 = vmatprep.subr.mxu0 0.0
    %3156 = vmatpush2.msra.mxu0 0.0
    %3157 = vmatprep.subr.mxu0 0.0
    %3158 = vmatpush2.msra.mxu0 0.0
    %3159 = vmatprep.subr.mxu0 0.0
    %3160 = vmatpush2.msra.mxu0 0.0
    %3161 = vmatprep.subr.mxu0 0.0
    %3162 = vmatpush2.msra.mxu0 0.0
    %3163 = vmatprep.subr.mxu0 0.0
    %3164 = vmatpush2.msra.mxu0 0.0
    %3165 = vmatprep.subr.mxu0 0.0
    %3166 = vmatpush2.msra.mxu0 0.0
    %3167 = vmatprep.subr.mxu0 0.0
    %3168 = vmatpush2.msra.mxu0 0.0
    %3169 = vmatprep.subr.mxu0 0.0
    %3170 = vmatpush2.msra.mxu0 0.0
    %3171 = vmatprep.subr.mxu0 0.0
    %3172 = vmatpush2.msra.mxu0 0.0
    %3173 = vmatprep.subr.mxu0 0.0
    %3174 = vmatpush2.msra.mxu0 0.0
    %3175 = vmatprep.subr.mxu0 0.0
    %3176 = vmatpush2.msra.mxu0 0.0
    %3177 = vmatprep.mubr.f32.mxu0 0.0
    %3178 = vmatmul.mubr.f32.gmra.mxu0 %v3112
    %v3179 = vpop.f32.mrf.mxu0
    %v3180 = vadd.f32 0.0, %v3179
    %v3181 = vpop.f32.mrf.mxu0
    %v3182 = vadd.f32 0.0, %v3181
    %3183 = vdwg.mxu0
    %3184 = vmatprep.subr.mxu0 %v2217
    %3185 = vmatpush1.msra.mxu0 %v2216
    %3186 = vmatprep.subr.mxu0 %v2213
    %3187 = vmatpush1.msra.mxu0 %v2212
    %3188 = vmatprep.subr.mxu0 %v2209
    %3189 = vmatpush1.msra.mxu0 %v2208
    %3190 = vmatprep.subr.mxu0 %v2205
    %3191 = vmatpush1.msra.mxu0 %v2204
    %3192 = vmatprep.subr.mxu0 %v2201
    %3193 = vmatpush1.msra.mxu0 %v2200
    %3194 = vmatprep.subr.mxu0 %v2197
    %3195 = vmatpush1.msra.mxu0 %v2196
    %3196 = vmatprep.subr.mxu0 %v2193
    %3197 = vmatpush1.msra.mxu0 %v2192
    %3198 = vmatprep.subr.mxu0 %v2189
    %3199 = vmatpush1.msra.mxu0 %v2188
    %3200 = vmatprep.subr.mxu0 %v2185
    %3201 = vmatpush1.msra.mxu0 %v2184
    %3202 = vmatprep.subr.mxu0 %v2181
    %3203 = vmatpush1.msra.mxu0 %v2180
    %3204 = vmatprep.subr.mxu0 %v2177
    %3205 = vmatpush1.msra.mxu0 %v2176
    %3206 = vmatprep.subr.mxu0 %v2173
    %3207 = vmatpush1.msra.mxu0 %v2172
    %3208 = vmatprep.subr.mxu0 %v2169
    %3209 = vmatpush1.msra.mxu0 %v2168
    %3210 = vmatprep.subr.mxu0 %v2165
    %3211 = vmatpush1.msra.mxu0 %v2164
    %3212 = vmatprep.subr.mxu0 %v2161
    %3213 = vmatpush1.msra.mxu0 %v2160
    %3214 = vmatprep.subr.mxu0 %v2157
    %3215 = vmatpush1.msra.mxu0 %v2156
    %3216 = vmatprep.subr.mxu0 0.0
    %3217 = vmatpush2.msra.mxu0 0.0
    %3218 = vmatprep.subr.mxu0 0.0
    %3219 = vmatpush2.msra.mxu0 0.0
    %3220 = vmatprep.subr.mxu0 0.0
    %3221 = vmatpush2.msra.mxu0 0.0
    %3222 = vmatprep.subr.mxu0 0.0
    %3223 = vmatpush2.msra.mxu0 0.0
    %3224 = vmatprep.subr.mxu0 0.0
    %3225 = vmatpush2.msra.mxu0 0.0
    %3226 = vmatprep.subr.mxu0 0.0
    %3227 = vmatpush2.msra.mxu0 0.0
    %3228 = vmatprep.subr.mxu0 0.0
    %3229 = vmatpush2.msra.mxu0 0.0
    %3230 = vmatprep.subr.mxu0 0.0
    %3231 = vmatpush2.msra.mxu0 0.0
    %3232 = vmatprep.subr.mxu0 0.0
    %3233 = vmatpush2.msra.mxu0 0.0
    %3234 = vmatprep.subr.mxu0 0.0
    %3235 = vmatpush2.msra.mxu0 0.0
    %3236 = vmatprep.subr.mxu0 0.0
    %3237 = vmatpush2.msra.mxu0 0.0
    %3238 = vmatprep.subr.mxu0 0.0
    %3239 = vmatpush2.msra.mxu0 0.0
    %3240 = vmatprep.subr.mxu0 0.0
    %3241 = vmatpush2.msra.mxu0 0.0
    %3242 = vmatprep.subr.mxu0 0.0
    %3243 = vmatpush2.msra.mxu0 0.0
    %3244 = vmatprep.subr.mxu0 0.0
    %3245 = vmatpush2.msra.mxu0 0.0
    %3246 = vmatprep.subr.mxu0 0.0
    %3247 = vmatpush2.msra.mxu0 0.0
    %3248 = vmatprep.mubr.f32.mxu0 0.0
    %3249 = vmatmul.mubr.f32.gmra.mxu0 %v3112
    %v3250 = vpop.f32.mrf.mxu0
    %v3251 = vadd.f32 0.0, %v3250
    %v3252 = vpop.f32.mrf.mxu0
    %v3253 = vadd.f32 0.0, %v3252
    %3254 = vdwg.mxu0
    %v3255 = vadd.f32 %v2416, %v3180
    %v3256 = vadd.f32 %v2418, %v3182
    %v3257 = vadd.f32 %v2529, %v3251
    %v3258 = vadd.f32 %v2531, %v3253
    %v3259 = vxor.u32 %v3255, 2147483648
    %v3260 = vmul.f32 %v3259, 1.442695
    %v3261 = vpow.pop %v3260
    %v3262 = vadd.f32 %v3261, 1.0
    %v3263 = vrcp.pop %v3262
    %v3264 = vmul.f32 1.0, %v3263
    %v3265 = vxor.u32 %v3256, 2147483648
    %v3266 = vmul.f32 %v3265, 1.442695
    %v3267 = vpow.pop %v3266
    %v3268 = vadd.f32 %v3267, 1.0
    %v3269 = vrcp.pop %v3268
    %v3270 = vmul.f32 1.0, %v3269
    %v3271 = vtanh.pop %v3257
    %v3272 = vxor.u32 %v3258, 2147483648
    %v3273 = vmul.f32 %v3272, 1.442695
    %v3274 = vpow.pop %v3273
    %v3275 = vadd.f32 %v3274, 1.0
    %v3276 = vrcp.pop %v3275
    %v3277 = vmul.f32 1.0, %v3276
    %v3278 = vmul.f32 %v3270, %v3110
    %v3279 = vmul.f32 %v3264, %v3271
    %v3280 = vadd.f32 %v3278, %v3279
    %v3281 = vtanh.pop %v3280
    %v3282 = vmul.f32 %v3277, %v3281
    %3283 = vmatprep.subr.mxu0 %v2215
    %3284 = vmatpush1.msra.mxu0 %v2214
    %3285 = vmatprep.subr.mxu0 %v2211
    %3286 = vmatpush1.msra.mxu0 %v2210
    %3287 = vmatprep.subr.mxu0 %v2207
    %3288 = vmatpush1.msra.mxu0 %v2206
    %3289 = vmatprep.subr.mxu0 %v2203
    %3290 = vmatpush1.msra.mxu0 %v2202
    %3291 = vmatprep.subr.mxu0 %v2199
    %3292 = vmatpush1.msra.mxu0 %v2198
    %3293 = vmatprep.subr.mxu0 %v2195
    %3294 = vmatpush1.msra.mxu0 %v2194
    %3295 = vmatprep.subr.mxu0 %v2191
    %3296 = vmatpush1.msra.mxu0 %v2190
    %3297 = vmatprep.subr.mxu0 %v2187
    %3298 = vmatpush1.msra.mxu0 %v2186
    %3299 = vmatprep.subr.mxu0 %v2183
    %3300 = vmatpush1.msra.mxu0 %v2182
    %3301 = vmatprep.subr.mxu0 %v2179
    %3302 = vmatpush1.msra.mxu0 %v2178
    %3303 = vmatprep.subr.mxu0 %v2175
    %3304 = vmatpush1.msra.mxu0 %v2174
    %3305 = vmatprep.subr.mxu0 %v2171
    %3306 = vmatpush1.msra.mxu0 %v2170
    %3307 = vmatprep.subr.mxu0 %v2167
    %3308 = vmatpush1.msra.mxu0 %v2166
    %3309 = vmatprep.subr.mxu0 %v2163
    %3310 = vmatpush1.msra.mxu0 %v2162
    %3311 = vmatprep.subr.mxu0 %v2159
    %3312 = vmatpush1.msra.mxu0 %v2158
    %3313 = vmatprep.subr.mxu0 %v2155
    %3314 = vmatpush1.msra.mxu0 %v2154
    %3315 = vmatprep.subr.mxu0 0.0
    %3316 = vmatpush2.msra.mxu0 0.0
    %3317 = vmatprep.subr.mxu0 0.0
    %3318 = vmatpush2.msra.mxu0 0.0
    %3319 = vmatprep.subr.mxu0 0.0
    %3320 = vmatpush2.msra.mxu0 0.0
    %3321 = vmatprep.subr.mxu0 0.0
    %3322 = vmatpush2.msra.mxu0 0.0
    %3323 = vmatprep.subr.mxu0 0.0
    %3324 = vmatpush2.msra.mxu0 0.0
    %3325 = vmatprep.subr.mxu0 0.0
    %3326 = vmatpush2.msra.mxu0 0.0
    %3327 = vmatprep.subr.mxu0 0.0
    %3328 = vmatpush2.msra.mxu0 0.0
    %3329 = vmatprep.subr.mxu0 0.0
    %3330 = vmatpush2.msra.mxu0 0.0
    %3331 = vmatprep.subr.mxu0 0.0
    %3332 = vmatpush2.msra.mxu0 0.0
    %3333 = vmatprep.subr.mxu0 0.0
    %3334 = vmatpush2.msra.mxu0 0.0
    %3335 = vmatprep.subr.mxu0 0.0
    %3336 = vmatpush2.msra.mxu0 0.0
    %3337 = vmatprep.subr.mxu0 0.0
    %3338 = vmatpush2.msra.mxu0 0.0
    %3339 = vmatprep.subr.mxu0 0.0
    %3340 = vmatpush2.msra.mxu0 0.0
    %3341 = vmatprep.subr.mxu0 0.0
    %3342 = vmatpush2.msra.mxu0 0.0
    %3343 = vmatprep.subr.mxu0 0.0
    %3344 = vmatpush2.msra.mxu0 0.0
    %3345 = vmatprep.subr.mxu0 0.0
    %3346 = vmatpush2.msra.mxu0 0.0
    %3347 = vmatprep.mubr.f32.mxu0 0.0
    %3348 = vmatmul.mubr.f32.gmra.mxu0 %v3282
    %v3349 = vpop.f32.mrf.mxu0
    %v3350 = vadd.f32 0.0, %v3349
    %v3351 = vpop.f32.mrf.mxu0
    %v3352 = vadd.f32 0.0, %v3351
    %3353 = vdwg.mxu0
    %3354 = vmatprep.subr.mxu0 %v2217
    %3355 = vmatpush1.msra.mxu0 %v2216
    %3356 = vmatprep.subr.mxu0 %v2213
    %3357 = vmatpush1.msra.mxu0 %v2212
    %3358 = vmatprep.subr.mxu0 %v2209
    %3359 = vmatpush1.msra.mxu0 %v2208
    %3360 = vmatprep.subr.mxu0 %v2205
    %3361 = vmatpush1.msra.mxu0 %v2204
    %3362 = vmatprep.subr.mxu0 %v2201
    %3363 = vmatpush1.msra.mxu0 %v2200
    %3364 = vmatprep.subr.mxu0 %v2197
    %3365 = vmatpush1.msra.mxu0 %v2196
    %3366 = vmatprep.subr.mxu0 %v2193
    %3367 = vmatpush1.msra.mxu0 %v2192
    %3368 = vmatprep.subr.mxu0 %v2189
    %3369 = vmatpush1.msra.mxu0 %v2188
    %3370 = vmatprep.subr.mxu0 %v2185
    %3371 = vmatpush1.msra.mxu0 %v2184
    %3372 = vmatprep.subr.mxu0 %v2181
    %3373 = vmatpush1.msra.mxu0 %v2180
    %3374 = vmatprep.subr.mxu0 %v2177
    %3375 = vmatpush1.msra.mxu0 %v2176
    %3376 = vmatprep.subr.mxu0 %v2173
    %3377 = vmatpush1.msra.mxu0 %v2172
    %3378 = vmatprep.subr.mxu0 %v2169
    %3379 = vmatpush1.msra.mxu0 %v2168
    %3380 = vmatprep.subr.mxu0 %v2165
    %3381 = vmatpush1.msra.mxu0 %v2164
    %3382 = vmatprep.subr.mxu0 %v2161
    %3383 = vmatpush1.msra.mxu0 %v2160
    %3384 = vmatprep.subr.mxu0 %v2157
    %3385 = vmatpush1.msra.mxu0 %v2156
    %3386 = vmatprep.subr.mxu0 0.0
    %3387 = vmatpush2.msra.mxu0 0.0
    %3388 = vmatprep.subr.mxu0 0.0
    %3389 = vmatpush2.msra.mxu0 0.0
    %3390 = vmatprep.subr.mxu0 0.0
    %3391 = vmatpush2.msra.mxu0 0.0
    %3392 = vmatprep.subr.mxu0 0.0
    %3393 = vmatpush2.msra.mxu0 0.0
    %3394 = vmatprep.subr.mxu0 0.0
    %3395 = vmatpush2.msra.mxu0 0.0
    %3396 = vmatprep.subr.mxu0 0.0
    %3397 = vmatpush2.msra.mxu0 0.0
    %3398 = vmatprep.subr.mxu0 0.0
    %3399 = vmatpush2.msra.mxu0 0.0
    %3400 = vmatprep.subr.mxu0 0.0
    %3401 = vmatpush2.msra.mxu0 0.0
    %3402 = vmatprep.subr.mxu0 0.0
    %3403 = vmatpush2.msra.mxu0 0.0
    %3404 = vmatprep.subr.mxu0 0.0
    %3405 = vmatpush2.msra.mxu0 0.0
    %3406 = vmatprep.subr.mxu0 0.0
    %3407 = vmatpush2.msra.mxu0 0.0
    %3408 = vmatprep.subr.mxu0 0.0
    %3409 = vmatpush2.msra.mxu0 0.0
    %3410 = vmatprep.subr.mxu0 0.0
    %3411 = vmatpush2.msra.mxu0 0.0
    %3412 = vmatprep.subr.mxu0 0.0
    %3413 = vmatpush2.msra.mxu0 0.0
    %3414 = vmatprep.subr.mxu0 0.0
    %3415 = vmatpush2.msra.mxu0 0.0
    %3416 = vmatprep.subr.mxu0 0.0
    %3417 = vmatpush2.msra.mxu0 0.0
    %3418 = vmatprep.mubr.f32.mxu0 0.0
    %3419 = vmatmul.mubr.f32.gmra.mxu0 %v3282
    %v3420 = vpop.f32.mrf.mxu0
    %v3421 = vadd.f32 0.0, %v3420
    %v3422 = vpop.f32.mrf.mxu0
    %v3423 = vadd.f32 0.0, %v3422
    %3424 = vdwg.mxu0
    %v3425 = vadd.f32 %v2422, %v3350
    %v3426 = vadd.f32 %v2424, %v3352
    %v3427 = vadd.f32 %v2535, %v3421
    %v3428 = vadd.f32 %v2537, %v3423
    %v3429 = vxor.u32 %v3425, 2147483648
    %v3430 = vmul.f32 %v3429, 1.442695
    %v3431 = vpow.pop %v3430
    %v3432 = vadd.f32 %v3431, 1.0
    %v3433 = vrcp.pop %v3432
    %v3434 = vmul.f32 1.0, %v3433
    %v3435 = vxor.u32 %v3426, 2147483648
    %v3436 = vmul.f32 %v3435, 1.442695
    %v3437 = vpow.pop %v3436
    %v3438 = vadd.f32 %v3437, 1.0
    %v3439 = vrcp.pop %v3438
    %v3440 = vmul.f32 1.0, %v3439
    %v3441 = vtanh.pop %v3427
    %v3442 = vxor.u32 %v3428, 2147483648
    %v3443 = vmul.f32 %v3442, 1.442695
    %v3444 = vpow.pop %v3443
    %v3445 = vadd.f32 %v3444, 1.0
    %v3446 = vrcp.pop %v3445
    %v3447 = vmul.f32 1.0, %v3446
    %v3448 = vmul.f32 %v3440, %v3280
    %v3449 = vmul.f32 %v3434, %v3441
    %v3450 = vadd.f32 %v3448, %v3449
    %v3451 = vtanh.pop %v3450
    %v3452 = vmul.f32 %v3447, %v3451
    %3453 = vmatprep.subr.mxu0 %v2215
    %3454 = vmatpush1.msra.mxu0 %v2214
    %3455 = vmatprep.subr.mxu0 %v2211
    %3456 = vmatpush1.msra.mxu0 %v2210
    %3457 = vmatprep.subr.mxu0 %v2207
    %3458 = vmatpush1.msra.mxu0 %v2206
    %3459 = vmatprep.subr.mxu0 %v2203
    %3460 = vmatpush1.msra.mxu0 %v2202
    %3461 = vmatprep.subr.mxu0 %v2199
    %3462 = vmatpush1.msra.mxu0 %v2198
    %3463 = vmatprep.subr.mxu0 %v2195
    %3464 = vmatpush1.msra.mxu0 %v2194
    %3465 = vmatprep.subr.mxu0 %v2191
    %3466 = vmatpush1.msra.mxu0 %v2190
    %3467 = vmatprep.subr.mxu0 %v2187
    %3468 = vmatpush1.msra.mxu0 %v2186
    %3469 = vmatprep.subr.mxu0 %v2183
    %3470 = vmatpush1.msra.mxu0 %v2182
    %3471 = vmatprep.subr.mxu0 %v2179
    %3472 = vmatpush1.msra.mxu0 %v2178
    %3473 = vmatprep.subr.mxu0 %v2175
    %3474 = vmatpush1.msra.mxu0 %v2174
    %3475 = vmatprep.subr.mxu0 %v2171
    %3476 = vmatpush1.msra.mxu0 %v2170
    %3477 = vmatprep.subr.mxu0 %v2167
    %3478 = vmatpush1.msra.mxu0 %v2166
    %3479 = vmatprep.subr.mxu0 %v2163
    %3480 = vmatpush1.msra.mxu0 %v2162
    %3481 = vmatprep.subr.mxu0 %v2159
    %3482 = vmatpush1.msra.mxu0 %v2158
    %3483 = vmatprep.subr.mxu0 %v2155
    %3484 = vmatpush1.msra.mxu0 %v2154
    %3485 = vmatprep.subr.mxu0 0.0
    %3486 = vmatpush2.msra.mxu0 0.0
    %3487 = vmatprep.subr.mxu0 0.0
    %3488 = vmatpush2.msra.mxu0 0.0
    %3489 = vmatprep.subr.mxu0 0.0
    %3490 = vmatpush2.msra.mxu0 0.0
    %3491 = vmatprep.subr.mxu0 0.0
    %3492 = vmatpush2.msra.mxu0 0.0
    %3493 = vmatprep.subr.mxu0 0.0
    %3494 = vmatpush2.msra.mxu0 0.0
    %3495 = vmatprep.subr.mxu0 0.0
    %3496 = vmatpush2.msra.mxu0 0.0
    %3497 = vmatprep.subr.mxu0 0.0
    %3498 = vmatpush2.msra.mxu0 0.0
    %3499 = vmatprep.subr.mxu0 0.0
    %3500 = vmatpush2.msra.mxu0 0.0
    %3501 = vmatprep.subr.mxu0 0.0
    %3502 = vmatpush2.msra.mxu0 0.0
    %3503 = vmatprep.subr.mxu0 0.0
    %3504 = vmatpush2.msra.mxu0 0.0
    %3505 = vmatprep.subr.mxu0 0.0
    %3506 = vmatpush2.msra.mxu0 0.0
    %3507 = vmatprep.subr.mxu0 0.0
    %3508 = vmatpush2.msra.mxu0 0.0
    %3509 = vmatprep.subr.mxu0 0.0
    %3510 = vmatpush2.msra.mxu0 0.0
    %3511 = vmatprep.subr.mxu0 0.0
    %3512 = vmatpush2.msra.mxu0 0.0
    %3513 = vmatprep.subr.mxu0 0.0
    %3514 = vmatpush2.msra.mxu0 0.0
    %3515 = vmatprep.subr.mxu0 0.0
    %3516 = vmatpush2.msra.mxu0 0.0
    %3517 = vmatprep.mubr.f32.mxu0 0.0
    %3518 = vmatmul.mubr.f32.gmra.mxu0 %v3452
    %v3519 = vpop.f32.mrf.mxu0
    %v3520 = vadd.f32 0.0, %v3519
    %v3521 = vpop.f32.mrf.mxu0
    %v3522 = vadd.f32 0.0, %v3521
    %3523 = vdwg.mxu0
    %3524 = vmatprep.subr.mxu0 %v2217
    %3525 = vmatpush1.msra.mxu0 %v2216
    %3526 = vmatprep.subr.mxu0 %v2213
    %3527 = vmatpush1.msra.mxu0 %v2212
    %3528 = vmatprep.subr.mxu0 %v2209
    %3529 = vmatpush1.msra.mxu0 %v2208
    %3530 = vmatprep.subr.mxu0 %v2205
    %3531 = vmatpush1.msra.mxu0 %v2204
    %3532 = vmatprep.subr.mxu0 %v2201
    %3533 = vmatpush1.msra.mxu0 %v2200
    %3534 = vmatprep.subr.mxu0 %v2197
    %3535 = vmatpush1.msra.mxu0 %v2196
    %3536 = vmatprep.subr.mxu0 %v2193
    %3537 = vmatpush1.msra.mxu0 %v2192
    %3538 = vmatprep.subr.mxu0 %v2189
    %3539 = vmatpush1.msra.mxu0 %v2188
    %3540 = vmatprep.subr.mxu0 %v2185
    %3541 = vmatpush1.msra.mxu0 %v2184
    %3542 = vmatprep.subr.mxu0 %v2181
    %3543 = vmatpush1.msra.mxu0 %v2180
    %3544 = vmatprep.subr.mxu0 %v2177
    %3545 = vmatpush1.msra.mxu0 %v2176
    %3546 = vmatprep.subr.mxu0 %v2173
    %3547 = vmatpush1.msra.mxu0 %v2172
    %3548 = vmatprep.subr.mxu0 %v2169
    %3549 = vmatpush1.msra.mxu0 %v2168
    %3550 = vmatprep.subr.mxu0 %v2165
    %3551 = vmatpush1.msra.mxu0 %v2164
    %3552 = vmatprep.subr.mxu0 %v2161
    %3553 = vmatpush1.msra.mxu0 %v2160
    %3554 = vmatprep.subr.mxu0 %v2157
    %3555 = vmatpush1.msra.mxu0 %v2156
    %3556 = vmatprep.subr.mxu0 0.0
    %3557 = vmatpush2.msra.mxu0 0.0
    %3558 = vmatprep.subr.mxu0 0.0
    %3559 = vmatpush2.msra.mxu0 0.0
    %3560 = vmatprep.subr.mxu0 0.0
    %3561 = vmatpush2.msra.mxu0 0.0
    %3562 = vmatprep.subr.mxu0 0.0
    %3563 = vmatpush2.msra.mxu0 0.0
    %3564 = vmatprep.subr.mxu0 0.0
    %3565 = vmatpush2.msra.mxu0 0.0
    %3566 = vmatprep.subr.mxu0 0.0
    %3567 = vmatpush2.msra.mxu0 0.0
    %3568 = vmatprep.subr.mxu0 0.0
    %3569 = vmatpush2.msra.mxu0 0.0
    %3570 = vmatprep.subr.mxu0 0.0
    %3571 = vmatpush2.msra.mxu0 0.0
    %3572 = vmatprep.subr.mxu0 0.0
    %3573 = vmatpush2.msra.mxu0 0.0
    %3574 = vmatprep.subr.mxu0 0.0
    %3575 = vmatpush2.msra.mxu0 0.0
    %3576 = vmatprep.subr.mxu0 0.0
    %3577 = vmatpush2.msra.mxu0 0.0
    %3578 = vmatprep.subr.mxu0 0.0
    %3579 = vmatpush2.msra.mxu0 0.0
    %3580 = vmatprep.subr.mxu0 0.0
    %3581 = vmatpush2.msra.mxu0 0.0
    %3582 = vmatprep.subr.mxu0 0.0
    %3583 = vmatpush2.msra.mxu0 0.0
    %3584 = vmatprep.subr.mxu0 0.0
    %3585 = vmatpush2.msra.mxu0 0.0
    %3586 = vmatprep.subr.mxu0 0.0
    %3587 = vmatpush2.msra.mxu0 0.0
    %3588 = vmatprep.mubr.f32.mxu0 0.0
    %3589 = vmatmul.mubr.f32.gmra.mxu0 %v3452
    %v3590 = vpop.f32.mrf.mxu0
    %v3591 = vadd.f32 0.0, %v3590
    %v3592 = vpop.f32.mrf.mxu0
    %v3593 = vadd.f32 0.0, %v3592
    %3594 = vdwg.mxu0
    %v3595 = vadd.f32 %v2428, %v3520
    %v3596 = vadd.f32 %v2430, %v3522
    %v3597 = vadd.f32 %v2541, %v3591
    %v3598 = vadd.f32 %v2543, %v3593
    %v3599 = vxor.u32 %v3595, 2147483648
    %v3600 = vmul.f32 %v3599, 1.442695
    %v3601 = vpow.pop %v3600
    %v3602 = vadd.f32 %v3601, 1.0
    %v3603 = vrcp.pop %v3602
    %v3604 = vmul.f32 1.0, %v3603
    %v3605 = vxor.u32 %v3596, 2147483648
    %v3606 = vmul.f32 %v3605, 1.442695
    %v3607 = vpow.pop %v3606
    %v3608 = vadd.f32 %v3607, 1.0
    %v3609 = vrcp.pop %v3608
    %v3610 = vmul.f32 1.0, %v3609
    %v3611 = vtanh.pop %v3597
    %v3612 = vxor.u32 %v3598, 2147483648
    %v3613 = vmul.f32 %v3612, 1.442695
    %v3614 = vpow.pop %v3613
    %v3615 = vadd.f32 %v3614, 1.0
    %v3616 = vrcp.pop %v3615
    %v3617 = vmul.f32 1.0, %v3616
    %v3618 = vmul.f32 %v3610, %v3450
    %v3619 = vmul.f32 %v3604, %v3611
    %v3620 = vadd.f32 %v3618, %v3619
    %v3621 = vtanh.pop %v3620
    %v3622 = vmul.f32 %v3617, %v3621
    %3623 = vmatprep.subr.mxu0 %v2215
    %3624 = vmatpush1.msra.mxu0 %v2214
    %3625 = vmatprep.subr.mxu0 %v2211
    %3626 = vmatpush1.msra.mxu0 %v2210
    %3627 = vmatprep.subr.mxu0 %v2207
    %3628 = vmatpush1.msra.mxu0 %v2206
    %3629 = vmatprep.subr.mxu0 %v2203
    %3630 = vmatpush1.msra.mxu0 %v2202
    %3631 = vmatprep.subr.mxu0 %v2199
    %3632 = vmatpush1.msra.mxu0 %v2198
    %3633 = vmatprep.subr.mxu0 %v2195
    %3634 = vmatpush1.msra.mxu0 %v2194
    %3635 = vmatprep.subr.mxu0 %v2191
    %3636 = vmatpush1.msra.mxu0 %v2190
    %3637 = vmatprep.subr.mxu0 %v2187
    %3638 = vmatpush1.msra.mxu0 %v2186
    %3639 = vmatprep.subr.mxu0 %v2183
    %3640 = vmatpush1.msra.mxu0 %v2182
    %3641 = vmatprep.subr.mxu0 %v2179
    %3642 = vmatpush1.msra.mxu0 %v2178
    %3643 = vmatprep.subr.mxu0 %v2175
    %3644 = vmatpush1.msra.mxu0 %v2174
    %3645 = vmatprep.subr.mxu0 %v2171
    %3646 = vmatpush1.msra.mxu0 %v2170
    %3647 = vmatprep.subr.mxu0 %v2167
    %3648 = vmatpush1.msra.mxu0 %v2166
    %3649 = vmatprep.subr.mxu0 %v2163
    %3650 = vmatpush1.msra.mxu0 %v2162
    %3651 = vmatprep.subr.mxu0 %v2159
    %3652 = vmatpush1.msra.mxu0 %v2158
    %3653 = vmatprep.subr.mxu0 %v2155
    %3654 = vmatpush1.msra.mxu0 %v2154
    %3655 = vmatprep.subr.mxu0 0.0
    %3656 = vmatpush2.msra.mxu0 0.0
    %3657 = vmatprep.subr.mxu0 0.0
    %3658 = vmatpush2.msra.mxu0 0.0
    %3659 = vmatprep.subr.mxu0 0.0
    %3660 = vmatpush2.msra.mxu0 0.0
    %3661 = vmatprep.subr.mxu0 0.0
    %3662 = vmatpush2.msra.mxu0 0.0
    %3663 = vmatprep.subr.mxu0 0.0
    %3664 = vmatpush2.msra.mxu0 0.0
    %3665 = vmatprep.subr.mxu0 0.0
    %3666 = vmatpush2.msra.mxu0 0.0
    %3667 = vmatprep.subr.mxu0 0.0
    %3668 = vmatpush2.msra.mxu0 0.0
    %3669 = vmatprep.subr.mxu0 0.0
    %3670 = vmatpush2.msra.mxu0 0.0
    %3671 = vmatprep.subr.mxu0 0.0
    %3672 = vmatpush2.msra.mxu0 0.0
    %3673 = vmatprep.subr.mxu0 0.0
    %3674 = vmatpush2.msra.mxu0 0.0
    %3675 = vmatprep.subr.mxu0 0.0
    %3676 = vmatpush2.msra.mxu0 0.0
    %3677 = vmatprep.subr.mxu0 0.0
    %3678 = vmatpush2.msra.mxu0 0.0
    %3679 = vmatprep.subr.mxu0 0.0
    %3680 = vmatpush2.msra.mxu0 0.0
    %3681 = vmatprep.subr.mxu0 0.0
    %3682 = vmatpush2.msra.mxu0 0.0
    %3683 = vmatprep.subr.mxu0 0.0
    %3684 = vmatpush2.msra.mxu0 0.0
    %3685 = vmatprep.subr.mxu0 0.0
    %3686 = vmatpush2.msra.mxu0 0.0
    %3687 = vmatprep.mubr.f32.mxu0 0.0
    %3688 = vmatmul.mubr.f32.gmra.mxu0 %v3622
    %v3689 = vpop.f32.mrf.mxu0
    %v3690 = vadd.f32 0.0, %v3689
    %v3691 = vpop.f32.mrf.mxu0
    %v3692 = vadd.f32 0.0, %v3691
    %3693 = vdwg.mxu0
    %3694 = vmatprep.subr.mxu0 %v2217
    %3695 = vmatpush1.msra.mxu0 %v2216
    %3696 = vmatprep.subr.mxu0 %v2213
    %3697 = vmatpush1.msra.mxu0 %v2212
    %3698 = vmatprep.subr.mxu0 %v2209
    %3699 = vmatpush1.msra.mxu0 %v2208
    %3700 = vmatprep.subr.mxu0 %v2205
    %3701 = vmatpush1.msra.mxu0 %v2204
    %3702 = vmatprep.subr.mxu0 %v2201
    %3703 = vmatpush1.msra.mxu0 %v2200
    %3704 = vmatprep.subr.mxu0 %v2197
    %3705 = vmatpush1.msra.mxu0 %v2196
    %3706 = vmatprep.subr.mxu0 %v2193
    %3707 = vmatpush1.msra.mxu0 %v2192
    %3708 = vmatprep.subr.mxu0 %v2189
    %3709 = vmatpush1.msra.mxu0 %v2188
    %3710 = vmatprep.subr.mxu0 %v2185
    %3711 = vmatpush1.msra.mxu0 %v2184
    %3712 = vmatprep.subr.mxu0 %v2181
    %3713 = vmatpush1.msra.mxu0 %v2180
    %3714 = vmatprep.subr.mxu0 %v2177
    %3715 = vmatpush1.msra.mxu0 %v2176
    %3716 = vmatprep.subr.mxu0 %v2173
    %3717 = vmatpush1.msra.mxu0 %v2172
    %3718 = vmatprep.subr.mxu0 %v2169
    %3719 = vmatpush1.msra.mxu0 %v2168
    %3720 = vmatprep.subr.mxu0 %v2165
    %3721 = vmatpush1.msra.mxu0 %v2164
    %3722 = vmatprep.subr.mxu0 %v2161
    %3723 = vmatpush1.msra.mxu0 %v2160
    %3724 = vmatprep.subr.mxu0 %v2157
    %3725 = vmatpush1.msra.mxu0 %v2156
    %3726 = vmatprep.subr.mxu0 0.0
    %3727 = vmatpush2.msra.mxu0 0.0
    %3728 = vmatprep.subr.mxu0 0.0
    %3729 = vmatpush2.msra.mxu0 0.0
    %3730 = vmatprep.subr.mxu0 0.0
    %3731 = vmatpush2.msra.mxu0 0.0
    %3732 = vmatprep.subr.mxu0 0.0
    %3733 = vmatpush2.msra.mxu0 0.0
    %3734 = vmatprep.subr.mxu0 0.0
    %3735 = vmatpush2.msra.mxu0 0.0
    %3736 = vmatprep.subr.mxu0 0.0
    %3737 = vmatpush2.msra.mxu0 0.0
    %3738 = vmatprep.subr.mxu0 0.0
    %3739 = vmatpush2.msra.mxu0 0.0
    %3740 = vmatprep.subr.mxu0 0.0
    %3741 = vmatpush2.msra.mxu0 0.0
    %3742 = vmatprep.subr.mxu0 0.0
    %3743 = vmatpush2.msra.mxu0 0.0
    %3744 = vmatprep.subr.mxu0 0.0
    %3745 = vmatpush2.msra.mxu0 0.0
    %3746 = vmatprep.subr.mxu0 0.0
    %3747 = vmatpush2.msra.mxu0 0.0
    %3748 = vmatprep.subr.mxu0 0.0
    %3749 = vmatpush2.msra.mxu0 0.0
    %3750 = vmatprep.subr.mxu0 0.0
    %3751 = vmatpush2.msra.mxu0 0.0
    %3752 = vmatprep.subr.mxu0 0.0
    %3753 = vmatpush2.msra.mxu0 0.0
    %3754 = vmatprep.subr.mxu0 0.0
    %3755 = vmatpush2.msra.mxu0 0.0
    %3756 = vmatprep.subr.mxu0 0.0
    %3757 = vmatpush2.msra.mxu0 0.0
    %3758 = vmatprep.mubr.f32.mxu0 0.0
    %3759 = vmatmul.mubr.f32.gmra.mxu0 %v3622
    %v3760 = vpop.f32.mrf.mxu0
    %v3761 = vadd.f32 0.0, %v3760
    %v3762 = vpop.f32.mrf.mxu0
    %v3763 = vadd.f32 0.0, %v3762
    %3764 = vdwg.mxu0
    %v3765 = vadd.f32 %v2434, %v3690
    %v3766 = vadd.f32 %v2436, %v3692
    %v3767 = vadd.f32 %v2547, %v3761
    %v3768 = vadd.f32 %v2549, %v3763
    %v3769 = vxor.u32 %v3765, 2147483648
    %v3770 = vmul.f32 %v3769, 1.442695
    %v3771 = vpow.pop %v3770
    %v3772 = vadd.f32 %v3771, 1.0
    %v3773 = vrcp.pop %v3772
    %v3774 = vmul.f32 1.0, %v3773
    %v3775 = vxor.u32 %v3766, 2147483648
    %v3776 = vmul.f32 %v3775, 1.442695
    %v3777 = vpow.pop %v3776
    %v3778 = vadd.f32 %v3777, 1.0
    %v3779 = vrcp.pop %v3778
    %v3780 = vmul.f32 1.0, %v3779
    %v3781 = vtanh.pop %v3767
    %v3782 = vxor.u32 %v3768, 2147483648
    %v3783 = vmul.f32 %v3782, 1.442695
    %v3784 = vpow.pop %v3783
    %v3785 = vadd.f32 %v3784, 1.0
    %v3786 = vrcp.pop %v3785
    %v3787 = vmul.f32 1.0, %v3786
    %v3788 = vmul.f32 %v3780, %v3620
    %v3789 = vmul.f32 %v3774, %v3781
    %v3790 = vadd.f32 %v3788, %v3789
    %v3791 = vtanh.pop %v3790
    %v3792 = vmul.f32 %v3787, %v3791
    %3793 = vmatprep.subr.mxu0 %v2215
    %3794 = vmatpush1.msra.mxu0 %v2214
    %3795 = vmatprep.subr.mxu0 %v2211
    %3796 = vmatpush1.msra.mxu0 %v2210
    %3797 = vmatprep.subr.mxu0 %v2207
    %3798 = vmatpush1.msra.mxu0 %v2206
    %3799 = vmatprep.subr.mxu0 %v2203
    %3800 = vmatpush1.msra.mxu0 %v2202
    %3801 = vmatprep.subr.mxu0 %v2199
    %3802 = vmatpush1.msra.mxu0 %v2198
    %3803 = vmatprep.subr.mxu0 %v2195
    %3804 = vmatpush1.msra.mxu0 %v2194
    %3805 = vmatprep.subr.mxu0 %v2191
    %3806 = vmatpush1.msra.mxu0 %v2190
    %3807 = vmatprep.subr.mxu0 %v2187
    %3808 = vmatpush1.msra.mxu0 %v2186
    %3809 = vmatprep.subr.mxu0 %v2183
    %3810 = vmatpush1.msra.mxu0 %v2182
    %3811 = vmatprep.subr.mxu0 %v2179
    %3812 = vmatpush1.msra.mxu0 %v2178
    %3813 = vmatprep.subr.mxu0 %v2175
    %3814 = vmatpush1.msra.mxu0 %v2174
    %3815 = vmatprep.subr.mxu0 %v2171
    %3816 = vmatpush1.msra.mxu0 %v2170
    %3817 = vmatprep.subr.mxu0 %v2167
    %3818 = vmatpush1.msra.mxu0 %v2166
    %3819 = vmatprep.subr.mxu0 %v2163
    %3820 = vmatpush1.msra.mxu0 %v2162
    %3821 = vmatprep.subr.mxu0 %v2159
    %3822 = vmatpush1.msra.mxu0 %v2158
    %3823 = vmatprep.subr.mxu0 %v2155
    %3824 = vmatpush1.msra.mxu0 %v2154
    %3825 = vmatprep.subr.mxu0 0.0
    %3826 = vmatpush2.msra.mxu0 0.0
    %3827 = vmatprep.subr.mxu0 0.0
    %3828 = vmatpush2.msra.mxu0 0.0
    %3829 = vmatprep.subr.mxu0 0.0
    %3830 = vmatpush2.msra.mxu0 0.0
    %3831 = vmatprep.subr.mxu0 0.0
    %3832 = vmatpush2.msra.mxu0 0.0
    %3833 = vmatprep.subr.mxu0 0.0
    %3834 = vmatpush2.msra.mxu0 0.0
    %3835 = vmatprep.subr.mxu0 0.0
    %3836 = vmatpush2.msra.mxu0 0.0
    %3837 = vmatprep.subr.mxu0 0.0
    %3838 = vmatpush2.msra.mxu0 0.0
    %3839 = vmatprep.subr.mxu0 0.0
    %3840 = vmatpush2.msra.mxu0 0.0
    %3841 = vmatprep.subr.mxu0 0.0
    %3842 = vmatpush2.msra.mxu0 0.0
    %3843 = vmatprep.subr.mxu0 0.0
    %3844 = vmatpush2.msra.mxu0 0.0
    %3845 = vmatprep.subr.mxu0 0.0
    %3846 = vmatpush2.msra.mxu0 0.0
    %3847 = vmatprep.subr.mxu0 0.0
    %3848 = vmatpush2.msra.mxu0 0.0
    %3849 = vmatprep.subr.mxu0 0.0
    %3850 = vmatpush2.msra.mxu0 0.0
    %3851 = vmatprep.subr.mxu0 0.0
    %3852 = vmatpush2.msra.mxu0 0.0
    %3853 = vmatprep.subr.mxu0 0.0
    %3854 = vmatpush2.msra.mxu0 0.0
    %3855 = vmatprep.subr.mxu0 0.0
    %3856 = vmatpush2.msra.mxu0 0.0
    %3857 = vmatprep.mubr.f32.mxu0 0.0
    %3858 = vmatmul.mubr.f32.gmra.mxu0 %v3792
    %v3859 = vpop.f32.mrf.mxu0
    %v3860 = vadd.f32 0.0, %v3859
    %v3861 = vpop.f32.mrf.mxu0
    %v3862 = vadd.f32 0.0, %v3861
    %3863 = vdwg.mxu0
    %3864 = vmatprep.subr.mxu0 %v2217
    %3865 = vmatpush1.msra.mxu0 %v2216
    %3866 = vmatprep.subr.mxu0 %v2213
    %3867 = vmatpush1.msra.mxu0 %v2212
    %3868 = vmatprep.subr.mxu0 %v2209
    %3869 = vmatpush1.msra.mxu0 %v2208
    %3870 = vmatprep.subr.mxu0 %v2205
    %3871 = vmatpush1.msra.mxu0 %v2204
    %3872 = vmatprep.subr.mxu0 %v2201
    %3873 = vmatpush1.msra.mxu0 %v2200
    %3874 = vmatprep.subr.mxu0 %v2197
    %3875 = vmatpush1.msra.mxu0 %v2196
    %3876 = vmatprep.subr.mxu0 %v2193
    %3877 = vmatpush1.msra.mxu0 %v2192
    %3878 = vmatprep.subr.mxu0 %v2189
    %3879 = vmatpush1.msra.mxu0 %v2188
    %3880 = vmatprep.subr.mxu0 %v2185
    %3881 = vmatpush1.msra.mxu0 %v2184
    %3882 = vmatprep.subr.mxu0 %v2181
    %3883 = vmatpush1.msra.mxu0 %v2180
    %3884 = vmatprep.subr.mxu0 %v2177
    %3885 = vmatpush1.msra.mxu0 %v2176
    %3886 = vmatprep.subr.mxu0 %v2173
    %3887 = vmatpush1.msra.mxu0 %v2172
    %3888 = vmatprep.subr.mxu0 %v2169
    %3889 = vmatpush1.msra.mxu0 %v2168
    %3890 = vmatprep.subr.mxu0 %v2165
    %3891 = vmatpush1.msra.mxu0 %v2164
    %3892 = vmatprep.subr.mxu0 %v2161
    %3893 = vmatpush1.msra.mxu0 %v2160
    %3894 = vmatprep.subr.mxu0 %v2157
    %3895 = vmatpush1.msra.mxu0 %v2156
    %3896 = vmatprep.subr.mxu0 0.0
    %3897 = vmatpush2.msra.mxu0 0.0
    %3898 = vmatprep.subr.mxu0 0.0
    %3899 = vmatpush2.msra.mxu0 0.0
    %3900 = vmatprep.subr.mxu0 0.0
    %3901 = vmatpush2.msra.mxu0 0.0
    %3902 = vmatprep.subr.mxu0 0.0
    %3903 = vmatpush2.msra.mxu0 0.0
    %3904 = vmatprep.subr.mxu0 0.0
    %3905 = vmatpush2.msra.mxu0 0.0
    %3906 = vmatprep.subr.mxu0 0.0
    %3907 = vmatpush2.msra.mxu0 0.0
    %3908 = vmatprep.subr.mxu0 0.0
    %3909 = vmatpush2.msra.mxu0 0.0
    %3910 = vmatprep.subr.mxu0 0.0
    %3911 = vmatpush2.msra.mxu0 0.0
    %3912 = vmatprep.subr.mxu0 0.0
    %3913 = vmatpush2.msra.mxu0 0.0
    %3914 = vmatprep.subr.mxu0 0.0
    %3915 = vmatpush2.msra.mxu0 0.0
    %3916 = vmatprep.subr.mxu0 0.0
    %3917 = vmatpush2.msra.mxu0 0.0
    %3918 = vmatprep.subr.mxu0 0.0
    %3919 = vmatpush2.msra.mxu0 0.0
    %3920 = vmatprep.subr.mxu0 0.0
    %3921 = vmatpush2.msra.mxu0 0.0
    %3922 = vmatprep.subr.mxu0 0.0
    %3923 = vmatpush2.msra.mxu0 0.0
    %3924 = vmatprep.subr.mxu0 0.0
    %3925 = vmatpush2.msra.mxu0 0.0
    %3926 = vmatprep.subr.mxu0 0.0
    %3927 = vmatpush2.msra.mxu0 0.0
    %3928 = vmatprep.mubr.f32.mxu0 0.0
    %3929 = vmatmul.mubr.f32.gmra.mxu0 %v3792
    %v3930 = vpop.f32.mrf.mxu0
    %v3931 = vadd.f32 0.0, %v3930
    %v3932 = vpop.f32.mrf.mxu0
    %v3933 = vadd.f32 0.0, %v3932
    %3934 = vdwg.mxu0
    %v3935 = vadd.f32 %v2440, %v3860
    %v3936 = vadd.f32 %v2442, %v3862
    %v3937 = vadd.f32 %v2553, %v3931
    %v3938 = vadd.f32 %v2555, %v3933
    %v3939 = vxor.u32 %v3935, 2147483648
    %v3940 = vmul.f32 %v3939, 1.442695
    %v3941 = vpow.pop %v3940
    %v3942 = vadd.f32 %v3941, 1.0
    %v3943 = vrcp.pop %v3942
    %v3944 = vmul.f32 1.0, %v3943
    %v3945 = vxor.u32 %v3936, 2147483648
    %v3946 = vmul.f32 %v3945, 1.442695
    %v3947 = vpow.pop %v3946
    %v3948 = vadd.f32 %v3947, 1.0
    %v3949 = vrcp.pop %v3948
    %v3950 = vmul.f32 1.0, %v3949
    %v3951 = vtanh.pop %v3937
    %v3952 = vxor.u32 %v3938, 2147483648
    %v3953 = vmul.f32 %v3952, 1.442695
    %v3954 = vpow.pop %v3953
    %v3955 = vadd.f32 %v3954, 1.0
    %v3956 = vrcp.pop %v3955
    %v3957 = vmul.f32 1.0, %v3956
    %v3958 = vmul.f32 %v3950, %v3790
    %v3959 = vmul.f32 %v3944, %v3951
    %v3960 = vadd.f32 %v3958, %v3959
    %v3961 = vtanh.pop %v3960
    %v3962 = vmul.f32 %v3957, %v3961
    %3963 = vmatprep.subr.mxu0 %v2215
    %3964 = vmatpush1.msra.mxu0 %v2214
    %3965 = vmatprep.subr.mxu0 %v2211
    %3966 = vmatpush1.msra.mxu0 %v2210
    %3967 = vmatprep.subr.mxu0 %v2207
    %3968 = vmatpush1.msra.mxu0 %v2206
    %3969 = vmatprep.subr.mxu0 %v2203
    %3970 = vmatpush1.msra.mxu0 %v2202
    %3971 = vmatprep.subr.mxu0 %v2199
    %3972 = vmatpush1.msra.mxu0 %v2198
    %3973 = vmatprep.subr.mxu0 %v2195
    %3974 = vmatpush1.msra.mxu0 %v2194
    %3975 = vmatprep.subr.mxu0 %v2191
    %3976 = vmatpush1.msra.mxu0 %v2190
    %3977 = vmatprep.subr.mxu0 %v2187
    %3978 = vmatpush1.msra.mxu0 %v2186
    %3979 = vmatprep.subr.mxu0 %v2183
    %3980 = vmatpush1.msra.mxu0 %v2182
    %3981 = vmatprep.subr.mxu0 %v2179
    %3982 = vmatpush1.msra.mxu0 %v2178
    %3983 = vmatprep.subr.mxu0 %v2175
    %3984 = vmatpush1.msra.mxu0 %v2174
    %3985 = vmatprep.subr.mxu0 %v2171
    %3986 = vmatpush1.msra.mxu0 %v2170
    %3987 = vmatprep.subr.mxu0 %v2167
    %3988 = vmatpush1.msra.mxu0 %v2166
    %3989 = vmatprep.subr.mxu0 %v2163
    %3990 = vmatpush1.msra.mxu0 %v2162
    %3991 = vmatprep.subr.mxu0 %v2159
    %3992 = vmatpush1.msra.mxu0 %v2158
    %3993 = vmatprep.subr.mxu0 %v2155
    %3994 = vmatpush1.msra.mxu0 %v2154
    %3995 = vmatprep.subr.mxu0 0.0
    %3996 = vmatpush2.msra.mxu0 0.0
    %3997 = vmatprep.subr.mxu0 0.0
    %3998 = vmatpush2.msra.mxu0 0.0
    %3999 = vmatprep.subr.mxu0 0.0
    %4000 = vmatpush2.msra.mxu0 0.0
    %4001 = vmatprep.subr.mxu0 0.0
    %4002 = vmatpush2.msra.mxu0 0.0
    %4003 = vmatprep.subr.mxu0 0.0
    %4004 = vmatpush2.msra.mxu0 0.0
    %4005 = vmatprep.subr.mxu0 0.0
    %4006 = vmatpush2.msra.mxu0 0.0
    %4007 = vmatprep.subr.mxu0 0.0
    %4008 = vmatpush2.msra.mxu0 0.0
    %4009 = vmatprep.subr.mxu0 0.0
    %4010 = vmatpush2.msra.mxu0 0.0
    %4011 = vmatprep.subr.mxu0 0.0
    %4012 = vmatpush2.msra.mxu0 0.0
    %4013 = vmatprep.subr.mxu0 0.0
    %4014 = vmatpush2.msra.mxu0 0.0
    %4015 = vmatprep.subr.mxu0 0.0
    %4016 = vmatpush2.msra.mxu0 0.0
    %4017 = vmatprep.subr.mxu0 0.0
    %4018 = vmatpush2.msra.mxu0 0.0
    %4019 = vmatprep.subr.mxu0 0.0
    %4020 = vmatpush2.msra.mxu0 0.0
    %4021 = vmatprep.subr.mxu0 0.0
    %4022 = vmatpush2.msra.mxu0 0.0
    %4023 = vmatprep.subr.mxu0 0.0
    %4024 = vmatpush2.msra.mxu0 0.0
    %4025 = vmatprep.subr.mxu0 0.0
    %4026 = vmatpush2.msra.mxu0 0.0
    %4027 = vmatprep.mubr.f32.mxu0 0.0
    %4028 = vmatmul.mubr.f32.gmra.mxu0 %v3962
    %v4029 = vpop.f32.mrf.mxu0
    %v4030 = vadd.f32 0.0, %v4029
    %v4031 = vpop.f32.mrf.mxu0
    %v4032 = vadd.f32 0.0, %v4031
    %4033 = vdwg.mxu0
    %4034 = vmatprep.subr.mxu0 %v2217
    %4035 = vmatpush1.msra.mxu0 %v2216
    %4036 = vmatprep.subr.mxu0 %v2213
    %4037 = vmatpush1.msra.mxu0 %v2212
    %4038 = vmatprep.subr.mxu0 %v2209
    %4039 = vmatpush1.msra.mxu0 %v2208
    %4040 = vmatprep.subr.mxu0 %v2205
    %4041 = vmatpush1.msra.mxu0 %v2204
    %4042 = vmatprep.subr.mxu0 %v2201
    %4043 = vmatpush1.msra.mxu0 %v2200
    %4044 = vmatprep.subr.mxu0 %v2197
    %4045 = vmatpush1.msra.mxu0 %v2196
    %4046 = vmatprep.subr.mxu0 %v2193
    %4047 = vmatpush1.msra.mxu0 %v2192
    %4048 = vmatprep.subr.mxu0 %v2189
    %4049 = vmatpush1.msra.mxu0 %v2188
    %4050 = vmatprep.subr.mxu0 %v2185
    %4051 = vmatpush1.msra.mxu0 %v2184
    %4052 = vmatprep.subr.mxu0 %v2181
    %4053 = vmatpush1.msra.mxu0 %v2180
    %4054 = vmatprep.subr.mxu0 %v2177
    %4055 = vmatpush1.msra.mxu0 %v2176
    %4056 = vmatprep.subr.mxu0 %v2173
    %4057 = vmatpush1.msra.mxu0 %v2172
    %4058 = vmatprep.subr.mxu0 %v2169
    %4059 = vmatpush1.msra.mxu0 %v2168
    %4060 = vmatprep.subr.mxu0 %v2165
    %4061 = vmatpush1.msra.mxu0 %v2164
    %4062 = vmatprep.subr.mxu0 %v2161
    %4063 = vmatpush1.msra.mxu0 %v2160
    %4064 = vmatprep.subr.mxu0 %v2157
    %4065 = vmatpush1.msra.mxu0 %v2156
    %4066 = vmatprep.subr.mxu0 0.0
    %4067 = vmatpush2.msra.mxu0 0.0
    %4068 = vmatprep.subr.mxu0 0.0
    %4069 = vmatpush2.msra.mxu0 0.0
    %4070 = vmatprep.subr.mxu0 0.0
    %4071 = vmatpush2.msra.mxu0 0.0
    %4072 = vmatprep.subr.mxu0 0.0
    %4073 = vmatpush2.msra.mxu0 0.0
    %4074 = vmatprep.subr.mxu0 0.0
    %4075 = vmatpush2.msra.mxu0 0.0
    %4076 = vmatprep.subr.mxu0 0.0
    %4077 = vmatpush2.msra.mxu0 0.0
    %4078 = vmatprep.subr.mxu0 0.0
    %4079 = vmatpush2.msra.mxu0 0.0
    %4080 = vmatprep.subr.mxu0 0.0
    %4081 = vmatpush2.msra.mxu0 0.0
    %4082 = vmatprep.subr.mxu0 0.0
    %4083 = vmatpush2.msra.mxu0 0.0
    %4084 = vmatprep.subr.mxu0 0.0
    %4085 = vmatpush2.msra.mxu0 0.0
    %4086 = vmatprep.subr.mxu0 0.0
    %4087 = vmatpush2.msra.mxu0 0.0
    %4088 = vmatprep.subr.mxu0 0.0
    %4089 = vmatpush2.msra.mxu0 0.0
    %4090 = vmatprep.subr.mxu0 0.0
    %4091 = vmatpush2.msra.mxu0 0.0
    %4092 = vmatprep.subr.mxu0 0.0
    %4093 = vmatpush2.msra.mxu0 0.0
    %4094 = vmatprep.subr.mxu0 0.0
    %4095 = vmatpush2.msra.mxu0 0.0
    %4096 = vmatprep.subr.mxu0 0.0
    %4097 = vmatpush2.msra.mxu0 0.0
    %4098 = vmatprep.mubr.f32.mxu0 0.0
    %4099 = vmatmul.mubr.f32.gmra.mxu0 %v3962
    %v4100 = vpop.f32.mrf.mxu0
    %v4101 = vadd.f32 0.0, %v4100
    %v4102 = vpop.f32.mrf.mxu0
    %v4103 = vadd.f32 0.0, %v4102
    %4104 = vdwg.mxu0
    %v4105 = vadd.f32 %v2446, %v4030
    %v4106 = vadd.f32 %v2448, %v4032
    %v4107 = vadd.f32 %v2559, %v4101
    %v4108 = vadd.f32 %v2561, %v4103
    %v4109 = vxor.u32 %v4105, 2147483648
    %v4110 = vmul.f32 %v4109, 1.442695
    %v4111 = vpow.pop %v4110
    %v4112 = vadd.f32 %v4111, 1.0
    %v4113 = vrcp.pop %v4112
    %v4114 = vmul.f32 1.0, %v4113
    %v4115 = vxor.u32 %v4106, 2147483648
    %v4116 = vmul.f32 %v4115, 1.442695
    %v4117 = vpow.pop %v4116
    %v4118 = vadd.f32 %v4117, 1.0
    %v4119 = vrcp.pop %v4118
    %v4120 = vmul.f32 1.0, %v4119
    %v4121 = vtanh.pop %v4107
    %v4122 = vxor.u32 %v4108, 2147483648
    %v4123 = vmul.f32 %v4122, 1.442695
    %v4124 = vpow.pop %v4123
    %v4125 = vadd.f32 %v4124, 1.0
    %v4126 = vrcp.pop %v4125
    %v4127 = vmul.f32 1.0, %v4126
    %v4128 = vmul.f32 %v4120, %v3960
    %v4129 = vmul.f32 %v4114, %v4121
    %v4130 = vadd.f32 %v4128, %v4129
    %v4131 = vtanh.pop %v4130
    %v4132 = vmul.f32 %v4127, %v4131
    %4133 = vmatprep.subr.mxu0 %v2215
    %4134 = vmatpush1.msra.mxu0 %v2214
    %4135 = vmatprep.subr.mxu0 %v2211
    %4136 = vmatpush1.msra.mxu0 %v2210
    %4137 = vmatprep.subr.mxu0 %v2207
    %4138 = vmatpush1.msra.mxu0 %v2206
    %4139 = vmatprep.subr.mxu0 %v2203
    %4140 = vmatpush1.msra.mxu0 %v2202
    %4141 = vmatprep.subr.mxu0 %v2199
    %4142 = vmatpush1.msra.mxu0 %v2198
    %4143 = vmatprep.subr.mxu0 %v2195
    %4144 = vmatpush1.msra.mxu0 %v2194
    %4145 = vmatprep.subr.mxu0 %v2191
    %4146 = vmatpush1.msra.mxu0 %v2190
    %4147 = vmatprep.subr.mxu0 %v2187
    %4148 = vmatpush1.msra.mxu0 %v2186
    %4149 = vmatprep.subr.mxu0 %v2183
    %4150 = vmatpush1.msra.mxu0 %v2182
    %4151 = vmatprep.subr.mxu0 %v2179
    %4152 = vmatpush1.msra.mxu0 %v2178
    %4153 = vmatprep.subr.mxu0 %v2175
    %4154 = vmatpush1.msra.mxu0 %v2174
    %4155 = vmatprep.subr.mxu0 %v2171
    %4156 = vmatpush1.msra.mxu0 %v2170
    %4157 = vmatprep.subr.mxu0 %v2167
    %4158 = vmatpush1.msra.mxu0 %v2166
    %4159 = vmatprep.subr.mxu0 %v2163
    %4160 = vmatpush1.msra.mxu0 %v2162
    %4161 = vmatprep.subr.mxu0 %v2159
    %4162 = vmatpush1.msra.mxu0 %v2158
    %4163 = vmatprep.subr.mxu0 %v2155
    %4164 = vmatpush1.msra.mxu0 %v2154
    %4165 = vmatprep.subr.mxu0 0.0
    %4166 = vmatpush2.msra.mxu0 0.0
    %4167 = vmatprep.subr.mxu0 0.0
    %4168 = vmatpush2.msra.mxu0 0.0
    %4169 = vmatprep.subr.mxu0 0.0
    %4170 = vmatpush2.msra.mxu0 0.0
    %4171 = vmatprep.subr.mxu0 0.0
    %4172 = vmatpush2.msra.mxu0 0.0
    %4173 = vmatprep.subr.mxu0 0.0
    %4174 = vmatpush2.msra.mxu0 0.0
    %4175 = vmatprep.subr.mxu0 0.0
    %4176 = vmatpush2.msra.mxu0 0.0
    %4177 = vmatprep.subr.mxu0 0.0
    %4178 = vmatpush2.msra.mxu0 0.0
    %4179 = vmatprep.subr.mxu0 0.0
    %4180 = vmatpush2.msra.mxu0 0.0
    %4181 = vmatprep.subr.mxu0 0.0
    %4182 = vmatpush2.msra.mxu0 0.0
    %4183 = vmatprep.subr.mxu0 0.0
    %4184 = vmatpush2.msra.mxu0 0.0
    %4185 = vmatprep.subr.mxu0 0.0
    %4186 = vmatpush2.msra.mxu0 0.0
    %4187 = vmatprep.subr.mxu0 0.0
    %4188 = vmatpush2.msra.mxu0 0.0
    %4189 = vmatprep.subr.mxu0 0.0
    %4190 = vmatpush2.msra.mxu0 0.0
    %4191 = vmatprep.subr.mxu0 0.0
    %4192 = vmatpush2.msra.mxu0 0.0
    %4193 = vmatprep.subr.mxu0 0.0
    %4194 = vmatpush2.msra.mxu0 0.0
    %4195 = vmatprep.subr.mxu0 0.0
    %4196 = vmatpush2.msra.mxu0 0.0
    %4197 = vmatprep.mubr.f32.mxu0 0.0
    %4198 = vmatmul.mubr.f32.gmra.mxu0 %v4132
    %v4199 = vpop.f32.mrf.mxu0
    %v4200 = vadd.f32 0.0, %v4199
    %v4201 = vpop.f32.mrf.mxu0
    %v4202 = vadd.f32 0.0, %v4201
    %4203 = vdwg.mxu0
    %4204 = vmatprep.subr.mxu0 %v2217
    %4205 = vmatpush1.msra.mxu0 %v2216
    %4206 = vmatprep.subr.mxu0 %v2213
    %4207 = vmatpush1.msra.mxu0 %v2212
    %4208 = vmatprep.subr.mxu0 %v2209
    %4209 = vmatpush1.msra.mxu0 %v2208
    %4210 = vmatprep.subr.mxu0 %v2205
    %4211 = vmatpush1.msra.mxu0 %v2204
    %4212 = vmatprep.subr.mxu0 %v2201
    %4213 = vmatpush1.msra.mxu0 %v2200
    %4214 = vmatprep.subr.mxu0 %v2197
    %4215 = vmatpush1.msra.mxu0 %v2196
    %4216 = vmatprep.subr.mxu0 %v2193
    %4217 = vmatpush1.msra.mxu0 %v2192
    %4218 = vmatprep.subr.mxu0 %v2189
    %4219 = vmatpush1.msra.mxu0 %v2188
    %4220 = vmatprep.subr.mxu0 %v2185
    %4221 = vmatpush1.msra.mxu0 %v2184
    %4222 = vmatprep.subr.mxu0 %v2181
    %4223 = vmatpush1.msra.mxu0 %v2180
    %4224 = vmatprep.subr.mxu0 %v2177
    %4225 = vmatpush1.msra.mxu0 %v2176
    %4226 = vmatprep.subr.mxu0 %v2173
    %4227 = vmatpush1.msra.mxu0 %v2172
    %4228 = vmatprep.subr.mxu0 %v2169
    %4229 = vmatpush1.msra.mxu0 %v2168
    %4230 = vmatprep.subr.mxu0 %v2165
    %4231 = vmatpush1.msra.mxu0 %v2164
    %4232 = vmatprep.subr.mxu0 %v2161
    %4233 = vmatpush1.msra.mxu0 %v2160
    %4234 = vmatprep.subr.mxu0 %v2157
    %4235 = vmatpush1.msra.mxu0 %v2156
    %4236 = vmatprep.subr.mxu0 0.0
    %4237 = vmatpush2.msra.mxu0 0.0
    %4238 = vmatprep.subr.mxu0 0.0
    %4239 = vmatpush2.msra.mxu0 0.0
    %4240 = vmatprep.subr.mxu0 0.0
    %4241 = vmatpush2.msra.mxu0 0.0
    %4242 = vmatprep.subr.mxu0 0.0
    %4243 = vmatpush2.msra.mxu0 0.0
    %4244 = vmatprep.subr.mxu0 0.0
    %4245 = vmatpush2.msra.mxu0 0.0
    %4246 = vmatprep.subr.mxu0 0.0
    %4247 = vmatpush2.msra.mxu0 0.0
    %4248 = vmatprep.subr.mxu0 0.0
    %4249 = vmatpush2.msra.mxu0 0.0
    %4250 = vmatprep.subr.mxu0 0.0
    %4251 = vmatpush2.msra.mxu0 0.0
    %4252 = vmatprep.subr.mxu0 0.0
    %4253 = vmatpush2.msra.mxu0 0.0
    %4254 = vmatprep.subr.mxu0 0.0
    %4255 = vmatpush2.msra.mxu0 0.0
    %4256 = vmatprep.subr.mxu0 0.0
    %4257 = vmatpush2.msra.mxu0 0.0
    %4258 = vmatprep.subr.mxu0 0.0
    %4259 = vmatpush2.msra.mxu0 0.0
    %4260 = vmatprep.subr.mxu0 0.0
    %4261 = vmatpush2.msra.mxu0 0.0
    %4262 = vmatprep.subr.mxu0 0.0
    %4263 = vmatpush2.msra.mxu0 0.0
    %4264 = vmatprep.subr.mxu0 0.0
    %4265 = vmatpush2.msra.mxu0 0.0
    %4266 = vmatprep.subr.mxu0 0.0
    %4267 = vmatpush2.msra.mxu0 0.0
    %4268 = vmatprep.mubr.f32.mxu0 0.0
    %4269 = vmatmul.mubr.f32.gmra.mxu0 %v4132
    %v4270 = vpop.f32.mrf.mxu0
    %v4271 = vadd.f32 0.0, %v4270
    %v4272 = vpop.f32.mrf.mxu0
    %v4273 = vadd.f32 0.0, %v4272
    %4274 = vdwg.mxu0
    %v4275 = vadd.f32 %v2452, %v4200
    %v4276 = vadd.f32 %v2454, %v4202
    %v4277 = vadd.f32 %v2565, %v4271
    %v4278 = vadd.f32 %v2567, %v4273
    %v4279 = vxor.u32 %v4275, 2147483648
    %v4280 = vmul.f32 %v4279, 1.442695
    %v4281 = vpow.pop %v4280
    %v4282 = vadd.f32 %v4281, 1.0
    %v4283 = vrcp.pop %v4282
    %v4284 = vmul.f32 1.0, %v4283
    %v4285 = vxor.u32 %v4276, 2147483648
    %v4286 = vmul.f32 %v4285, 1.442695
    %v4287 = vpow.pop %v4286
    %v4288 = vadd.f32 %v4287, 1.0
    %v4289 = vrcp.pop %v4288
    %v4290 = vmul.f32 1.0, %v4289
    %v4291 = vtanh.pop %v4277
    %v4292 = vxor.u32 %v4278, 2147483648
    %v4293 = vmul.f32 %v4292, 1.442695
    %v4294 = vpow.pop %v4293
    %v4295 = vadd.f32 %v4294, 1.0
    %v4296 = vrcp.pop %v4295
    %v4297 = vmul.f32 1.0, %v4296
    %v4298 = vmul.f32 %v4290, %v4130
    %v4299 = vmul.f32 %v4284, %v4291
    %v4300 = vadd.f32 %v4298, %v4299
    %v4301 = vtanh.pop %v4300
    %v4302 = vmul.f32 %v4297, %v4301
    %s4303 = smul.u32 264, 1
    %s4304 = sshll.u32 %s4303, 4
    %4305 = dma.done %s56, %s4304
    %v4306 = vld [vmem:[#allocation3] sm:$0xff]
    %v4307 = vld [vmem:[#allocation3 + $0x8] sm:$0xff]
    %v4308 = vld [vmem:[#allocation3 + $0x10] sm:$0xff]
    %v4309 = vld [vmem:[#allocation3 + $0x18] sm:$0xff]
    %v4310 = vld [vmem:[#allocation3 + $0x20] sm:$0xff]
    %v4311 = vld [vmem:[#allocation3 + $0x28] sm:$0xff]
    %v4312 = vld [vmem:[#allocation3 + $0x30] sm:$0xff]
    %v4313 = vld [vmem:[#allocation3 + $0x38] sm:$0xff]
    %v4314 = vld [vmem:[#allocation3 + $0x40] sm:$0xff]
    %v4315 = vld [vmem:[#allocation3 + $0x48] sm:$0xff]
    %v4316 = vld [vmem:[#allocation3 + $0x50] sm:$0xff]
    %v4317 = vld [vmem:[#allocation3 + $0x58] sm:$0xff]
    %v4318 = vld [vmem:[#allocation3 + $0x60] sm:$0xff]
    %v4319 = vld [vmem:[#allocation3 + $0x68] sm:$0xff]
    %v4320 = vld [vmem:[#allocation3 + $0x70] sm:$0xff]
    %v4321 = vld [vmem:[#allocation3 + $0x78] sm:$0xff]
    %v4322 = vld [vmem:[#allocation3 + $0x80] sm:$0xff]
    %v4323 = vld [vmem:[#allocation3 + $0x88] sm:$0xff]
    %v4324 = vld [vmem:[#allocation3 + $0x90] sm:$0xff]
    %v4325 = vld [vmem:[#allocation3 + $0x98] sm:$0xff]
    %v4326 = vld [vmem:[#allocation3 + $0xa0] sm:$0xff]
    %v4327 = vld [vmem:[#allocation3 + $0xa8] sm:$0xff]
    %v4328 = vld [vmem:[#allocation3 + $0xb0] sm:$0xff]
    %v4329 = vld [vmem:[#allocation3 + $0xb8] sm:$0xff]
    %v4330 = vld [vmem:[#allocation3 + $0xc0] sm:$0xff]
    %v4331 = vld [vmem:[#allocation3 + $0xc8] sm:$0xff]
    %v4332 = vld [vmem:[#allocation3 + $0xd0] sm:$0xff]
    %v4333 = vld [vmem:[#allocation3 + $0xd8] sm:$0xff]
    %v4334 = vld [vmem:[#allocation3 + $0xe0] sm:$0xff]
    %v4335 = vld [vmem:[#allocation3 + $0xe8] sm:$0xff]
    %v4336 = vld [vmem:[#allocation3 + $0xf0] sm:$0xff]
    %v4337 = vld [vmem:[#allocation3 + $0xf8] sm:$0xff]
    %4338 = vmatprep.subr.mxu0 0.0
    %4339 = vmatpush1.msra.mxu0 %v4337
    %4340 = vmatprep.subr.mxu0 0.0
    %4341 = vmatpush1.msra.mxu0 %v4336
    %4342 = vmatprep.subr.mxu0 0.0
    %4343 = vmatpush1.msra.mxu0 %v4335
    %4344 = vmatprep.subr.mxu0 0.0
    %4345 = vmatpush1.msra.mxu0 %v4334
    %4346 = vmatprep.subr.mxu0 0.0
    %4347 = vmatpush1.msra.mxu0 %v4333
    %4348 = vmatprep.subr.mxu0 0.0
    %4349 = vmatpush1.msra.mxu0 %v4332
    %4350 = vmatprep.subr.mxu0 0.0
    %4351 = vmatpush1.msra.mxu0 %v4331
    %4352 = vmatprep.subr.mxu0 0.0
    %4353 = vmatpush1.msra.mxu0 %v4330
    %4354 = vmatprep.subr.mxu0 0.0
    %4355 = vmatpush1.msra.mxu0 %v4329
    %4356 = vmatprep.subr.mxu0 0.0
    %4357 = vmatpush1.msra.mxu0 %v4328
    %4358 = vmatprep.subr.mxu0 0.0
    %4359 = vmatpush1.msra.mxu0 %v4327
    %4360 = vmatprep.subr.mxu0 0.0
    %4361 = vmatpush1.msra.mxu0 %v4326
    %4362 = vmatprep.subr.mxu0 0.0
    %4363 = vmatpush1.msra.mxu0 %v4325
    %4364 = vmatprep.subr.mxu0 0.0
    %4365 = vmatpush1.msra.mxu0 %v4324
    %4366 = vmatprep.subr.mxu0 0.0
    %4367 = vmatpush1.msra.mxu0 %v4323
    %4368 = vmatprep.subr.mxu0 0.0
    %4369 = vmatpush1.msra.mxu0 %v4322
    %4370 = vmatprep.subr.mxu0 0.0
    %4371 = vmatpush2.msra.mxu0 0.0
    %4372 = vmatprep.subr.mxu0 0.0
    %4373 = vmatpush2.msra.mxu0 0.0
    %4374 = vmatprep.subr.mxu0 0.0
    %4375 = vmatpush2.msra.mxu0 0.0
    %4376 = vmatprep.subr.mxu0 0.0
    %4377 = vmatpush2.msra.mxu0 0.0
    %4378 = vmatprep.subr.mxu0 0.0
    %4379 = vmatpush2.msra.mxu0 0.0
    %4380 = vmatprep.subr.mxu0 0.0
    %4381 = vmatpush2.msra.mxu0 0.0
    %4382 = vmatprep.subr.mxu0 0.0
    %4383 = vmatpush2.msra.mxu0 0.0
    %4384 = vmatprep.subr.mxu0 0.0
    %4385 = vmatpush2.msra.mxu0 0.0
    %4386 = vmatprep.subr.mxu0 0.0
    %4387 = vmatpush2.msra.mxu0 0.0
    %4388 = vmatprep.subr.mxu0 0.0
    %4389 = vmatpush2.msra.mxu0 0.0
    %4390 = vmatprep.subr.mxu0 0.0
    %4391 = vmatpush2.msra.mxu0 0.0
    %4392 = vmatprep.subr.mxu0 0.0
    %4393 = vmatpush2.msra.mxu0 0.0
    %4394 = vmatprep.subr.mxu0 0.0
    %4395 = vmatpush2.msra.mxu0 0.0
    %4396 = vmatprep.subr.mxu0 0.0
    %4397 = vmatpush2.msra.mxu0 0.0
    %4398 = vmatprep.subr.mxu0 0.0
    %4399 = vmatpush2.msra.mxu0 0.0
    %4400 = vmatprep.subr.mxu0 0.0
    %4401 = vmatpush2.msra.mxu0 0.0
    %4402 = vmatprep.mubr.f32.mxu0 0.0
    %4403 = vmatmul.mubr.f32.gmra.mxu0 %v2939
    %v4404 = vpop.f32.mrf.mxu0
    %v4405 = vadd.f32 0.0, %v4404
    %v4406 = vpop.f32.mrf.mxu0
    %4407 = vdwg.mxu0
    %4408 = vmatprep.subr.mxu0 0.0
    %4409 = vmatpush1.msra.mxu0 %v4321
    %4410 = vmatprep.subr.mxu0 0.0
    %4411 = vmatpush1.msra.mxu0 %v4320
    %4412 = vmatprep.subr.mxu0 0.0
    %4413 = vmatpush1.msra.mxu0 %v4319
    %4414 = vmatprep.subr.mxu0 0.0
    %4415 = vmatpush1.msra.mxu0 %v4318
    %4416 = vmatprep.subr.mxu0 0.0
    %4417 = vmatpush1.msra.mxu0 %v4317
    %4418 = vmatprep.subr.mxu0 0.0
    %4419 = vmatpush1.msra.mxu0 %v4316
    %4420 = vmatprep.subr.mxu0 0.0
    %4421 = vmatpush1.msra.mxu0 %v4315
    %4422 = vmatprep.subr.mxu0 0.0
    %4423 = vmatpush1.msra.mxu0 %v4314
    %4424 = vmatprep.subr.mxu0 0.0
    %4425 = vmatpush1.msra.mxu0 %v4313
    %4426 = vmatprep.subr.mxu0 0.0
    %4427 = vmatpush1.msra.mxu0 %v4312
    %4428 = vmatprep.subr.mxu0 0.0
    %4429 = vmatpush1.msra.mxu0 %v4311
    %4430 = vmatprep.subr.mxu0 0.0
    %4431 = vmatpush1.msra.mxu0 %v4310
    %4432 = vmatprep.subr.mxu0 0.0
    %4433 = vmatpush1.msra.mxu0 %v4309
    %4434 = vmatprep.subr.mxu0 0.0
    %4435 = vmatpush1.msra.mxu0 %v4308
    %4436 = vmatprep.subr.mxu0 0.0
    %4437 = vmatpush1.msra.mxu0 %v4307
    %4438 = vmatprep.subr.mxu0 0.0
    %4439 = vmatpush1.msra.mxu0 %v4306
    %4440 = vmatprep.subr.mxu0 0.0
    %4441 = vmatpush2.msra.mxu0 0.0
    %4442 = vmatprep.subr.mxu0 0.0
    %4443 = vmatpush2.msra.mxu0 0.0
    %4444 = vmatprep.subr.mxu0 0.0
    %4445 = vmatpush2.msra.mxu0 0.0
    %4446 = vmatprep.subr.mxu0 0.0
    %4447 = vmatpush2.msra.mxu0 0.0
    %4448 = vmatprep.subr.mxu0 0.0
    %4449 = vmatpush2.msra.mxu0 0.0
    %4450 = vmatprep.subr.mxu0 0.0
    %4451 = vmatpush2.msra.mxu0 0.0
    %4452 = vmatprep.subr.mxu0 0.0
    %4453 = vmatpush2.msra.mxu0 0.0
    %4454 = vmatprep.subr.mxu0 0.0
    %4455 = vmatpush2.msra.mxu0 0.0
    %4456 = vmatprep.subr.mxu0 0.0
    %4457 = vmatpush2.msra.mxu0 0.0
    %4458 = vmatprep.subr.mxu0 0.0
    %4459 = vmatpush2.msra.mxu0 0.0
    %4460 = vmatprep.subr.mxu0 0.0
    %4461 = vmatpush2.msra.mxu0 0.0
    %4462 = vmatprep.subr.mxu0 0.0
    %4463 = vmatpush2.msra.mxu0 0.0
    %4464 = vmatprep.subr.mxu0 0.0
    %4465 = vmatpush2.msra.mxu0 0.0
    %4466 = vmatprep.subr.mxu0 0.0
    %4467 = vmatpush2.msra.mxu0 0.0
    %4468 = vmatprep.subr.mxu0 0.0
    %4469 = vmatpush2.msra.mxu0 0.0
    %4470 = vmatprep.subr.mxu0 0.0
    %4471 = vmatpush2.msra.mxu0 0.0
    %4472 = vmatprep.mubr.f32.mxu0 0.0
    %4473 = vmatmul.mubr.f32.gmra.mxu0 %v4302
    %v4474 = vpop.f32.mrf.mxu0
    %v4475 = vadd.f32 %v4405, %v4474
    %v4476 = vpop.f32.mrf.mxu0
    %4477 = vdwg.mxu0
    %v4478 = vld [vmem:[#allocation3 + $0x100] sm:$0x1]
    %v4479 = vlaneseq
    %v4480 = vshrl.u32 %v4479, 7
    %v4481 = vsub.s32 0, %v4480
    %v4482 = vrot.slane %v4478, %v4481
    %v4483 = vadd.f32 %v4475, %v4482
    %4484 = vst [vmem:[#allocation11] sm:$0xff] %v4483
    // Predicated region
    $region30: #{tpu_custom_call.1} parent=1 // pred_check
      _
    $region31: #{tpu_custom_call.1} parent=1 // pred_check_branch
      %4486 = sbr.rel (0) target = $region33
    $region32: #{tpu_custom_call.1} parent=1 // pred_region
      %s4488 = ssub.s32 128, 128
      %4489 = vsyncadd [#allocation8], %s4488
      %s4491 = sshll.u32 [#allocation11], 4
      %s4492 = int_to_ptr.vmem [resolvable:$true] %s4491
      %4494 = dma.vmem_to_hbm [thread:$0]  %s4492, 128, %s5, [#allocation8]
    $region33: #{tpu_custom_call.1} parent=1 // pred_fallthru
      _
    // Predicated region
    $region34: #{tpu_custom_call.1} parent=1 // pred_check
      _
    $region35: #{tpu_custom_call.1} parent=1 // pred_check_branch
      %4496 = sbr.rel (0) target = $region37
    $region36: #{tpu_custom_call.1} parent=1 // pred_region
      %4497 = dma.done [#allocation8], 128
    $region37: #{tpu_custom_call.1} parent=1 // pred_fallthru
      _
    %4498 = vsyncpa [#allocation7], 1
    %4499 = vsyncpa [#allocation10], 1
    %4500 = vsyncpa [#allocation8], 1
  %4501 = vsyncmov [#allocation5]
  %s4502 = vpop.sfrf %4501
  %p4503 = scmp.eq.s32.totalorder %s4502, 0
  %p4504 = pneg %p4503
  %4506 = shalt.err (%p4504)
  %s4507 = scalar_lea.sflag [#allocation5], 1
  %4508 = vsyncmov %s4507
  %s4509 = vpop.sfrf %4508
  %p4510 = scmp.eq.s32.totalorder %s4509, 0
  %p4511 = pneg %p4510
  %4513 = shalt.err (%p4511)

</llo_original>
